<compile_context>
chip_gen: v7x
topology: tpu7x:2x2x1
jax: 0.10.0
libtpu: 0.0.40
codegen_flags: <defaults>
</compile_context>

<pallas_src>
import jax
import jax.numpy as jnp
from jax.experimental import pallas as pl
from jax.experimental.pallas import tpu as pltpu

_C5 = 1024           # conv5 output channels
_C3 = 64             # conv3 output channels
_C_OUT = _C5 + _C3   # 1088 = torch.cat([output5, output3], dim=1)
_L5_CHUNK = 256      # output-channel chunk for layer 5 (bounds live VMEM)


def _pointnet_kernel(x_ref,
                     w1, b1, w2, b2, w3, b3, w4, b4, w5, b5,
                     out_ref):
    """One (batch, point-tile) grid step: full 5-layer MLP + fused concat."""
    x = x_ref[0]                      # (3, TN) float32, channel-major

    # ---- Layer 1 (in=3): VPU broadcast-FMAs, skip a near-empty MXU pass. ---
    w1f = w1[...]                     # (64, 3)
    h1 = jnp.maximum(w1f[:, 0:1] * x[0:1, :]
                     + w1f[:, 1:2] * x[1:2, :]
                     + w1f[:, 2:3] * x[2:3, :]
                     + b1[...], 0.0)                       # (64, TN)

    # ---- Layers 2-4: MXU matmuls, f32 accumulation. ------------------------
    def mxu_layer(h_in, w_ref, b_ref):
        y = jnp.dot(w_ref[...], h_in.astype(w_ref.dtype),
                    preferred_element_type=jnp.float32)
        return jnp.maximum(y + b_ref[...], 0.0)

    h2 = mxu_layer(h1, w2, b2)        # (64, TN)
    h3 = mxu_layer(h2, w3, b3)        # (64, TN)  -> output channels 1024:1088
    h4 = mxu_layer(h3, w4, b4)        # (128, TN)

    # Fused concat tail: conv3 activations land at channels [1024:1088].
    out_ref[0, _C5:_C_OUT, :] = h3.astype(out_ref.dtype)

    # ---- Layer 5 (128 -> 1024) in output-channel chunks. -------------------
    # Each 256-row chunk of W5 is applied and stored immediately, keeping the
    # largest live intermediate at (256, TN) f32 instead of (1024, TN).
    h4c = h4.astype(w5.dtype)
    for c in range(0, _C5, _L5_CHUNK):          # static Python unroll (4 iters)
        y = jnp.dot(w5[c:c + _L5_CHUNK, :], h4c,
                    preferred_element_type=jnp.float32)
        y = jnp.maximum(y + b5[c:c + _L5_CHUNK, :], 0.0)
        out_ref[0, c:c + _L5_CHUNK, :] = y.astype(out_ref.dtype)


def _device_kind():
    try:
        return (jax.devices()[0].device_kind or '').lower()
    except Exception:
        return ''


def pointnet_forward(x, params, input_shape='bnc', tile_n=None, use_bf16=None,
                     out_dtype=jnp.float32):
    """PointNet forward.

    x: (B, N, 3) if input_shape == 'bnc', else (B, 3, N).
    params: 'w1'..'w5' of shape (out, in); 'b1'..'b5' of shape (out, 1)
            (PyTorch Conv1d layout with the k=1 dim squeezed).
    tile_n: point-tile width (rounded to a multiple of 128).
            Default: 1024 on v7x, 512 elsewhere.
    use_bf16: cast weights/activations of the MXU layers (2..5) to bf16 with
              f32 accumulation. Default: True on v5e, False elsewhere.
    out_dtype: dtype of the (B, 1088, N) result. bf16 halves the dominant HBM
               writeback; f32 (default) matches torch exactly.
    Returns (B, 1088, N) with channels ordered [conv5 ; conv3] like torch.
    """
    if input_shape not in ('bcn', 'bnc'):
        raise ValueError("Allowed shapes are 'bcn' and 'bnc'")

    kind = _device_kind()
    is_v5e = ('v5 lite' in kind) or ('v5e' in kind) or ('v5lite' in kind)
    is_v7 = ('v7' in kind) or ('7x' in kind)
    if tile_n is None:
        tile_n = 1024 if is_v7 else 512
    if use_bf16 is None:
        use_bf16 = is_v5e

    x = x.astype(jnp.float32)
    if input_shape == 'bnc':
        # Only the tiny 3-channel input is transposed outside the kernel.
        x = jnp.transpose(x, (0, 2, 1))       # -> (B, 3, N)
    B, cin, N = x.shape
    assert cin == 3, f"expected 3 input channels, got {cin}"

    # Point-tile width: multiple of 128, no larger than the (rounded-up) N.
    tile_n = 128 * max(1, tile_n // 128)
    TN = min(tile_n, 128 * pl.cdiv(N, 128))
    n_tiles = pl.cdiv(N, TN)
    # Ragged last tile is handled by Pallas: OOB input lanes hold garbage but
    # columns are independent, and OOB output columns are dropped at
    # writeback — so no jnp.pad and no post-kernel slice of the big output.
    # (On v7x, B >= 2 or an even n_tiles keeps both TensorCores busy.)

    operands = []
    for k in range(1, 6):
        w = params[f'w{k}'].astype(jnp.float32)
        b = params[f'b{k}'].astype(jnp.float32)
        if use_bf16 and k >= 2:
            w = w.astype(jnp.bfloat16)
        operands.extend([w, b])

    def _full(arr):
        # Grid-invariant weight/bias block (constant index_map => fetched once).
        return pl.BlockSpec(arr.shape, lambda b_i, n_i: (0, 0))

    in_specs = [pl.BlockSpec((1, 3, TN), lambda b_i, n_i: (b_i, 0, n_i))]
    in_specs += [_full(a) for a in operands]
    out_spec = pl.BlockSpec((1, _C_OUT, TN), lambda b_i, n_i: (b_i, 0, n_i))

    out_itemsize = jnp.dtype(out_dtype).itemsize
    flops = 2 * B * N * (3 * 64 + 64 * 64 + 64 * 64 + 64 * 128 + 128 * 1024)
    bytes_accessed = (B * N * (3 * 4 + _C_OUT * out_itemsize)
                      + sum(int(a.size) * a.dtype.itemsize for a in operands))
    cost = pl.CostEstimate(flops=flops, transcendentals=0,
                           bytes_accessed=bytes_accessed)

    return pl.pallas_call(
        _pointnet_kernel,
        out_shape=jax.ShapeDtypeStruct((B, _C_OUT, N), out_dtype),
        grid_spec=pltpu.PrefetchScalarGridSpec(
            num_scalar_prefetch=0,
            grid=(B, n_tiles),
            in_specs=in_specs,
            out_specs=out_spec,
        ),
        compiler_params=pltpu.CompilerParams(
            dimension_semantics=("parallel", "parallel"),
            vmem_limit_bytes=32 * 1024 * 1024,
        ),
        cost_estimate=cost,
    )(x, *operands)


def init_params(key):
    """Deterministic init matching PyTorch Conv1d (k=1) default init range.

    Weights stored as (out, in); biases as (out, 1).
    """
    dims = [(3, 64), (64, 64), (64, 64), (64, 128), (128, 1024)]
    params = {}
    keys = jax.random.split(key, 2 * len(dims))
    for i, (cin, cout) in enumerate(dims):
        bound = 1.0 / (cin ** 0.5)
        params[f'w{i + 1}'] = jax.random.uniform(
            keys[2 * i], (cout, cin), jnp.float32, -bound, bound)
        params[f'b{i + 1}'] = jax.random.uniform(
            keys[2 * i + 1], (cout, 1), jnp.float32, -bound, bound)
    return params


def pointnet_reference(x, params, input_shape='bnc'):
    """Pure-JAX (f32) reference of the PyTorch forward for verification."""
    h = x.astype(jnp.float32)
    if input_shape == 'bnc':
        h = jnp.transpose(h, (0, 2, 1))       # (B, 3, N)
    h3 = None
    for k in (1, 2, 3, 4, 5):
        w = params[f'w{k}']                   # (out, in)
        b = params[f'b{k}']                   # (out, 1)
        h = jnp.maximum(jnp.einsum('oi,bin->bon', w, h) + b[None], 0.0)
        if k == 3:
            h3 = h
    return jnp.concatenate([h, h3], axis=1)   # (B, 1088, N)


if __name__ == "__main__":
    key = jax.random.PRNGKey(0)
    pkey, xkey, x2key = jax.random.split(key, 3)
    params = init_params(pkey)

    # N=200 deliberately not a multiple of 128: exercises the ragged last tile
    # (no padding of the input, no post-kernel slice of the output).
    B, N = 2, 200
    x_bnc = jax.random.normal(xkey, (B, N, 3), jnp.float32)
    ref = pointnet_reference(x_bnc, params, input_shape='bnc')

    # 1) Exact f32 path (default out_dtype, f32 MXU).
    out = jax.block_until_ready(
        pointnet_forward(x_bnc, params, input_shape='bnc', use_bf16=False))
    assert out.shape == (B, _C_OUT, N), out.shape
    assert bool(jnp.all(jnp.isfinite(out))), "ragged-tile garbage leaked"
    assert jnp.allclose(out, ref, atol=1e-4, rtol=1e-4), "f32 mismatch"

    # 2) Ragged multi-tile grid (TN=128 -> 2 point tiles, last one partial).
    out_t = jax.block_until_ready(
        pointnet_forward(x_bnc, params, input_shape='bnc',
                         tile_n=128, use_bf16=False))
    assert jnp.allclose(out_t, ref, atol=1e-4, rtol=1e-4), "ragged-tile mismatch"

    # 3) 'bcn' input path reuses the same kernel, no extra transposes.
    x_bcn = jnp.transpose(x_bnc, (0, 2, 1))
    out_bcn = jax.block_until_ready(
        pointnet_forward(x_bcn, params, input_shape='bcn', use_bf16=False))
    assert jnp.allclose(out_bcn, ref, atol=1e-4, rtol=1e-4), "bcn mismatch"

    # 4) Exactly-divisible multi-tile grid.
    N2 = 384
    x2 = jax.random.normal(x2key, (B, N2, 3), jnp.float32)
    ref2 = pointnet_reference(x2, params, input_shape='bnc')
    out2 = jax.block_until_ready(
        pointnet_forward(x2, params, input_shape='bnc',
                         tile_n=128, use_bf16=False))
    assert jnp.allclose(out2, ref2, atol=1e-4, rtol=1e-4), "multi-tile mismatch"

    # 5) bf16 MXU weights/activations (default on v5e); f32 accumulation.
    out_bf16 = jax.block_until_ready(
        pointnet_forward(x_bnc, params, input_shape='bnc', use_bf16=True))
    assert jnp.allclose(out_bf16, ref, atol=5e-2, rtol=5e-2), "bf16-weight mismatch"

    # 6) bf16 output (halves the dominant HBM writeback); f32 compute inside.
    out_bf16o = jax.block_until_ready(
        pointnet_forward(x_bnc, params, input_shape='bnc',
                         use_bf16=False, out_dtype=jnp.bfloat16))
    assert out_bf16o.dtype == jnp.bfloat16
    assert jnp.allclose(out_bf16o.astype(jnp.float32), ref,
                        atol=5e-2, rtol=5e-2), "bf16-output mismatch"

    print("KERNEL_OK")
</pallas_src>

<mosaic_0001>
module attributes {stable_mosaic.version = 11 : i64} {
  func.func @_pointnet_kernel(%arg0: i32, %arg1: i32, %arg2: memref<1x3x256xf32, #tpu.memory_space<vmem>>, %arg3: memref<64x3xf32, #tpu.memory_space<vmem>>, %arg4: memref<64x1xf32, #tpu.memory_space<vmem>>, %arg5: memref<64x64xf32, #tpu.memory_space<vmem>>, %arg6: memref<64x1xf32, #tpu.memory_space<vmem>>, %arg7: memref<64x64xf32, #tpu.memory_space<vmem>>, %arg8: memref<64x1xf32, #tpu.memory_space<vmem>>, %arg9: memref<128x64xf32, #tpu.memory_space<vmem>>, %arg10: memref<128x1xf32, #tpu.memory_space<vmem>>, %arg11: memref<1024x128xf32, #tpu.memory_space<vmem>>, %arg12: memref<1024x1xf32, #tpu.memory_space<vmem>>, %arg13: memref<1x1088x256xf32, #tpu.memory_space<vmem>>) attributes {dimension_semantics = [#tpu.dimension_semantics<parallel>, #tpu.dimension_semantics<parallel>], iteration_bounds = array<i64: 2, 1>, scalar_prefetch = 0 : i64, scratch_operands = 0 : i64, tpu.core_type = #tpu.core_type<tc>, window_params = [{transform_indices = @transform_0, window_bounds = array<i64: 1, 3, 256>}, {pipeline_mode = #tpu.pipeline_mode<synchronous>, transform_indices = @transform_1, window_bounds = array<i64: 64, 3>}, {pipeline_mode = #tpu.pipeline_mode<synchronous>, transform_indices = @transform_2, window_bounds = array<i64: 64, 1>}, {pipeline_mode = #tpu.pipeline_mode<synchronous>, transform_indices = @transform_3, window_bounds = array<i64: 64, 64>}, {pipeline_mode = #tpu.pipeline_mode<synchronous>, transform_indices = @transform_4, window_bounds = array<i64: 64, 1>}, {pipeline_mode = #tpu.pipeline_mode<synchronous>, transform_indices = @transform_5, window_bounds = array<i64: 64, 64>}, {pipeline_mode = #tpu.pipeline_mode<synchronous>, transform_indices = @transform_6, window_bounds = array<i64: 64, 1>}, {pipeline_mode = #tpu.pipeline_mode<synchronous>, transform_indices = @transform_7, window_bounds = array<i64: 128, 64>}, {pipeline_mode = #tpu.pipeline_mode<synchronous>, transform_indices = @transform_8, window_bounds = array<i64: 128, 1>}, {pipeline_mode = #tpu.pipeline_mode<synchronous>, transform_indices = @transform_9, window_bounds = array<i64: 1024, 128>}, {pipeline_mode = #tpu.pipeline_mode<synchronous>, transform_indices = @transform_10, window_bounds = array<i64: 1024, 1>}, {transform_indices = @transform_11, window_bounds = array<i64: 1, 1088, 256>}]} {
    %c0 = arith.constant 0 : index
    %c0_0 = arith.constant 0 : index
    %c0_1 = arith.constant 0 : index
    %0 = vector.load %arg2[%c0, %c0_0, %c0_1] : memref<1x3x256xf32, #tpu.memory_space<vmem>>, vector<1x3x256xf32>
    %1 = vector.shape_cast %0 : vector<1x3x256xf32> to vector<3x256xf32>
    %c0_2 = arith.constant 0 : index
    %c0_3 = arith.constant 0 : index
    %2 = vector.load %arg3[%c0_2, %c0_3] : memref<64x3xf32, #tpu.memory_space<vmem>>, vector<64x3xf32>
    %3 = vector.extract_strided_slice %2 {offsets = [0, 0], sizes = [64, 1], strides = [1, 1]} : vector<64x3xf32> to vector<64x1xf32>
    %4 = vector.extract_strided_slice %1 {offsets = [0, 0], sizes = [1, 256], strides = [1, 1]} : vector<3x256xf32> to vector<1x256xf32>
    %5 = vector.broadcast %3 : vector<64x1xf32> to vector<64x256xf32>
    %6 = vector.broadcast %4 : vector<1x256xf32> to vector<64x256xf32>
    %7 = arith.mulf %5, %6 : vector<64x256xf32>
    %8 = vector.extract_strided_slice %2 {offsets = [0, 1], sizes = [64, 1], strides = [1, 1]} : vector<64x3xf32> to vector<64x1xf32>
    %9 = vector.extract_strided_slice %1 {offsets = [1, 0], sizes = [1, 256], strides = [1, 1]} : vector<3x256xf32> to vector<1x256xf32>
    %10 = vector.broadcast %8 : vector<64x1xf32> to vector<64x256xf32>
    %11 = vector.broadcast %9 : vector<1x256xf32> to vector<64x256xf32>
    %12 = arith.mulf %10, %11 : vector<64x256xf32>
    %13 = arith.addf %7, %12 : vector<64x256xf32>
    %14 = vector.extract_strided_slice %2 {offsets = [0, 2], sizes = [64, 1], strides = [1, 1]} : vector<64x3xf32> to vector<64x1xf32>
    %15 = vector.extract_strided_slice %1 {offsets = [2, 0], sizes = [1, 256], strides = [1, 1]} : vector<3x256xf32> to vector<1x256xf32>
    %16 = vector.broadcast %14 : vector<64x1xf32> to vector<64x256xf32>
    %17 = vector.broadcast %15 : vector<1x256xf32> to vector<64x256xf32>
    %18 = arith.mulf %16, %17 : vector<64x256xf32>
    %19 = arith.addf %13, %18 : vector<64x256xf32>
    %c0_4 = arith.constant 0 : index
    %c0_5 = arith.constant 0 : index
    %20 = vector.load %arg4[%c0_4, %c0_5] : memref<64x1xf32, #tpu.memory_space<vmem>>, vector<64x1xf32>
    %21 = vector.broadcast %20 : vector<64x1xf32> to vector<64x256xf32>
    %22 = arith.addf %19, %21 : vector<64x256xf32>
    %cst = arith.constant 0.000000e+00 : f32
    %23 = vector.broadcast %cst : f32 to vector<64x256xf32>
    %24 = arith.maximumf %22, %23 : vector<64x256xf32>
    %c0_6 = arith.constant 0 : index
    %c0_7 = arith.constant 0 : index
    %25 = vector.load %arg5[%c0_6, %c0_7] : memref<64x64xf32, #tpu.memory_space<vmem>>, vector<64x64xf32>
    %cst_8 = arith.constant dense<0.000000e+00> : vector<64x256xf32>
    %26 = tpu.matmul %25, %24, %cst_8 {dimension_numbers = #tpu.dot_dimension_numbers<[1], [0], [0], [1], [0, 0, 1, 1], [], []>} : vector<64x64xf32>, vector<64x256xf32>, vector<64x256xf32> -> vector<64x256xf32>
    %c0_9 = arith.constant 0 : index
    %c0_10 = arith.constant 0 : index
    %27 = vector.load %arg6[%c0_9, %c0_10] : memref<64x1xf32, #tpu.memory_space<vmem>>, vector<64x1xf32>
    %28 = vector.broadcast %27 : vector<64x1xf32> to vector<64x256xf32>
    %29 = arith.addf %26, %28 : vector<64x256xf32>
    %cst_11 = arith.constant 0.000000e+00 : f32
    %30 = vector.broadcast %cst_11 : f32 to vector<64x256xf32>
    %31 = arith.maximumf %29, %30 : vector<64x256xf32>
    %c0_12 = arith.constant 0 : index
    %c0_13 = arith.constant 0 : index
    %32 = vector.load %arg7[%c0_12, %c0_13] : memref<64x64xf32, #tpu.memory_space<vmem>>, vector<64x64xf32>
    %cst_14 = arith.constant dense<0.000000e+00> : vector<64x256xf32>
    %33 = tpu.matmul %32, %31, %cst_14 {dimension_numbers = #tpu.dot_dimension_numbers<[1], [0], [0], [1], [0, 0, 1, 1], [], []>} : vector<64x64xf32>, vector<64x256xf32>, vector<64x256xf32> -> vector<64x256xf32>
    %c0_15 = arith.constant 0 : index
    %c0_16 = arith.constant 0 : index
    %34 = vector.load %arg8[%c0_15, %c0_16] : memref<64x1xf32, #tpu.memory_space<vmem>>, vector<64x1xf32>
    %35 = vector.broadcast %34 : vector<64x1xf32> to vector<64x256xf32>
    %36 = arith.addf %33, %35 : vector<64x256xf32>
    %cst_17 = arith.constant 0.000000e+00 : f32
    %37 = vector.broadcast %cst_17 : f32 to vector<64x256xf32>
    %38 = arith.maximumf %36, %37 : vector<64x256xf32>
    %c0_18 = arith.constant 0 : index
    %c0_19 = arith.constant 0 : index
    %39 = vector.load %arg9[%c0_18, %c0_19] : memref<128x64xf32, #tpu.memory_space<vmem>>, vector<128x64xf32>
    %cst_20 = arith.constant dense<0.000000e+00> : vector<128x256xf32>
    %40 = tpu.matmul %39, %38, %cst_20 {dimension_numbers = #tpu.dot_dimension_numbers<[1], [0], [0], [1], [0, 0, 1, 1], [], []>} : vector<128x64xf32>, vector<64x256xf32>, vector<128x256xf32> -> vector<128x256xf32>
    %c0_21 = arith.constant 0 : index
    %c0_22 = arith.constant 0 : index
    %41 = vector.load %arg10[%c0_21, %c0_22] : memref<128x1xf32, #tpu.memory_space<vmem>>, vector<128x1xf32>
    %42 = vector.broadcast %41 : vector<128x1xf32> to vector<128x256xf32>
    %43 = arith.addf %40, %42 : vector<128x256xf32>
    %cst_23 = arith.constant 0.000000e+00 : f32
    %44 = vector.broadcast %cst_23 : f32 to vector<128x256xf32>
    %45 = arith.maximumf %43, %44 : vector<128x256xf32>
    %c0_24 = arith.constant 0 : index
    %c1024 = arith.constant 1024 : index
    %c0_25 = arith.constant 0 : index
    %46 = vector.load %arg13[%c0_24, %c1024, %c0_25] : memref<1x1088x256xf32, #tpu.memory_space<vmem>>, vector<1x64x256xf32>
    %47 = vector.shape_cast %46 : vector<1x64x256xf32> to vector<64x256xf32>
    %48 = vector.shape_cast %38 : vector<64x256xf32> to vector<1x64x256xf32>
    tpu.vector_store %arg13[%c0_24, %c1024, %c0_25], %48 {strides = array<i32>} : memref<1x1088x256xf32, #tpu.memory_space<vmem>>, vector<1x64x256xf32>,
    %c0_26 = arith.constant 0 : index
    %c0_27 = arith.constant 0 : index
    %49 = vector.load %arg11[%c0_26, %c0_27] : memref<1024x128xf32, #tpu.memory_space<vmem>>, vector<256x128xf32>
    %cst_28 = arith.constant dense<0.000000e+00> : vector<256x256xf32>
    %50 = tpu.matmul %49, %45, %cst_28 {dimension_numbers = #tpu.dot_dimension_numbers<[1], [0], [0], [1], [0, 0, 1, 1], [], []>} : vector<256x128xf32>, vector<128x256xf32>, vector<256x256xf32> -> vector<256x256xf32>
    %c0_29 = arith.constant 0 : index
    %c0_30 = arith.constant 0 : index
    %51 = vector.load %arg12[%c0_29, %c0_30] : memref<1024x1xf32, #tpu.memory_space<vmem>>, vector<256x1xf32>
    %52 = vector.broadcast %51 : vector<256x1xf32> to vector<256x256xf32>
    %53 = arith.addf %50, %52 : vector<256x256xf32>
    %cst_31 = arith.constant 0.000000e+00 : f32
    %54 = vector.broadcast %cst_31 : f32 to vector<256x256xf32>
    %55 = arith.maximumf %53, %54 : vector<256x256xf32>
    %c0_32 = arith.constant 0 : index
    %c0_33 = arith.constant 0 : index
    %c0_34 = arith.constant 0 : index
    %56 = vector.load %arg13[%c0_32, %c0_33, %c0_34] : memref<1x1088x256xf32, #tpu.memory_space<vmem>>, vector<1x256x256xf32>
    %57 = vector.shape_cast %56 : vector<1x256x256xf32> to vector<256x256xf32>
    %58 = vector.shape_cast %55 : vector<256x256xf32> to vector<1x256x256xf32>
    tpu.vector_store %arg13[%c0_32, %c0_33, %c0_34], %58 {strides = array<i32>} : memref<1x1088x256xf32, #tpu.memory_space<vmem>>, vector<1x256x256xf32>,
    %c256 = arith.constant 256 : index
    %c0_35 = arith.constant 0 : index
    %59 = vector.load %arg11[%c256, %c0_35] : memref<1024x128xf32, #tpu.memory_space<vmem>>, vector<256x128xf32>
    %cst_36 = arith.constant dense<0.000000e+00> : vector<256x256xf32>
    %60 = tpu.matmul %59, %45, %cst_36 {dimension_numbers = #tpu.dot_dimension_numbers<[1], [0], [0], [1], [0, 0, 1, 1], [], []>} : vector<256x128xf32>, vector<128x256xf32>, vector<256x256xf32> -> vector<256x256xf32>
    %c256_37 = arith.constant 256 : index
    %c0_38 = arith.constant 0 : index
    %61 = vector.load %arg12[%c256_37, %c0_38] : memref<1024x1xf32, #tpu.memory_space<vmem>>, vector<256x1xf32>
    %62 = vector.broadcast %61 : vector<256x1xf32> to vector<256x256xf32>
    %63 = arith.addf %60, %62 : vector<256x256xf32>
    %cst_39 = arith.constant 0.000000e+00 : f32
    %64 = vector.broadcast %cst_39 : f32 to vector<256x256xf32>
    %65 = arith.maximumf %63, %64 : vector<256x256xf32>
    %c0_40 = arith.constant 0 : index
    %c256_41 = arith.constant 256 : index
    %c0_42 = arith.constant 0 : index
    %66 = vector.load %arg13[%c0_40, %c256_41, %c0_42] : memref<1x1088x256xf32, #tpu.memory_space<vmem>>, vector<1x256x256xf32>
    %67 = vector.shape_cast %66 : vector<1x256x256xf32> to vector<256x256xf32>
    %68 = vector.shape_cast %65 : vector<256x256xf32> to vector<1x256x256xf32>
    tpu.vector_store %arg13[%c0_40, %c256_41, %c0_42], %68 {strides = array<i32>} : memref<1x1088x256xf32, #tpu.memory_space<vmem>>, vector<1x256x256xf32>,
    %c512 = arith.constant 512 : index
    %c0_43 = arith.constant 0 : index
    %69 = vector.load %arg11[%c512, %c0_43] : memref<1024x128xf32, #tpu.memory_space<vmem>>, vector<256x128xf32>
    %cst_44 = arith.constant dense<0.000000e+00> : vector<256x256xf32>
    %70 = tpu.matmul %69, %45, %cst_44 {dimension_numbers = #tpu.dot_dimension_numbers<[1], [0], [0], [1], [0, 0, 1, 1], [], []>} : vector<256x128xf32>, vector<128x256xf32>, vector<256x256xf32> -> vector<256x256xf32>
    %c512_45 = arith.constant 512 : index
    %c0_46 = arith.constant 0 : index
    %71 = vector.load %arg12[%c512_45, %c0_46] : memref<1024x1xf32, #tpu.memory_space<vmem>>, vector<256x1xf32>
    %72 = vector.broadcast %71 : vector<256x1xf32> to vector<256x256xf32>
    %73 = arith.addf %70, %72 : vector<256x256xf32>
    %cst_47 = arith.constant 0.000000e+00 : f32
    %74 = vector.broadcast %cst_47 : f32 to vector<256x256xf32>
    %75 = arith.maximumf %73, %74 : vector<256x256xf32>
    %c0_48 = arith.constant 0 : index
    %c512_49 = arith.constant 512 : index
    %c0_50 = arith.constant 0 : index
    %76 = vector.load %arg13[%c0_48, %c512_49, %c0_50] : memref<1x1088x256xf32, #tpu.memory_space<vmem>>, vector<1x256x256xf32>
    %77 = vector.shape_cast %76 : vector<1x256x256xf32> to vector<256x256xf32>
    %78 = vector.shape_cast %75 : vector<256x256xf32> to vector<1x256x256xf32>
    tpu.vector_store %arg13[%c0_48, %c512_49, %c0_50], %78 {strides = array<i32>} : memref<1x1088x256xf32, #tpu.memory_space<vmem>>, vector<1x256x256xf32>,
    %c768 = arith.constant 768 : index
    %c0_51 = arith.constant 0 : index
    %79 = vector.load %arg11[%c768, %c0_51] : memref<1024x128xf32, #tpu.memory_space<vmem>>, vector<256x128xf32>
    %cst_52 = arith.constant dense<0.000000e+00> : vector<256x256xf32>
    %80 = tpu.matmul %79, %45, %cst_52 {dimension_numbers = #tpu.dot_dimension_numbers<[1], [0], [0], [1], [0, 0, 1, 1], [], []>} : vector<256x128xf32>, vector<128x256xf32>, vector<256x256xf32> -> vector<256x256xf32>
    %c768_53 = arith.constant 768 : index
    %c0_54 = arith.constant 0 : index
    %81 = vector.load %arg12[%c768_53, %c0_54] : memref<1024x1xf32, #tpu.memory_space<vmem>>, vector<256x1xf32>
    %82 = vector.broadcast %81 : vector<256x1xf32> to vector<256x256xf32>
    %83 = arith.addf %80, %82 : vector<256x256xf32>
    %cst_55 = arith.constant 0.000000e+00 : f32
    %84 = vector.broadcast %cst_55 : f32 to vector<256x256xf32>
    %85 = arith.maximumf %83, %84 : vector<256x256xf32>
    %c0_56 = arith.constant 0 : index
    %c768_57 = arith.constant 768 : index
    %c0_58 = arith.constant 0 : index
    %86 = vector.load %arg13[%c0_56, %c768_57, %c0_58] : memref<1x1088x256xf32, #tpu.memory_space<vmem>>, vector<1x256x256xf32>
    %87 = vector.shape_cast %86 : vector<1x256x256xf32> to vector<256x256xf32>
    %88 = vector.shape_cast %85 : vector<256x256xf32> to vector<1x256x256xf32>
    tpu.vector_store %arg13[%c0_56, %c768_57, %c0_58], %88 {strides = array<i32>} : memref<1x1088x256xf32, #tpu.memory_space<vmem>>, vector<1x256x256xf32>,
    return
  }
  func.func @transform_0(%arg0: i32, %arg1: i32) -> (i32, i32, i32) {
    %c0_i32 = arith.constant 0 : i32
    %c0_i32_0 = arith.constant 0 : i32
    return %arg0, %c0_i32, %arg1 : i32, i32, i32
  }
  func.func @transform_1(%arg0: i32, %arg1: i32) -> (i32, i32) {
    %c0_i32 = arith.constant 0 : i32
    %c0_i32_0 = arith.constant 0 : i32
    %c0_i32_1 = arith.constant 0 : i32
    return %c0_i32, %c0_i32_0 : i32, i32
  }
  func.func @transform_2(%arg0: i32, %arg1: i32) -> (i32, i32) {
    %c0_i32 = arith.constant 0 : i32
    %c0_i32_0 = arith.constant 0 : i32
    %c0_i32_1 = arith.constant 0 : i32
    return %c0_i32, %c0_i32_0 : i32, i32
  }
  func.func @transform_3(%arg0: i32, %arg1: i32) -> (i32, i32) {
    %c0_i32 = arith.constant 0 : i32
    %c0_i32_0 = arith.constant 0 : i32
    %c0_i32_1 = arith.constant 0 : i32
    return %c0_i32, %c0_i32_0 : i32, i32
  }
  func.func @transform_4(%arg0: i32, %arg1: i32) -> (i32, i32) {
    %c0_i32 = arith.constant 0 : i32
    %c0_i32_0 = arith.constant 0 : i32
    %c0_i32_1 = arith.constant 0 : i32
    return %c0_i32, %c0_i32_0 : i32, i32
  }
  func.func @transform_5(%arg0: i32, %arg1: i32) -> (i32, i32) {
    %c0_i32 = arith.constant 0 : i32
    %c0_i32_0 = arith.constant 0 : i32
    %c0_i32_1 = arith.constant 0 : i32
    return %c0_i32, %c0_i32_0 : i32, i32
  }
  func.func @transform_6(%arg0: i32, %arg1: i32) -> (i32, i32) {
    %c0_i32 = arith.constant 0 : i32
    %c0_i32_0 = arith.constant 0 : i32
    %c0_i32_1 = arith.constant 0 : i32
    return %c0_i32, %c0_i32_0 : i32, i32
  }
  func.func @transform_7(%arg0: i32, %arg1: i32) -> (i32, i32) {
    %c0_i32 = arith.constant 0 : i32
    %c0_i32_0 = arith.constant 0 : i32
    %c0_i32_1 = arith.constant 0 : i32
    return %c0_i32, %c0_i32_0 : i32, i32
  }
  func.func @transform_8(%arg0: i32, %arg1: i32) -> (i32, i32) {
    %c0_i32 = arith.constant 0 : i32
    %c0_i32_0 = arith.constant 0 : i32
    %c0_i32_1 = arith.constant 0 : i32
    return %c0_i32, %c0_i32_0 : i32, i32
  }
  func.func @transform_9(%arg0: i32, %arg1: i32) -> (i32, i32) {
    %c0_i32 = arith.constant 0 : i32
    %c0_i32_0 = arith.constant 0 : i32
    %c0_i32_1 = arith.constant 0 : i32
    return %c0_i32, %c0_i32_0 : i32, i32
  }
  func.func @transform_10(%arg0: i32, %arg1: i32) -> (i32, i32) {
    %c0_i32 = arith.constant 0 : i32
    %c0_i32_0 = arith.constant 0 : i32
    %c0_i32_1 = arith.constant 0 : i32
    return %c0_i32, %c0_i32_0 : i32, i32
  }
  func.func @transform_11(%arg0: i32, %arg1: i32) -> (i32, i32, i32) {
    %c0_i32 = arith.constant 0 : i32
    %c0_i32_0 = arith.constant 0 : i32
    return %arg0, %c0_i32, %arg1 : i32, i32, i32
  }
}

</mosaic_0001>

<llo_original>
// kernel: tpu_custom_call.1
$region0: #{tpu_custom_call.1}
  #allocation0 [shape = 'u32[]', space=smem, size = 0x4, offset = 0x4, fixed_abs, tag = 'smem constant byte address 0x4 - core index']
  #allocation1 [shape = 'u32[144,128]{1,0:T(1,128)}', space=vmem, size = 0x12000, scoped, tag = 'internal scratch']
  %s0 = inlined_call_operand.vmem [shape: f32[2,3,200], index: 0, kind: input, shape index: {}]
  %s1 = inlined_call_operand.vmem [shape: f32[64,3], index: 1, kind: input, shape index: {}]
  %s2 = inlined_call_operand.vmem [shape: f32[64,1], index: 2, kind: input, shape index: {}]
  %s3 = inlined_call_operand.hbm [shape: f32[64,64], index: 3, kind: input, shape index: {}]
  %s4 = inlined_call_operand.vmem [shape: f32[64,1], index: 4, kind: input, shape index: {}]
  %s5 = inlined_call_operand.hbm [shape: f32[64,64], index: 5, kind: input, shape index: {}]
  %s6 = inlined_call_operand.vmem [shape: f32[64,1], index: 6, kind: input, shape index: {}]
  %s7 = inlined_call_operand.vmem [shape: f32[128,64], index: 7, kind: input, shape index: {}]
  %s8 = inlined_call_operand.vmem [shape: f32[128,1], index: 8, kind: input, shape index: {}]
  %s9 = inlined_call_operand.hbm [shape: f32[1024,128], index: 9, kind: input, shape index: {}]
  %s10 = inlined_call_operand.vmem [shape: f32[1024,1], index: 10, kind: input, shape index: {}]
  %s11 = inlined_call_operand.vmem [shape: f32[2,1088,200], index: 11, kind: output, shape index: {}]
  %s12 = sld [smem:[#allocation0]]
  $region89: #{tpu_custom_call.1} parent=0
    _
  %s14 = ssub.s32 1, %s12
  %s15 = scalar_select 0, %s14, %s12
  $region1: #{tpu_custom_call.1} parent=0
    #allocation2 [shape = 'u8[32768]{0}', space=vmem, size = 0x8000, scoped, tag = 'input window, operand 3, single buffered']
    #allocation3 [shape = 's32[2]{0}', space=sflag, size = 0x8, scoped, tag = 'scoped memory for tpu_custom_call.1']
    #allocation4 [shape = 'u8[32768]{0}', space=vmem, size = 0x8000, scoped, tag = 'input window, operand 5, single buffered']
    #allocation5 [shape = 's32[1]{0}', space=sflag, size = 0x4, scoped, tag = 'scoped memory for tpu_custom_call.1']
    #allocation6 [shape = 'u8[524288]{0}', space=vmem, size = 0x80000, scoped, tag = 'input window, operand 9, single buffered']
    %16 = vsyncpa [#allocation3], 0
    %17 = vsyncpa [#allocation5], 0
    loop: start=0, step=1, limit=4
    $region2: #{tpu_custom_call.1} parent=1 // loop_pre_header
      _
    $region3: #{tpu_custom_call.1} parent=1 // loop_header
      %s19 = sphi 0, %s23
      %p20 = scmp.ge.s32.totalorder %s19, 4
      %s26 = sphi 0, %s38
      %s27 = sphi 0, %s34
      %s28 = sphi 0, %s26
      %s29 = sphi 0, %s27
      %s30 = sphi 0, %s28
      %s31 = sphi 0, %s29
      %s43 = sphi 0, %s45
      %s46 = sphi 0, %s43
      %s47 = sphi 0, %s46
      %s63 = sphi 0, %s47
      %s67 = sphi 0, %s67
      %s69 = sphi 0, %s67
      %s70 = sphi 0, %s69
      %s84 = sphi 0, %s70
      %s88 = sphi 0, %s88
      %s90 = sphi 0, %s88
      %s91 = sphi 0, %s90
      %s105 = sphi 0, %s91
      %s109 = sphi 0, %s109
      %s111 = sphi 0, %s109
      %s112 = sphi 0, %s111
      %s126 = sphi 0, %s112
      %s130 = sphi 0, %s130
      %s132 = sphi 0, %s130
      %s133 = sphi 0, %s132
      %s147 = sphi 0, %s133
      %s151 = sphi 0, %s151
      %s153 = sphi 0, %s151
      %s154 = sphi 0, %s153
      %s168 = sphi 0, %s154
      %s172 = sphi 0, %s172
      %s174 = sphi 0, %s172
      %s175 = sphi 0, %s174
      %s189 = sphi 0, %s175
      %s193 = sphi 0, %s193
      %s195 = sphi 0, %s193
      %s196 = sphi 0, %s195
      %s210 = sphi 0, %s196
      %s214 = sphi 0, %s214
      %s216 = sphi 0, %s214
      %s217 = sphi 0, %s216
      %s231 = sphi 0, %s217
      %s235 = sphi 0, %s235
      %s237 = sphi 0, %s235
      %s238 = sphi 0, %s237
      %s252 = sphi 0, %s238
      %s256 = sphi 0, %s256
      %s258 = sphi 0, %s256
      %s259 = sphi 0, %s258
      %s273 = sphi 0, %s259
      %s281 = sphi 0, %s283
      %s284 = sphi 0, %s281
      %s285 = sphi 0, %s284
      %s301 = sphi 0, %s285
    $region4: #{tpu_custom_call.1} parent=1 // loop_header_branch
      %22 = sbr.rel (%p20) target = $region8
    $region5: #{tpu_custom_call.1} parent=1 // loop_body
      %s24 = ssub.s32 %s19, 1
      %s25 = ssub.s32 %s19, 2
      %s32 = sadd.s32 1, %s27
      %p33 = scmp.ge.s32.totalorder %s32, 1
      %s34 = scalar_select %p33, 0, %s32
      %s35 = sadd.s32 1, %s26
      %s36 = scalar_select %p33, %s35, %s26
      %p37 = scmp.ge.s32.totalorder %s36, 2
      %s38 = scalar_select %p37, 0, %s36
      %s39 = ssub.s32 %s26, %s38
      %s40 = ssub.s32 %s27, %s34
      %s41 = sor.u32 %s39, %s40
      %p42 = scmp.eq.s32.totalorder %s41, 0
      %s44 = sadd.s32 %s43, 1
      %s45 = scalar_select %p42, %s43, %s44
      %p48 = pneg %p42
      %p49 = scmp.eq.s32.totalorder %s19, 1
      %p50 = por %p48, %p49
      %p51 = scmp.ne.s32.totalorder %s43, %s46
      %p52 = scmp.eq.s32.totalorder %s19, 0
      %p53 = por %p51, %p52
      %p54 = scmp.ne.s32.totalorder %s43, %s46
      %p55 = scmp.eq.s32.totalorder %s24, 1
      %p56 = por %p54, %p55
      %p57 = scmp.ne.s32.totalorder %s46, %s47
      %p58 = scmp.eq.s32.totalorder %s24, 0
      %p59 = por %p57, %p58
      %p60 = scmp.ne.s32.totalorder %s46, %s47
      %p61 = scmp.eq.s32.totalorder %s25, 1
      %p62 = por %p60, %p61
      %p64 = scmp.ne.s32.totalorder %s47, %s63
      %p65 = scmp.eq.s32.totalorder %s25, 0
      %p66 = por %p64, %p65
      %s68 = sadd.s32 %s67, 1
      %p71 = scmp.eq.s32.totalorder %s19, 1
      %p72 = scmp.ne.s32.totalorder %s67, %s69
      %p73 = scmp.eq.s32.totalorder %s19, 0
      %p74 = por %p72, %p73
      %p75 = scmp.ne.s32.totalorder %s67, %s69
      %p76 = scmp.eq.s32.totalorder %s24, 1
      %p77 = por %p75, %p76
      %p78 = scmp.ne.s32.totalorder %s69, %s70
      %p79 = scmp.eq.s32.totalorder %s24, 0
      %p80 = por %p78, %p79
      %p81 = scmp.ne.s32.totalorder %s69, %s70
      %p82 = scmp.eq.s32.totalorder %s25, 1
      %p83 = por %p81, %p82
      %p85 = scmp.ne.s32.totalorder %s70, %s84
      %p86 = scmp.eq.s32.totalorder %s25, 0
      %p87 = por %p85, %p86
      %s89 = sadd.s32 %s88, 1
      %p92 = scmp.eq.s32.totalorder %s19, 1
      %p93 = scmp.ne.s32.totalorder %s88, %s90
      %p94 = scmp.eq.s32.totalorder %s19, 0
      %p95 = por %p93, %p94
      %p96 = scmp.ne.s32.totalorder %s88, %s90
      %p97 = scmp.eq.s32.totalorder %s24, 1
      %p98 = por %p96, %p97
      %p99 = scmp.ne.s32.totalorder %s90, %s91
      %p100 = scmp.eq.s32.totalorder %s24, 0
      %p101 = por %p99, %p100
      %p102 = scmp.ne.s32.totalorder %s90, %s91
      %p103 = scmp.eq.s32.totalorder %s25, 1
      %p104 = por %p102, %p103
      %p106 = scmp.ne.s32.totalorder %s91, %s105
      %p107 = scmp.eq.s32.totalorder %s25, 0
      %p108 = por %p106, %p107
      %s110 = sadd.s32 %s109, 1
      %p113 = scmp.eq.s32.totalorder %s19, 1
      %p114 = scmp.ne.s32.totalorder %s109, %s111
      %p115 = scmp.eq.s32.totalorder %s19, 0
      %p116 = por %p114, %p115
      %p117 = scmp.ne.s32.totalorder %s109, %s111
      %p118 = scmp.eq.s32.totalorder %s24, 1
      %p119 = por %p117, %p118
      %p120 = scmp.ne.s32.totalorder %s111, %s112
      %p121 = scmp.eq.s32.totalorder %s24, 0
      %p122 = por %p120, %p121
      %p123 = scmp.ne.s32.totalorder %s111, %s112
      %p124 = scmp.eq.s32.totalorder %s25, 1
      %p125 = por %p123, %p124
      %p127 = scmp.ne.s32.totalorder %s112, %s126
      %p128 = scmp.eq.s32.totalorder %s25, 0
      %p129 = por %p127, %p128
      %s131 = sadd.s32 %s130, 1
      %p134 = scmp.eq.s32.totalorder %s19, 1
      %p135 = scmp.ne.s32.totalorder %s130, %s132
      %p136 = scmp.eq.s32.totalorder %s19, 0
      %p137 = por %p135, %p136
      %p138 = scmp.ne.s32.totalorder %s130, %s132
      %p139 = scmp.eq.s32.totalorder %s24, 1
      %p140 = por %p138, %p139
      %p141 = scmp.ne.s32.totalorder %s132, %s133
      %p142 = scmp.eq.s32.totalorder %s24, 0
      %p143 = por %p141, %p142
      %p144 = scmp.ne.s32.totalorder %s132, %s133
      %p145 = scmp.eq.s32.totalorder %s25, 1
      %p146 = por %p144, %p145
      %p148 = scmp.ne.s32.totalorder %s133, %s147
      %p149 = scmp.eq.s32.totalorder %s25, 0
      %p150 = por %p148, %p149
      %s152 = sadd.s32 %s151, 1
      %p155 = scmp.eq.s32.totalorder %s19, 1
      %p156 = scmp.ne.s32.totalorder %s151, %s153
      %p157 = scmp.eq.s32.totalorder %s19, 0
      %p158 = por %p156, %p157
      %p159 = scmp.ne.s32.totalorder %s151, %s153
      %p160 = scmp.eq.s32.totalorder %s24, 1
      %p161 = por %p159, %p160
      %p162 = scmp.ne.s32.totalorder %s153, %s154
      %p163 = scmp.eq.s32.totalorder %s24, 0
      %p164 = por %p162, %p163
      %p165 = scmp.ne.s32.totalorder %s153, %s154
      %p166 = scmp.eq.s32.totalorder %s25, 1
      %p167 = por %p165, %p166
      %p169 = scmp.ne.s32.totalorder %s154, %s168
      %p170 = scmp.eq.s32.totalorder %s25, 0
      %p171 = por %p169, %p170
      %s173 = sadd.s32 %s172, 1
      %p176 = scmp.eq.s32.totalorder %s19, 1
      %p177 = scmp.ne.s32.totalorder %s172, %s174
      %p178 = scmp.eq.s32.totalorder %s19, 0
      %p179 = por %p177, %p178
      %p180 = scmp.ne.s32.totalorder %s172, %s174
      %p181 = scmp.eq.s32.totalorder %s24, 1
      %p182 = por %p180, %p181
      %p183 = scmp.ne.s32.totalorder %s174, %s175
      %p184 = scmp.eq.s32.totalorder %s24, 0
      %p185 = por %p183, %p184
      %p186 = scmp.ne.s32.totalorder %s174, %s175
      %p187 = scmp.eq.s32.totalorder %s25, 1
      %p188 = por %p186, %p187
      %p190 = scmp.ne.s32.totalorder %s175, %s189
      %p191 = scmp.eq.s32.totalorder %s25, 0
      %p192 = por %p190, %p191
      %s194 = sadd.s32 %s193, 1
      %p197 = scmp.eq.s32.totalorder %s19, 1
      %p198 = scmp.ne.s32.totalorder %s193, %s195
      %p199 = scmp.eq.s32.totalorder %s19, 0
      %p200 = por %p198, %p199
      %p201 = scmp.ne.s32.totalorder %s193, %s195
      %p202 = scmp.eq.s32.totalorder %s24, 1
      %p203 = por %p201, %p202
      %p204 = scmp.ne.s32.totalorder %s195, %s196
      %p205 = scmp.eq.s32.totalorder %s24, 0
      %p206 = por %p204, %p205
      %p207 = scmp.ne.s32.totalorder %s195, %s196
      %p208 = scmp.eq.s32.totalorder %s25, 1
      %p209 = por %p207, %p208
      %p211 = scmp.ne.s32.totalorder %s196, %s210
      %p212 = scmp.eq.s32.totalorder %s25, 0
      %p213 = por %p211, %p212
      %s215 = sadd.s32 %s214, 1
      %p218 = scmp.eq.s32.totalorder %s19, 1
      %p219 = scmp.ne.s32.totalorder %s214, %s216
      %p220 = scmp.eq.s32.totalorder %s19, 0
      %p221 = por %p219, %p220
      %p222 = scmp.ne.s32.totalorder %s214, %s216
      %p223 = scmp.eq.s32.totalorder %s24, 1
      %p224 = por %p222, %p223
      %p225 = scmp.ne.s32.totalorder %s216, %s217
      %p226 = scmp.eq.s32.totalorder %s24, 0
      %p227 = por %p225, %p226
      %p228 = scmp.ne.s32.totalorder %s216, %s217
      %p229 = scmp.eq.s32.totalorder %s25, 1
      %p230 = por %p228, %p229
      %p232 = scmp.ne.s32.totalorder %s217, %s231
      %p233 = scmp.eq.s32.totalorder %s25, 0
      %p234 = por %p232, %p233
      %s236 = sadd.s32 %s235, 1
      %p239 = scmp.eq.s32.totalorder %s19, 1
      %p240 = scmp.ne.s32.totalorder %s235, %s237
      %p241 = scmp.eq.s32.totalorder %s19, 0
      %p242 = por %p240, %p241
      %p243 = scmp.ne.s32.totalorder %s235, %s237
      %p244 = scmp.eq.s32.totalorder %s24, 1
      %p245 = por %p243, %p244
      %p246 = scmp.ne.s32.totalorder %s237, %s238
      %p247 = scmp.eq.s32.totalorder %s24, 0
      %p248 = por %p246, %p247
      %p249 = scmp.ne.s32.totalorder %s237, %s238
      %p250 = scmp.eq.s32.totalorder %s25, 1
      %p251 = por %p249, %p250
      %p253 = scmp.ne.s32.totalorder %s238, %s252
      %p254 = scmp.eq.s32.totalorder %s25, 0
      %p255 = por %p253, %p254
      %s257 = sadd.s32 %s256, 1
      %p260 = scmp.eq.s32.totalorder %s19, 1
      %p261 = scmp.ne.s32.totalorder %s256, %s258
      %p262 = scmp.eq.s32.totalorder %s19, 0
      %p263 = por %p261, %p262
      %p264 = scmp.ne.s32.totalorder %s256, %s258
      %p265 = scmp.eq.s32.totalorder %s24, 1
      %p266 = por %p264, %p265
      %p267 = scmp.ne.s32.totalorder %s258, %s259
      %p268 = scmp.eq.s32.totalorder %s24, 0
      %p269 = por %p267, %p268
      %p270 = scmp.ne.s32.totalorder %s258, %s259
      %p271 = scmp.eq.s32.totalorder %s25, 1
      %p272 = por %p270, %p271
      %p274 = scmp.ne.s32.totalorder %s259, %s273
      %p275 = scmp.eq.s32.totalorder %s25, 0
      %p276 = por %p274, %p275
      %s277 = ssub.s32 %s26, %s38
      %s278 = ssub.s32 %s27, %s34
      %s279 = sor.u32 %s277, %s278
      %p280 = scmp.eq.s32.totalorder %s279, 0
      %s282 = sadd.s32 %s281, 1
      %s283 = scalar_select %p280, %s281, %s282
      %p286 = pneg %p280
      %p287 = scmp.eq.s32.totalorder %s19, 1
      %p288 = por %p286, %p287
      %p289 = scmp.ne.s32.totalorder %s281, %s284
      %p290 = scmp.eq.s32.totalorder %s19, 0
      %p291 = por %p289, %p290
      %p292 = scmp.ne.s32.totalorder %s281, %s284
      %p293 = scmp.eq.s32.totalorder %s24, 1
      %p294 = por %p292, %p293
      %p295 = scmp.ne.s32.totalorder %s284, %s285
      %p296 = scmp.eq.s32.totalorder %s24, 0
      %p297 = por %p295, %p296
      %p298 = scmp.ne.s32.totalorder %s284, %s285
      %p299 = scmp.eq.s32.totalorder %s25, 1
      %p300 = por %p298, %p299
      %p302 = scmp.ne.s32.totalorder %s285, %s301
      %p303 = scmp.eq.s32.totalorder %s25, 0
      %p304 = por %p302, %p303
      %p305 = scmp.le.s32.totalorder 1, %s19
      %p306 = scmp.lt.s32.totalorder %s19, 3
      %p307 = pnand %p305, %p306
      %p308 = pneg %p307
      // Predicated region
      $region9: #{tpu_custom_call.1} parent=5 // pred_check
        _
      $region10: #{tpu_custom_call.1} parent=5 // pred_check_branch
        %310 = sbr.rel (%p307) target = $region12
      $region11: #{tpu_custom_call.1} parent=5 // pred_region
        %s311 = ssub.s32 %s19, 1
        // Predicated region
        $region13: #{tpu_custom_call.1} parent=11 // pred_check
          %p312 = pneg %p80
        $region14: #{tpu_custom_call.1} parent=11 // pred_check_branch
          %314 = sbr.rel (%p312) target = $region16
        $region15: #{tpu_custom_call.1} parent=11 // pred_region
          _
        $region16: #{tpu_custom_call.1} parent=11 // pred_fallthru
          _
        // Predicated region
        $region17: #{tpu_custom_call.1} parent=11 // pred_check
          %p315 = pneg %p101
        $region18: #{tpu_custom_call.1} parent=11 // pred_check_branch
          %317 = sbr.rel (%p315) target = $region20
        $region19: #{tpu_custom_call.1} parent=11 // pred_region
          _
        $region20: #{tpu_custom_call.1} parent=11 // pred_fallthru
          _
        // Predicated region
        $region21: #{tpu_custom_call.1} parent=11 // pred_check
          %p318 = pneg %p122
        $region22: #{tpu_custom_call.1} parent=11 // pred_check_branch
          %320 = sbr.rel (%p318) target = $region24
        $region23: #{tpu_custom_call.1} parent=11 // pred_region
          %s322 = ssub.s32 1024, 1024
          %323 = vsyncadd [#allocation3], %s322
          %s324 = sshll.u32 [#allocation2], 4
          %s325 = int_to_ptr.vmem [resolvable:$true] %s324
          %330 = dma.hbm_to_vmem [thread:$0]  %s3, 1024, %s325, [#allocation3], 128, 128, 8
        $region24: #{tpu_custom_call.1} parent=11 // pred_fallthru
          _
        // Predicated region
        $region25: #{tpu_custom_call.1} parent=11 // pred_check
          %p331 = pneg %p143
        $region26: #{tpu_custom_call.1} parent=11 // pred_check_branch
          %333 = sbr.rel (%p331) target = $region28
        $region27: #{tpu_custom_call.1} parent=11 // pred_region
          _
        $region28: #{tpu_custom_call.1} parent=11 // pred_fallthru
          _
        // Predicated region
        $region29: #{tpu_custom_call.1} parent=11 // pred_check
          %p334 = pneg %p164
        $region30: #{tpu_custom_call.1} parent=11 // pred_check_branch
          %336 = sbr.rel (%p334) target = $region32
        $region31: #{tpu_custom_call.1} parent=11 // pred_region
          %s338 = ssub.s32 1024, 1024
          %339 = vsyncadd [#allocation5], %s338
          %s340 = sshll.u32 [#allocation4], 4
          %s341 = int_to_ptr.vmem [resolvable:$true] %s340
          %346 = dma.hbm_to_vmem [thread:$0]  %s5, 1024, %s341, [#allocation5], 128, 128, 8
        $region32: #{tpu_custom_call.1} parent=11 // pred_fallthru
          _
        // Predicated region
        $region33: #{tpu_custom_call.1} parent=11 // pred_check
          %p347 = pneg %p185
        $region34: #{tpu_custom_call.1} parent=11 // pred_check_branch
          %349 = sbr.rel (%p347) target = $region36
        $region35: #{tpu_custom_call.1} parent=11 // pred_region
          _
        $region36: #{tpu_custom_call.1} parent=11 // pred_fallthru
          _
        // Predicated region
        $region37: #{tpu_custom_call.1} parent=11 // pred_check
          %p350 = pneg %p206
        $region38: #{tpu_custom_call.1} parent=11 // pred_check_branch
          %352 = sbr.rel (%p350) target = $region40
        $region39: #{tpu_custom_call.1} parent=11 // pred_region
          _
        $region40: #{tpu_custom_call.1} parent=11 // pred_fallthru
          _
        // Predicated region
        $region41: #{tpu_custom_call.1} parent=11 // pred_check
          %p353 = pneg %p227
        $region42: #{tpu_custom_call.1} parent=11 // pred_check_branch
          %355 = sbr.rel (%p353) target = $region44
        $region43: #{tpu_custom_call.1} parent=11 // pred_region
          _
        $region44: #{tpu_custom_call.1} parent=11 // pred_fallthru
          _
        // Predicated region
        $region45: #{tpu_custom_call.1} parent=11 // pred_check
          %p356 = pneg %p248
        $region46: #{tpu_custom_call.1} parent=11 // pred_check_branch
          %358 = sbr.rel (%p356) target = $region48
        $region47: #{tpu_custom_call.1} parent=11 // pred_region
          %s360 = ssub.s32 16384, 16384
          %361 = vsyncadd [#allocation5], %s360
          %s362 = sshll.u32 [#allocation6], 4
          %s363 = int_to_ptr.vmem [resolvable:$true] %s362
          %368 = dma.hbm_to_vmem [thread:$0]  %s9, 16384, %s363, [#allocation5], 128, 128, 8
        $region48: #{tpu_custom_call.1} parent=11 // pred_fallthru
          _
        // Predicated region
        $region49: #{tpu_custom_call.1} parent=11 // pred_check
          %p369 = pneg %p269
        $region50: #{tpu_custom_call.1} parent=11 // pred_check_branch
          %371 = sbr.rel (%p369) target = $region52
        $region51: #{tpu_custom_call.1} parent=11 // pred_region
          _
        $region52: #{tpu_custom_call.1} parent=11 // pred_fallthru
          _
      $region12: #{tpu_custom_call.1} parent=5 // pred_fallthru
        _
      %p372 = scmp.lt.s32.totalorder %s19, 2
      // Predicated region
      $region53: #{tpu_custom_call.1} parent=5 // pred_check
        %p373 = pneg %p372
      $region54: #{tpu_custom_call.1} parent=5 // pred_check_branch
        %375 = sbr.rel (%p373) target = $region56
      $region55: #{tpu_custom_call.1} parent=5 // pred_region
        // Predicated region
        $region57: #{tpu_custom_call.1} parent=55 // pred_check
          %p376 = pneg %p53
        $region58: #{tpu_custom_call.1} parent=55 // pred_check_branch
          %378 = sbr.rel (%p376) target = $region60
        $region59: #{tpu_custom_call.1} parent=55 // pred_region
          %s379 = smul.u32 2, %s27
          %p380 = scmp.lt.s32.totalorder %s26, 1
          %s381 = scalar_select %p380, %s26, 1
          %p382 = scmp.lt.s32.totalorder %s379, 1
          %s383 = scalar_select %p382, %s379, 1
          %s384 = smul.addr %s381, 2
          %s385 = sadd.s32 %s383, %s384
          %s386 = smul.addr %s385, 4
          %s387 = scalar_lea.vmem %s0, %s386
          %s388 = smul.u32 2, %s27
        $region60: #{tpu_custom_call.1} parent=55 // pred_fallthru
          _
      $region56: #{tpu_custom_call.1} parent=5 // pred_fallthru
        _
      %p389 = scmp.le.s32.totalorder 1, %s19
      %p390 = scmp.lt.s32.totalorder %s19, 3
      %p391 = pnand %p389, %p390
      %p392 = pneg %p391
      // Predicated region
      $region61: #{tpu_custom_call.1} parent=5 // pred_check
        _
      $region62: #{tpu_custom_call.1} parent=5 // pred_check_branch
        %394 = sbr.rel (%p391) target = $region64
      $region63: #{tpu_custom_call.1} parent=5 // pred_region
        %s395 = ssub.s32 %s19, 1
        // Predicated region
        $region65: #{tpu_custom_call.1} parent=63 // pred_check
          %p396 = pneg %p122
        $region66: #{tpu_custom_call.1} parent=63 // pred_check_branch
          %398 = sbr.rel (%p396) target = $region68
        $region67: #{tpu_custom_call.1} parent=63 // pred_region
          %399 = dma.done [#allocation3], 1024
        $region68: #{tpu_custom_call.1} parent=63 // pred_fallthru
          _
        // Predicated region
        $region69: #{tpu_custom_call.1} parent=63 // pred_check
          %p400 = pneg %p164
        $region70: #{tpu_custom_call.1} parent=63 // pred_check_branch
          %402 = sbr.rel (%p400) target = $region72
        $region71: #{tpu_custom_call.1} parent=63 // pred_region
          %403 = dma.done [#allocation5], 1024
        $region72: #{tpu_custom_call.1} parent=63 // pred_fallthru
          _
        // Predicated region
        $region73: #{tpu_custom_call.1} parent=63 // pred_check
          %p404 = pneg %p248
        $region74: #{tpu_custom_call.1} parent=63 // pred_check_branch
          %406 = sbr.rel (%p404) target = $region76
        $region75: #{tpu_custom_call.1} parent=63 // pred_region
          %407 = dma.done [#allocation5], 16384
        $region76: #{tpu_custom_call.1} parent=63 // pred_fallthru
          _
        %s408 = smul.u32 2, %s29
        %p409 = scmp.lt.s32.totalorder %s28, 1
        %s410 = scalar_select %p409, %s28, 1
        %p411 = scmp.lt.s32.totalorder %s408, 1
        %s412 = scalar_select %p411, %s408, 1
        %s413 = smul.addr %s410, 2
        %s414 = sadd.s32 %s412, %s413
        %s415 = smul.addr %s414, 4
        %s416 = scalar_lea.vmem %s0, %s415
        %p417 = pneg %p59
        %p418 = pneg %p56
        %p419 = pneg %p80
        %p420 = pneg %p77
        %p421 = pneg %p101
        %p422 = pneg %p98
        %p423 = pneg %p122
        %p424 = pneg %p119
        %p425 = pneg %p143
        %p426 = pneg %p140
        %p427 = pneg %p164
        %p428 = pneg %p161
        %p429 = pneg %p185
        %p430 = pneg %p182
        %p431 = pneg %p206
        %p432 = pneg %p203
        %p433 = pneg %p227
        %p434 = pneg %p224
        %p435 = pneg %p248
        %p436 = pneg %p245
        %p437 = pneg %p269
        %p438 = pneg %p266
        %p439 = pneg %p297
        %p440 = pneg %p294
        %s441 = smul.u32 2, %s29
        %p442 = scmp.lt.s32.totalorder %s28, 1
        %s443 = scalar_select %p442, %s28, 1
        %p444 = scmp.lt.s32.totalorder %s441, 1
        %s445 = scalar_select %p444, %s441, 1
        %s446 = smul.addr %s443, 272
        %s447 = sadd.s32 %s445, %s446
        %s448 = smul.addr %s447, 8
        %s449 = scalar_lea.vmem %s11, %s448
        %s450 = smul.u32 2, %s29
        %p451 = scmp.lt.s32.totalorder %s28, 1
        %s452 = scalar_select %p451, %s28, 1
        %p453 = scmp.lt.s32.totalorder %s450, 1
        %s454 = scalar_select %p453, %s450, 1
        %s455 = smul.addr %s452, 2
        %s456 = sadd.s32 %s454, %s455
        %s457 = smul.addr %s456, 4
        %s458 = scalar_lea.vmem %s0, %s457
        %s459 = smul.u32 2, %s29
        %s460 = smul.u32 2, %s29
        %p461 = scmp.lt.s32.totalorder %s28, 1
        %s462 = scalar_select %p461, %s28, 1
        %p463 = scmp.lt.s32.totalorder %s460, 1
        %s464 = scalar_select %p463, %s460, 1
        %s465 = smul.addr %s462, 272
        %s466 = sadd.s32 %s464, %s465
        %s467 = smul.addr %s466, 8
        %s468 = scalar_lea.vmem %s11, %s467
        %s469 = smul.u32 2, %s29
        %v470 = vld [vmem:[%s458] sm:$0x77]
        %v471 = vld [vmem:[%s1] sm:$0xff]
        %v472 = vld [vmem:[%s1 + $0x8] sm:$0xff]
        %v473 = vld [vmem:[%s1 + $0x10] sm:$0xff]
        %v474 = vld [vmem:[%s1 + $0x18] sm:$0xff]
        %v475 = vld [vmem:[%s1 + $0x20] sm:$0xff]
        %v476 = vld [vmem:[%s1 + $0x28] sm:$0xff]
        %v477 = vld [vmem:[%s1 + $0x30] sm:$0xff]
        %v478 = vld [vmem:[%s1 + $0x38] sm:$0xff]
        %480 = vset.pattern.permute.xlu0 0
        %481 = vperm.xlu0 %480, %v471
        %v482 = vpop.permute.xlu0 %481
        %485 = vset.pattern.permute.xlu0 0
        %486 = vperm.xlu0 %485, %v472
        %v487 = vpop.permute.xlu0 %486
        %490 = vset.pattern.permute.xlu0 0
        %491 = vperm.xlu0 %490, %v473
        %v492 = vpop.permute.xlu0 %491
        %495 = vset.pattern.permute.xlu0 0
        %496 = vperm.xlu0 %495, %v474
        %v497 = vpop.permute.xlu0 %496
        %500 = vset.pattern.permute.xlu0 0
        %501 = vperm.xlu0 %500, %v475
        %v502 = vpop.permute.xlu0 %501
        %505 = vset.pattern.permute.xlu0 0
        %506 = vperm.xlu0 %505, %v476
        %v507 = vpop.permute.xlu0 %506
        %510 = vset.pattern.permute.xlu0 0
        %511 = vperm.xlu0 %510, %v477
        %v512 = vpop.permute.xlu0 %511
        %515 = vset.pattern.permute.xlu0 0
        %516 = vperm.xlu0 %515, %v478
        %v517 = vpop.permute.xlu0 %516
        %v520 = vlaneseq
        %v521 = vshrl.u32 %v520, 7
        %v522 = vsub.s32 0, %v521
        %v523 = vrot.slane %v470, %v522
        %v524 = vlaneseq
        %v525 = vshrl.u32 %v524, 7
        %v526 = vsub.s32 4, %v525
        %v527 = vrot.slane %v470, %v526
        %v530 = vlaneseq
        %v531 = vshrl.u32 %v530, 7
        %v532 = vsub.s32 0, %v531
        %v533 = vrot.slane %v523, %v532
        %v534 = vlaneseq
        %v535 = vshrl.u32 %v534, 7
        %v536 = vsub.s32 0, %v535
        %v537 = vrot.slane %v527, %v536
        %v538 = vmul.f32 %v482, %v533
        %v539 = vmul.f32 %v482, %v537
        %v540 = vmul.f32 %v487, %v533
        %v541 = vmul.f32 %v487, %v537
        %v542 = vmul.f32 %v492, %v533
        %v543 = vmul.f32 %v492, %v537
        %v544 = vmul.f32 %v497, %v533
        %v545 = vmul.f32 %v497, %v537
        %v546 = vmul.f32 %v502, %v533
        %v547 = vmul.f32 %v502, %v537
        %v548 = vmul.f32 %v507, %v533
        %v549 = vmul.f32 %v507, %v537
        %v550 = vmul.f32 %v512, %v533
        %v551 = vmul.f32 %v512, %v537
        %v552 = vmul.f32 %v517, %v533
        %v553 = vmul.f32 %v517, %v537
        %554 = vset.pattern.permute.xlu0 1
        %555 = vperm.xlu0 %554, %v471
        %v556 = vpop.permute.xlu0 %555
        %558 = vset.pattern.permute.xlu0 1
        %559 = vperm.xlu0 %558, %v472
        %v560 = vpop.permute.xlu0 %559
        %562 = vset.pattern.permute.xlu0 1
        %563 = vperm.xlu0 %562, %v473
        %v564 = vpop.permute.xlu0 %563
        %566 = vset.pattern.permute.xlu0 1
        %567 = vperm.xlu0 %566, %v474
        %v568 = vpop.permute.xlu0 %567
        %570 = vset.pattern.permute.xlu0 1
        %571 = vperm.xlu0 %570, %v475
        %v572 = vpop.permute.xlu0 %571
        %574 = vset.pattern.permute.xlu0 1
        %575 = vperm.xlu0 %574, %v476
        %v576 = vpop.permute.xlu0 %575
        %578 = vset.pattern.permute.xlu0 1
        %579 = vperm.xlu0 %578, %v477
        %v580 = vpop.permute.xlu0 %579
        %582 = vset.pattern.permute.xlu0 1
        %583 = vperm.xlu0 %582, %v478
        %v584 = vpop.permute.xlu0 %583
        %v586 = vlaneseq
        %v587 = vshrl.u32 %v586, 7
        %v588 = vsub.s32 1, %v587
        %v589 = vrot.slane %v470, %v588
        %v590 = vlaneseq
        %v591 = vshrl.u32 %v590, 7
        %v592 = vsub.s32 5, %v591
        %v593 = vrot.slane %v470, %v592
        %v596 = vlaneseq
        %v597 = vshrl.u32 %v596, 7
        %v598 = vsub.s32 1, %v597
        %v599 = vrot.slane %v589, %v598
        %v600 = vlaneseq
        %v601 = vshrl.u32 %v600, 7
        %v602 = vsub.s32 1, %v601
        %v603 = vrot.slane %v593, %v602
        %v604 = vmul.f32 %v556, %v599
        %v605 = vmul.f32 %v556, %v603
        %v606 = vmul.f32 %v560, %v599
        %v607 = vmul.f32 %v560, %v603
        %v608 = vmul.f32 %v564, %v599
        %v609 = vmul.f32 %v564, %v603
        %v610 = vmul.f32 %v568, %v599
        %v611 = vmul.f32 %v568, %v603
        %v612 = vmul.f32 %v572, %v599
        %v613 = vmul.f32 %v572, %v603
        %v614 = vmul.f32 %v576, %v599
        %v615 = vmul.f32 %v576, %v603
        %v616 = vmul.f32 %v580, %v599
        %v617 = vmul.f32 %v580, %v603
        %v618 = vmul.f32 %v584, %v599
        %v619 = vmul.f32 %v584, %v603
        %v620 = vadd.f32 %v538, %v604
        %v621 = vadd.f32 %v539, %v605
        %v622 = vadd.f32 %v540, %v606
        %v623 = vadd.f32 %v541, %v607
        %v624 = vadd.f32 %v542, %v608
        %v625 = vadd.f32 %v543, %v609
        %v626 = vadd.f32 %v544, %v610
        %v627 = vadd.f32 %v545, %v611
        %v628 = vadd.f32 %v546, %v612
        %v629 = vadd.f32 %v547, %v613
        %v630 = vadd.f32 %v548, %v614
        %v631 = vadd.f32 %v549, %v615
        %v632 = vadd.f32 %v550, %v616
        %v633 = vadd.f32 %v551, %v617
        %v634 = vadd.f32 %v552, %v618
        %v635 = vadd.f32 %v553, %v619
        %636 = vset.pattern.permute.xlu0 2
        %637 = vperm.xlu0 %636, %v471
        %v638 = vpop.permute.xlu0 %637
        %640 = vset.pattern.permute.xlu0 2
        %641 = vperm.xlu0 %640, %v472
        %v642 = vpop.permute.xlu0 %641
        %644 = vset.pattern.permute.xlu0 2
        %645 = vperm.xlu0 %644, %v473
        %v646 = vpop.permute.xlu0 %645
        %648 = vset.pattern.permute.xlu0 2
        %649 = vperm.xlu0 %648, %v474
        %v650 = vpop.permute.xlu0 %649
        %652 = vset.pattern.permute.xlu0 2
        %653 = vperm.xlu0 %652, %v475
        %v654 = vpop.permute.xlu0 %653
        %656 = vset.pattern.permute.xlu0 2
        %657 = vperm.xlu0 %656, %v476
        %v658 = vpop.permute.xlu0 %657
        %660 = vset.pattern.permute.xlu0 2
        %661 = vperm.xlu0 %660, %v477
        %v662 = vpop.permute.xlu0 %661
        %664 = vset.pattern.permute.xlu0 2
        %665 = vperm.xlu0 %664, %v478
        %v666 = vpop.permute.xlu0 %665
        %v668 = vlaneseq
        %v669 = vshrl.u32 %v668, 7
        %v670 = vsub.s32 2, %v669
        %v671 = vrot.slane %v470, %v670
        %v672 = vlaneseq
        %v673 = vshrl.u32 %v672, 7
        %v674 = vsub.s32 6, %v673
        %v675 = vrot.slane %v470, %v674
        %v678 = vlaneseq
        %v679 = vshrl.u32 %v678, 7
        %v680 = vsub.s32 2, %v679
        %v681 = vrot.slane %v671, %v680
        %v682 = vlaneseq
        %v683 = vshrl.u32 %v682, 7
        %v684 = vsub.s32 2, %v683
        %v685 = vrot.slane %v675, %v684
        %v686 = vmul.f32 %v638, %v681
        %v687 = vmul.f32 %v638, %v685
        %v688 = vmul.f32 %v642, %v681
        %v689 = vmul.f32 %v642, %v685
        %v690 = vmul.f32 %v646, %v681
        %v691 = vmul.f32 %v646, %v685
        %v692 = vmul.f32 %v650, %v681
        %v693 = vmul.f32 %v650, %v685
        %v694 = vmul.f32 %v654, %v681
        %v695 = vmul.f32 %v654, %v685
        %v696 = vmul.f32 %v658, %v681
        %v697 = vmul.f32 %v658, %v685
        %v698 = vmul.f32 %v662, %v681
        %v699 = vmul.f32 %v662, %v685
        %v700 = vmul.f32 %v666, %v681
        %v701 = vmul.f32 %v666, %v685
        %v702 = vadd.f32 %v620, %v686
        %v703 = vadd.f32 %v621, %v687
        %v704 = vadd.f32 %v622, %v688
        %v705 = vadd.f32 %v623, %v689
        %v706 = vadd.f32 %v624, %v690
        %v707 = vadd.f32 %v625, %v691
        %v708 = vadd.f32 %v626, %v692
        %v709 = vadd.f32 %v627, %v693
        %v710 = vadd.f32 %v628, %v694
        %v711 = vadd.f32 %v629, %v695
        %v712 = vadd.f32 %v630, %v696
        %v713 = vadd.f32 %v631, %v697
        %v714 = vadd.f32 %v632, %v698
        %v715 = vadd.f32 %v633, %v699
        %v716 = vadd.f32 %v634, %v700
        %v717 = vadd.f32 %v635, %v701
        %v718 = vld [vmem:[%s2] sm:$0xff]
        %v719 = vld [vmem:[%s2 + $0x8] sm:$0xff]
        %v720 = vld [vmem:[%s2 + $0x10] sm:$0xff]
        %v721 = vld [vmem:[%s2 + $0x18] sm:$0xff]
        %v722 = vld [vmem:[%s2 + $0x20] sm:$0xff]
        %v723 = vld [vmem:[%s2 + $0x28] sm:$0xff]
        %v724 = vld [vmem:[%s2 + $0x30] sm:$0xff]
        %v725 = vld [vmem:[%s2 + $0x38] sm:$0xff]
        %727 = vset.pattern.permute.xlu0 0
        %728 = vperm.xlu0 %727, %v718
        %v729 = vpop.permute.xlu0 %728
        %732 = vset.pattern.permute.xlu0 0
        %733 = vperm.xlu0 %732, %v719
        %v734 = vpop.permute.xlu0 %733
        %737 = vset.pattern.permute.xlu0 0
        %738 = vperm.xlu0 %737, %v720
        %v739 = vpop.permute.xlu0 %738
        %742 = vset.pattern.permute.xlu0 0
        %743 = vperm.xlu0 %742, %v721
        %v744 = vpop.permute.xlu0 %743
        %747 = vset.pattern.permute.xlu0 0
        %748 = vperm.xlu0 %747, %v722
        %v749 = vpop.permute.xlu0 %748
        %752 = vset.pattern.permute.xlu0 0
        %753 = vperm.xlu0 %752, %v723
        %v754 = vpop.permute.xlu0 %753
        %757 = vset.pattern.permute.xlu0 0
        %758 = vperm.xlu0 %757, %v724
        %v759 = vpop.permute.xlu0 %758
        %762 = vset.pattern.permute.xlu0 0
        %763 = vperm.xlu0 %762, %v725
        %v764 = vpop.permute.xlu0 %763
        %v766 = vadd.f32 %v702, %v729
        %v767 = vadd.f32 %v703, %v729
        %v768 = vadd.f32 %v704, %v734
        %v769 = vadd.f32 %v705, %v734
        %v770 = vadd.f32 %v706, %v739
        %v771 = vadd.f32 %v707, %v739
        %v772 = vadd.f32 %v708, %v744
        %v773 = vadd.f32 %v709, %v744
        %v774 = vadd.f32 %v710, %v749
        %v775 = vadd.f32 %v711, %v749
        %v776 = vadd.f32 %v712, %v754
        %v777 = vadd.f32 %v713, %v754
        %v778 = vadd.f32 %v714, %v759
        %v779 = vadd.f32 %v715, %v759
        %v780 = vadd.f32 %v716, %v764
        %v781 = vadd.f32 %v717, %v764
        %v782 = vmax.f32 %v766, 0.0
        %v783 = vmax.f32 %v767, 0.0
        %v784 = vmax.f32 %v768, 0.0
        %v785 = vmax.f32 %v769, 0.0
        %v786 = vmax.f32 %v770, 0.0
        %v787 = vmax.f32 %v771, 0.0
        %v788 = vmax.f32 %v772, 0.0
        %v789 = vmax.f32 %v773, 0.0
        %v790 = vmax.f32 %v774, 0.0
        %v791 = vmax.f32 %v775, 0.0
        %v792 = vmax.f32 %v776, 0.0
        %v793 = vmax.f32 %v777, 0.0
        %v794 = vmax.f32 %v778, 0.0
        %v795 = vmax.f32 %v779, 0.0
        %v796 = vmax.f32 %v780, 0.0
        %v797 = vmax.f32 %v781, 0.0
        %v798 = vld [vmem:[#allocation2] sm:$0xff]
        %v799 = vld [vmem:[#allocation2 + $0x8] sm:$0xff]
        %v800 = vld [vmem:[#allocation2 + $0x10] sm:$0xff]
        %v801 = vld [vmem:[#allocation2 + $0x18] sm:$0xff]
        %v802 = vld [vmem:[#allocation2 + $0x20] sm:$0xff]
        %v803 = vld [vmem:[#allocation2 + $0x28] sm:$0xff]
        %v804 = vld [vmem:[#allocation2 + $0x30] sm:$0xff]
        %v805 = vld [vmem:[#allocation2 + $0x38] sm:$0xff]
        %v806 = vld [vmem:[%s4] sm:$0xff]
        %v807 = vld [vmem:[%s4 + $0x8] sm:$0xff]
        %v808 = vld [vmem:[%s4 + $0x10] sm:$0xff]
        %v809 = vld [vmem:[%s4 + $0x18] sm:$0xff]
        %v810 = vld [vmem:[%s4 + $0x20] sm:$0xff]
        %v811 = vld [vmem:[%s4 + $0x28] sm:$0xff]
        %v812 = vld [vmem:[%s4 + $0x30] sm:$0xff]
        %v813 = vld [vmem:[%s4 + $0x38] sm:$0xff]
        %815 = vset.pattern.permute.xlu0 0
        %816 = vperm.xlu0 %815, %v806
        %v817 = vpop.permute.xlu0 %816
        %820 = vset.pattern.permute.xlu0 0
        %821 = vperm.xlu0 %820, %v807
        %v822 = vpop.permute.xlu0 %821
        %825 = vset.pattern.permute.xlu0 0
        %826 = vperm.xlu0 %825, %v808
        %v827 = vpop.permute.xlu0 %826
        %830 = vset.pattern.permute.xlu0 0
        %831 = vperm.xlu0 %830, %v809
        %v832 = vpop.permute.xlu0 %831
        %835 = vset.pattern.permute.xlu0 0
        %836 = vperm.xlu0 %835, %v810
        %v837 = vpop.permute.xlu0 %836
        %840 = vset.pattern.permute.xlu0 0
        %841 = vperm.xlu0 %840, %v811
        %v842 = vpop.permute.xlu0 %841
        %845 = vset.pattern.permute.xlu0 0
        %846 = vperm.xlu0 %845, %v812
        %v847 = vpop.permute.xlu0 %846
        %850 = vset.pattern.permute.xlu0 0
        %851 = vperm.xlu0 %850, %v813
        %v852 = vpop.permute.xlu0 %851
        %vm854 = vcmask 523264
        %v856 = vsel %vm854, %v798, 0
        %v859 = vsel %vm854, %v799, 0
        %v862 = vsel %vm854, %v800, 0
        %v865 = vsel %vm854, %v801, 0
        %v868 = vsel %vm854, %v802, 0
        %v871 = vsel %vm854, %v803, 0
        %v874 = vsel %vm854, %v804, 0
        %v877 = vsel %vm854, %v805, 0
        %879 = vmatprep.subr.mxu0 %v783
        %880 = vmatpush1.msra.mxu0 %v782
        %881 = vmatprep.subr.mxu0 %v785
        %882 = vmatpush1.msra.mxu0 %v784
        %883 = vmatprep.subr.mxu0 %v787
        %884 = vmatpush1.msra.mxu0 %v786
        %885 = vmatprep.subr.mxu0 %v789
        %886 = vmatpush1.msra.mxu0 %v788
        %887 = vmatprep.subr.mxu0 %v791
        %888 = vmatpush1.msra.mxu0 %v790
        %889 = vmatprep.subr.mxu0 %v793
        %890 = vmatpush1.msra.mxu0 %v792
        %891 = vmatprep.subr.mxu0 %v795
        %892 = vmatpush1.msra.mxu0 %v794
        %893 = vmatprep.subr.mxu0 %v797
        %894 = vmatpush1.msra.mxu0 %v796
        %895 = vmatprep.subr.mxu0 0.0
        %896 = vmatpush1.msra.mxu0 0.0
        %897 = vmatprep.subr.mxu0 0.0
        %898 = vmatpush1.msra.mxu0 0.0
        %899 = vmatprep.subr.mxu0 0.0
        %900 = vmatpush1.msra.mxu0 0.0
        %901 = vmatprep.subr.mxu0 0.0
        %902 = vmatpush1.msra.mxu0 0.0
        %903 = vmatprep.subr.mxu0 0.0
        %904 = vmatpush1.msra.mxu0 0.0
        %905 = vmatprep.subr.mxu0 0.0
        %906 = vmatpush1.msra.mxu0 0.0
        %907 = vmatprep.subr.mxu0 0.0
        %908 = vmatpush1.msra.mxu0 0.0
        %909 = vmatprep.subr.mxu0 0.0
        %910 = vmatpush1.msra.mxu0 0.0
        %911 = vmatprep.subr.mxu0 0.0
        %912 = vmatpush1.msra.mxu0 0.0
        %913 = vmatprep.subr.mxu0 0.0
        %914 = vmatpush1.msra.mxu0 0.0
        %915 = vmatprep.subr.mxu0 0.0
        %916 = vmatpush1.msra.mxu0 0.0
        %917 = vmatprep.subr.mxu0 0.0
        %918 = vmatpush1.msra.mxu0 0.0
        %919 = vmatprep.subr.mxu0 0.0
        %920 = vmatpush1.msra.mxu0 0.0
        %921 = vmatprep.subr.mxu0 0.0
        %922 = vmatpush1.msra.mxu0 0.0
        %923 = vmatprep.subr.mxu0 0.0
        %924 = vmatpush1.msra.mxu0 0.0
        %925 = vmatprep.subr.mxu0 0.0
        %926 = vmatpush1.msra.mxu0 0.0
        %927 = vmatprep.subr.mxu0 0.0
        %928 = vmatpush1.msra.mxu0 0.0
        %929 = vmatprep.subr.mxu0 0.0
        %930 = vmatpush1.msra.mxu0 0.0
        %931 = vmatprep.subr.mxu0 0.0
        %932 = vmatpush1.msra.mxu0 0.0
        %933 = vmatprep.subr.mxu0 0.0
        %934 = vmatpush1.msra.mxu0 0.0
        %935 = vmatprep.subr.mxu0 0.0
        %936 = vmatpush1.msra.mxu0 0.0
        %937 = vmatprep.subr.mxu0 0.0
        %938 = vmatpush1.msra.mxu0 0.0
        %939 = vmatprep.subr.mxu0 0.0
        %940 = vmatpush1.msra.mxu0 0.0
        %941 = vmatprep.subr.mxu0 0.0
        %942 = vmatpush1.msra.mxu0 0.0
        %943 = vmatprep.mubr.f32.mxu0 0.0
        %944 = vmatmul.mubr.f32.gmra.mrb[0].mxu0 %v856
        %v945 = vpop.f32.mrb[0].mxu0
        %v946 = vadd.f32 %v817, %v945
        %v947 = vpop.f32.mrb[0].mxu0
        %v948 = vadd.f32 %v817, %v947
        %949 = vmatprep.mubr.f32.mxu0 0.0
        %950 = vmatmul.mubr.f32.gmra.mrb[0].mxu0 %v859
        %v951 = vpop.f32.mrb[0].mxu0
        %v952 = vadd.f32 %v822, %v951
        %v953 = vpop.f32.mrb[0].mxu0
        %v954 = vadd.f32 %v822, %v953
        %955 = vmatprep.mubr.f32.mxu0 0.0
        %956 = vmatmul.mubr.f32.gmra.mrb[0].mxu0 %v862
        %v957 = vpop.f32.mrb[0].mxu0
        %v958 = vadd.f32 %v827, %v957
        %v959 = vpop.f32.mrb[0].mxu0
        %v960 = vadd.f32 %v827, %v959
        %961 = vmatprep.mubr.f32.mxu0 0.0
        %962 = vmatmul.mubr.f32.gmra.mrb[0].mxu0 %v865
        %v963 = vpop.f32.mrb[0].mxu0
        %v964 = vadd.f32 %v832, %v963
        %v965 = vpop.f32.mrb[0].mxu0
        %v966 = vadd.f32 %v832, %v965
        %967 = vmatprep.mubr.f32.mxu0 0.0
        %968 = vmatmul.mubr.f32.gmra.mrb[0].mxu0 %v868
        %v969 = vpop.f32.mrb[0].mxu0
        %v970 = vadd.f32 %v837, %v969
        %v971 = vpop.f32.mrb[0].mxu0
        %v972 = vadd.f32 %v837, %v971
        %973 = vmatprep.mubr.f32.mxu0 0.0
        %974 = vmatmul.mubr.f32.gmra.mrb[0].mxu0 %v871
        %v975 = vpop.f32.mrb[0].mxu0
        %v976 = vadd.f32 %v842, %v975
        %v977 = vpop.f32.mrb[0].mxu0
        %v978 = vadd.f32 %v842, %v977
        %979 = vmatprep.mubr.f32.mxu0 0.0
        %980 = vmatmul.mubr.f32.gmra.mrb[0].mxu0 %v874
        %v981 = vpop.f32.mrb[0].mxu0
        %v982 = vadd.f32 %v847, %v981
        %v983 = vpop.f32.mrb[0].mxu0
        %v984 = vadd.f32 %v847, %v983
        %985 = vmatprep.mubr.f32.mxu0 0.0
        %986 = vmatmul.mubr.f32.gmra.mrb[0].mxu0 %v877
        %v987 = vpop.f32.mrb[0].mxu0
        %v988 = vadd.f32 %v852, %v987
        %v989 = vpop.f32.mrb[0].mxu0
        %v990 = vadd.f32 %v852, %v989
        %991 = vdwg.mxu0
        %v992 = vmax.f32 %v946, 0.0
        %v993 = vmax.f32 %v948, 0.0
        %v994 = vmax.f32 %v952, 0.0
        %v995 = vmax.f32 %v954, 0.0
        %v996 = vmax.f32 %v958, 0.0
        %v997 = vmax.f32 %v960, 0.0
        %v998 = vmax.f32 %v964, 0.0
        %v999 = vmax.f32 %v966, 0.0
        %v1000 = vmax.f32 %v970, 0.0
        %v1001 = vmax.f32 %v972, 0.0
        %v1002 = vmax.f32 %v976, 0.0
        %v1003 = vmax.f32 %v978, 0.0
        %v1004 = vmax.f32 %v982, 0.0
        %v1005 = vmax.f32 %v984, 0.0
        %v1006 = vmax.f32 %v988, 0.0
        %v1007 = vmax.f32 %v990, 0.0
        %v1008 = vld [vmem:[#allocation4] sm:$0xff]
        %v1009 = vld [vmem:[#allocation4 + $0x8] sm:$0xff]
        %v1010 = vld [vmem:[#allocation4 + $0x10] sm:$0xff]
        %v1011 = vld [vmem:[#allocation4 + $0x18] sm:$0xff]
        %v1012 = vld [vmem:[#allocation4 + $0x20] sm:$0xff]
        %v1013 = vld [vmem:[#allocation4 + $0x28] sm:$0xff]
        %v1014 = vld [vmem:[#allocation4 + $0x30] sm:$0xff]
        %v1015 = vld [vmem:[#allocation4 + $0x38] sm:$0xff]
        %v1016 = vld [vmem:[%s6] sm:$0xff]
        %v1017 = vld [vmem:[%s6 + $0x8] sm:$0xff]
        %v1018 = vld [vmem:[%s6 + $0x10] sm:$0xff]
        %v1019 = vld [vmem:[%s6 + $0x18] sm:$0xff]
        %v1020 = vld [vmem:[%s6 + $0x20] sm:$0xff]
        %v1021 = vld [vmem:[%s6 + $0x28] sm:$0xff]
        %v1022 = vld [vmem:[%s6 + $0x30] sm:$0xff]
        %v1023 = vld [vmem:[%s6 + $0x38] sm:$0xff]
        %1025 = vset.pattern.permute.xlu0 0
        %1026 = vperm.xlu0 %1025, %v1016
        %v1027 = vpop.permute.xlu0 %1026
        %1030 = vset.pattern.permute.xlu0 0
        %1031 = vperm.xlu0 %1030, %v1017
        %v1032 = vpop.permute.xlu0 %1031
        %1035 = vset.pattern.permute.xlu0 0
        %1036 = vperm.xlu0 %1035, %v1018
        %v1037 = vpop.permute.xlu0 %1036
        %1040 = vset.pattern.permute.xlu0 0
        %1041 = vperm.xlu0 %1040, %v1019
        %v1042 = vpop.permute.xlu0 %1041
        %1045 = vset.pattern.permute.xlu0 0
        %1046 = vperm.xlu0 %1045, %v1020
        %v1047 = vpop.permute.xlu0 %1046
        %1050 = vset.pattern.permute.xlu0 0
        %1051 = vperm.xlu0 %1050, %v1021
        %v1052 = vpop.permute.xlu0 %1051
        %1055 = vset.pattern.permute.xlu0 0
        %1056 = vperm.xlu0 %1055, %v1022
        %v1057 = vpop.permute.xlu0 %1056
        %1060 = vset.pattern.permute.xlu0 0
        %1061 = vperm.xlu0 %1060, %v1023
        %v1062 = vpop.permute.xlu0 %1061
        %v1065 = vsel %vm854, %v1008, 0
        %v1068 = vsel %vm854, %v1009, 0
        %v1071 = vsel %vm854, %v1010, 0
        %v1074 = vsel %vm854, %v1011, 0
        %v1077 = vsel %vm854, %v1012, 0
        %v1080 = vsel %vm854, %v1013, 0
        %v1083 = vsel %vm854, %v1014, 0
        %v1086 = vsel %vm854, %v1015, 0
        %1088 = vmatprep.subr.mxu0 %v993
        %1089 = vmatpush1.msra.mxu0 %v992
        %1090 = vmatprep.subr.mxu0 %v995
        %1091 = vmatpush1.msra.mxu0 %v994
        %1092 = vmatprep.subr.mxu0 %v997
        %1093 = vmatpush1.msra.mxu0 %v996
        %1094 = vmatprep.subr.mxu0 %v999
        %1095 = vmatpush1.msra.mxu0 %v998
        %1096 = vmatprep.subr.mxu0 %v1001
        %1097 = vmatpush1.msra.mxu0 %v1000
        %1098 = vmatprep.subr.mxu0 %v1003
        %1099 = vmatpush1.msra.mxu0 %v1002
        %1100 = vmatprep.subr.mxu0 %v1005
        %1101 = vmatpush1.msra.mxu0 %v1004
        %1102 = vmatprep.subr.mxu0 %v1007
        %1103 = vmatpush1.msra.mxu0 %v1006
        %1104 = vmatprep.subr.mxu0 0.0
        %1105 = vmatpush1.msra.mxu0 0.0
        %1106 = vmatprep.subr.mxu0 0.0
        %1107 = vmatpush1.msra.mxu0 0.0
        %1108 = vmatprep.subr.mxu0 0.0
        %1109 = vmatpush1.msra.mxu0 0.0
        %1110 = vmatprep.subr.mxu0 0.0
        %1111 = vmatpush1.msra.mxu0 0.0
        %1112 = vmatprep.subr.mxu0 0.0
        %1113 = vmatpush1.msra.mxu0 0.0
        %1114 = vmatprep.subr.mxu0 0.0
        %1115 = vmatpush1.msra.mxu0 0.0
        %1116 = vmatprep.subr.mxu0 0.0
        %1117 = vmatpush1.msra.mxu0 0.0
        %1118 = vmatprep.subr.mxu0 0.0
        %1119 = vmatpush1.msra.mxu0 0.0
        %1120 = vmatprep.subr.mxu0 0.0
        %1121 = vmatpush1.msra.mxu0 0.0
        %1122 = vmatprep.subr.mxu0 0.0
        %1123 = vmatpush1.msra.mxu0 0.0
        %1124 = vmatprep.subr.mxu0 0.0
        %1125 = vmatpush1.msra.mxu0 0.0
        %1126 = vmatprep.subr.mxu0 0.0
        %1127 = vmatpush1.msra.mxu0 0.0
        %1128 = vmatprep.subr.mxu0 0.0
        %1129 = vmatpush1.msra.mxu0 0.0
        %1130 = vmatprep.subr.mxu0 0.0
        %1131 = vmatpush1.msra.mxu0 0.0
        %1132 = vmatprep.subr.mxu0 0.0
        %1133 = vmatpush1.msra.mxu0 0.0
        %1134 = vmatprep.subr.mxu0 0.0
        %1135 = vmatpush1.msra.mxu0 0.0
        %1136 = vmatprep.subr.mxu0 0.0
        %1137 = vmatpush1.msra.mxu0 0.0
        %1138 = vmatprep.subr.mxu0 0.0
        %1139 = vmatpush1.msra.mxu0 0.0
        %1140 = vmatprep.subr.mxu0 0.0
        %1141 = vmatpush1.msra.mxu0 0.0
        %1142 = vmatprep.subr.mxu0 0.0
        %1143 = vmatpush1.msra.mxu0 0.0
        %1144 = vmatprep.subr.mxu0 0.0
        %1145 = vmatpush1.msra.mxu0 0.0
        %1146 = vmatprep.subr.mxu0 0.0
        %1147 = vmatpush1.msra.mxu0 0.0
        %1148 = vmatprep.subr.mxu0 0.0
        %1149 = vmatpush1.msra.mxu0 0.0
        %1150 = vmatprep.subr.mxu0 0.0
        %1151 = vmatpush1.msra.mxu0 0.0
        %1152 = vmatprep.mubr.f32.mxu0 0.0
        %1153 = vmatmul.mubr.f32.gmra.mrb[0].mxu0 %v1065
        %v1154 = vpop.f32.mrb[0].mxu0
        %v1155 = vadd.f32 %v1027, %v1154
        %v1156 = vpop.f32.mrb[0].mxu0
        %v1157 = vadd.f32 %v1027, %v1156
        %1158 = vmatprep.mubr.f32.mxu0 0.0
        %1159 = vmatmul.mubr.f32.gmra.mrb[0].mxu0 %v1068
        %v1160 = vpop.f32.mrb[0].mxu0
        %v1161 = vadd.f32 %v1032, %v1160
        %v1162 = vpop.f32.mrb[0].mxu0
        %v1163 = vadd.f32 %v1032, %v1162
        %1164 = vmatprep.mubr.f32.mxu0 0.0
        %1165 = vmatmul.mubr.f32.gmra.mrb[0].mxu0 %v1071
        %v1166 = vpop.f32.mrb[0].mxu0
        %v1167 = vadd.f32 %v1037, %v1166
        %v1168 = vpop.f32.mrb[0].mxu0
        %v1169 = vadd.f32 %v1037, %v1168
        %1170 = vmatprep.mubr.f32.mxu0 0.0
        %1171 = vmatmul.mubr.f32.gmra.mrb[0].mxu0 %v1074
        %v1172 = vpop.f32.mrb[0].mxu0
        %v1173 = vadd.f32 %v1042, %v1172
        %v1174 = vpop.f32.mrb[0].mxu0
        %v1175 = vadd.f32 %v1042, %v1174
        %1176 = vmatprep.mubr.f32.mxu0 0.0
        %1177 = vmatmul.mubr.f32.gmra.mrb[0].mxu0 %v1077
        %v1178 = vpop.f32.mrb[0].mxu0
        %v1179 = vadd.f32 %v1047, %v1178
        %v1180 = vpop.f32.mrb[0].mxu0
        %v1181 = vadd.f32 %v1047, %v1180
        %1182 = vmatprep.mubr.f32.mxu0 0.0
        %1183 = vmatmul.mubr.f32.gmra.mrb[0].mxu0 %v1080
        %v1184 = vpop.f32.mrb[0].mxu0
        %v1185 = vadd.f32 %v1052, %v1184
        %v1186 = vpop.f32.mrb[0].mxu0
        %v1187 = vadd.f32 %v1052, %v1186
        %1188 = vmatprep.mubr.f32.mxu0 0.0
        %1189 = vmatmul.mubr.f32.gmra.mrb[0].mxu0 %v1083
        %v1190 = vpop.f32.mrb[0].mxu0
        %v1191 = vadd.f32 %v1057, %v1190
        %v1192 = vpop.f32.mrb[0].mxu0
        %v1193 = vadd.f32 %v1057, %v1192
        %1194 = vmatprep.mubr.f32.mxu0 0.0
        %1195 = vmatmul.mubr.f32.gmra.mrb[0].mxu0 %v1086
        %v1196 = vpop.f32.mrb[0].mxu0
        %v1197 = vadd.f32 %v1062, %v1196
        %v1198 = vpop.f32.mrb[0].mxu0
        %v1199 = vadd.f32 %v1062, %v1198
        %1200 = vdwg.mxu0
        %v1201 = vmax.f32 %v1155, 0.0
        %v1202 = vmax.f32 %v1157, 0.0
        %v1203 = vmax.f32 %v1161, 0.0
        %v1204 = vmax.f32 %v1163, 0.0
        %v1205 = vmax.f32 %v1167, 0.0
        %v1206 = vmax.f32 %v1169, 0.0
        %v1207 = vmax.f32 %v1173, 0.0
        %v1208 = vmax.f32 %v1175, 0.0
        %v1209 = vmax.f32 %v1179, 0.0
        %v1210 = vmax.f32 %v1181, 0.0
        %v1211 = vmax.f32 %v1185, 0.0
        %v1212 = vmax.f32 %v1187, 0.0
        %v1213 = vmax.f32 %v1191, 0.0
        %v1214 = vmax.f32 %v1193, 0.0
        %v1215 = vmax.f32 %v1197, 0.0
        %v1216 = vmax.f32 %v1199, 0.0
        %v1217 = vld [vmem:[%s7] sm:$0xff]
        %v1218 = vld [vmem:[%s7 + $0x8] sm:$0xff]
        %v1219 = vld [vmem:[%s7 + $0x10] sm:$0xff]
        %v1220 = vld [vmem:[%s7 + $0x18] sm:$0xff]
        %v1221 = vld [vmem:[%s7 + $0x20] sm:$0xff]
        %v1222 = vld [vmem:[%s7 + $0x28] sm:$0xff]
        %v1223 = vld [vmem:[%s7 + $0x30] sm:$0xff]
        %v1224 = vld [vmem:[%s7 + $0x38] sm:$0xff]
        %v1225 = vld [vmem:[%s7 + $0x40] sm:$0xff]
        %v1226 = vld [vmem:[%s7 + $0x48] sm:$0xff]
        %v1227 = vld [vmem:[%s7 + $0x50] sm:$0xff]
        %v1228 = vld [vmem:[%s7 + $0x58] sm:$0xff]
        %v1229 = vld [vmem:[%s7 + $0x60] sm:$0xff]
        %v1230 = vld [vmem:[%s7 + $0x68] sm:$0xff]
        %v1231 = vld [vmem:[%s7 + $0x70] sm:$0xff]
        %v1232 = vld [vmem:[%s7 + $0x78] sm:$0xff]
        %v1233 = vld [vmem:[%s8] sm:$0xff]
        %v1234 = vld [vmem:[%s8 + $0x8] sm:$0xff]
        %v1235 = vld [vmem:[%s8 + $0x10] sm:$0xff]
        %v1236 = vld [vmem:[%s8 + $0x18] sm:$0xff]
        %v1237 = vld [vmem:[%s8 + $0x20] sm:$0xff]
        %v1238 = vld [vmem:[%s8 + $0x28] sm:$0xff]
        %v1239 = vld [vmem:[%s8 + $0x30] sm:$0xff]
        %v1240 = vld [vmem:[%s8 + $0x38] sm:$0xff]
        %v1241 = vld [vmem:[%s8 + $0x40] sm:$0xff]
        %v1242 = vld [vmem:[%s8 + $0x48] sm:$0xff]
        %v1243 = vld [vmem:[%s8 + $0x50] sm:$0xff]
        %v1244 = vld [vmem:[%s8 + $0x58] sm:$0xff]
        %v1245 = vld [vmem:[%s8 + $0x60] sm:$0xff]
        %v1246 = vld [vmem:[%s8 + $0x68] sm:$0xff]
        %v1247 = vld [vmem:[%s8 + $0x70] sm:$0xff]
        %v1248 = vld [vmem:[%s8 + $0x78] sm:$0xff]
        %1250 = vset.pattern.permute.xlu0 0
        %1251 = vperm.xlu0 %1250, %v1233
        %v1252 = vpop.permute.xlu0 %1251
        %1255 = vset.pattern.permute.xlu0 0
        %1256 = vperm.xlu0 %1255, %v1234
        %v1257 = vpop.permute.xlu0 %1256
        %1260 = vset.pattern.permute.xlu0 0
        %1261 = vperm.xlu0 %1260, %v1235
        %v1262 = vpop.permute.xlu0 %1261
        %1265 = vset.pattern.permute.xlu0 0
        %1266 = vperm.xlu0 %1265, %v1236
        %v1267 = vpop.permute.xlu0 %1266
        %1270 = vset.pattern.permute.xlu0 0
        %1271 = vperm.xlu0 %1270, %v1237
        %v1272 = vpop.permute.xlu0 %1271
        %1275 = vset.pattern.permute.xlu0 0
        %1276 = vperm.xlu0 %1275, %v1238
        %v1277 = vpop.permute.xlu0 %1276
        %1280 = vset.pattern.permute.xlu0 0
        %1281 = vperm.xlu0 %1280, %v1239
        %v1282 = vpop.permute.xlu0 %1281
        %1285 = vset.pattern.permute.xlu0 0
        %1286 = vperm.xlu0 %1285, %v1240
        %v1287 = vpop.permute.xlu0 %1286
        %1290 = vset.pattern.permute.xlu0 0
        %1291 = vperm.xlu0 %1290, %v1241
        %v1292 = vpop.permute.xlu0 %1291
        %1295 = vset.pattern.permute.xlu0 0
        %1296 = vperm.xlu0 %1295, %v1242
        %v1297 = vpop.permute.xlu0 %1296
        %1300 = vset.pattern.permute.xlu0 0
        %1301 = vperm.xlu0 %1300, %v1243
        %v1302 = vpop.permute.xlu0 %1301
        %1305 = vset.pattern.permute.xlu0 0
        %1306 = vperm.xlu0 %1305, %v1244
        %v1307 = vpop.permute.xlu0 %1306
        %1310 = vset.pattern.permute.xlu0 0
        %1311 = vperm.xlu0 %1310, %v1245
        %v1312 = vpop.permute.xlu0 %1311
        %1315 = vset.pattern.permute.xlu0 0
        %1316 = vperm.xlu0 %1315, %v1246
        %v1317 = vpop.permute.xlu0 %1316
        %1320 = vset.pattern.permute.xlu0 0
        %1321 = vperm.xlu0 %1320, %v1247
        %v1322 = vpop.permute.xlu0 %1321
        %1325 = vset.pattern.permute.xlu0 0
        %1326 = vperm.xlu0 %1325, %v1248
        %v1327 = vpop.permute.xlu0 %1326
        %v1330 = vsel %vm854, %v1217, 0
        %v1333 = vsel %vm854, %v1218, 0
        %v1336 = vsel %vm854, %v1219, 0
        %v1339 = vsel %vm854, %v1220, 0
        %v1342 = vsel %vm854, %v1221, 0
        %v1345 = vsel %vm854, %v1222, 0
        %v1348 = vsel %vm854, %v1223, 0
        %v1351 = vsel %vm854, %v1224, 0
        %v1354 = vsel %vm854, %v1225, 0
        %v1357 = vsel %vm854, %v1226, 0
        %v1360 = vsel %vm854, %v1227, 0
        %v1363 = vsel %vm854, %v1228, 0
        %v1366 = vsel %vm854, %v1229, 0
        %v1369 = vsel %vm854, %v1230, 0
        %v1372 = vsel %vm854, %v1231, 0
        %v1375 = vsel %vm854, %v1232, 0
        %1377 = vmatprep.subr.mxu0 %v1202
        %1378 = vmatpush1.msra.mxu0 %v1201
        %1379 = vmatprep.subr.mxu0 %v1204
        %1380 = vmatpush1.msra.mxu0 %v1203
        %1381 = vmatprep.subr.mxu0 %v1206
        %1382 = vmatpush1.msra.mxu0 %v1205
        %1383 = vmatprep.subr.mxu0 %v1208
        %1384 = vmatpush1.msra.mxu0 %v1207
        %1385 = vmatprep.subr.mxu0 %v1210
        %1386 = vmatpush1.msra.mxu0 %v1209
        %1387 = vmatprep.subr.mxu0 %v1212
        %1388 = vmatpush1.msra.mxu0 %v1211
        %1389 = vmatprep.subr.mxu0 %v1214
        %1390 = vmatpush1.msra.mxu0 %v1213
        %1391 = vmatprep.subr.mxu0 %v1216
        %1392 = vmatpush1.msra.mxu0 %v1215
        %1393 = vmatprep.subr.mxu0 0.0
        %1394 = vmatpush1.msra.mxu0 0.0
        %1395 = vmatprep.subr.mxu0 0.0
        %1396 = vmatpush1.msra.mxu0 0.0
        %1397 = vmatprep.subr.mxu0 0.0
        %1398 = vmatpush1.msra.mxu0 0.0
        %1399 = vmatprep.subr.mxu0 0.0
        %1400 = vmatpush1.msra.mxu0 0.0
        %1401 = vmatprep.subr.mxu0 0.0
        %1402 = vmatpush1.msra.mxu0 0.0
        %1403 = vmatprep.subr.mxu0 0.0
        %1404 = vmatpush1.msra.mxu0 0.0
        %1405 = vmatprep.subr.mxu0 0.0
        %1406 = vmatpush1.msra.mxu0 0.0
        %1407 = vmatprep.subr.mxu0 0.0
        %1408 = vmatpush1.msra.mxu0 0.0
        %1409 = vmatprep.subr.mxu0 0.0
        %1410 = vmatpush1.msra.mxu0 0.0
        %1411 = vmatprep.subr.mxu0 0.0
        %1412 = vmatpush1.msra.mxu0 0.0
        %1413 = vmatprep.subr.mxu0 0.0
        %1414 = vmatpush1.msra.mxu0 0.0
        %1415 = vmatprep.subr.mxu0 0.0
        %1416 = vmatpush1.msra.mxu0 0.0
        %1417 = vmatprep.subr.mxu0 0.0
        %1418 = vmatpush1.msra.mxu0 0.0
        %1419 = vmatprep.subr.mxu0 0.0
        %1420 = vmatpush1.msra.mxu0 0.0
        %1421 = vmatprep.subr.mxu0 0.0
        %1422 = vmatpush1.msra.mxu0 0.0
        %1423 = vmatprep.subr.mxu0 0.0
        %1424 = vmatpush1.msra.mxu0 0.0
        %1425 = vmatprep.subr.mxu0 0.0
        %1426 = vmatpush1.msra.mxu0 0.0
        %1427 = vmatprep.subr.mxu0 0.0
        %1428 = vmatpush1.msra.mxu0 0.0
        %1429 = vmatprep.subr.mxu0 0.0
        %1430 = vmatpush1.msra.mxu0 0.0
        %1431 = vmatprep.subr.mxu0 0.0
        %1432 = vmatpush1.msra.mxu0 0.0
        %1433 = vmatprep.subr.mxu0 0.0
        %1434 = vmatpush1.msra.mxu0 0.0
        %1435 = vmatprep.subr.mxu0 0.0
        %1436 = vmatpush1.msra.mxu0 0.0
        %1437 = vmatprep.subr.mxu0 0.0
        %1438 = vmatpush1.msra.mxu0 0.0
        %1439 = vmatprep.subr.mxu0 0.0
        %1440 = vmatpush1.msra.mxu0 0.0
        %1441 = vmatprep.mubr.f32.mxu0 0.0
        %1442 = vmatmul.mubr.f32.gmra.mrb[0].mxu0 %v1330
        %v1443 = vpop.f32.mrb[0].mxu0
        %v1444 = vadd.f32 %v1252, %v1443
        %v1445 = vpop.f32.mrb[0].mxu0
        %v1446 = vadd.f32 %v1252, %v1445
        %1447 = vmatprep.mubr.f32.mxu0 0.0
        %1448 = vmatmul.mubr.f32.gmra.mrb[0].mxu0 %v1333
        %v1449 = vpop.f32.mrb[0].mxu0
        %v1450 = vadd.f32 %v1257, %v1449
        %v1451 = vpop.f32.mrb[0].mxu0
        %v1452 = vadd.f32 %v1257, %v1451
        %1453 = vmatprep.mubr.f32.mxu0 0.0
        %1454 = vmatmul.mubr.f32.gmra.mrb[0].mxu0 %v1336
        %v1455 = vpop.f32.mrb[0].mxu0
        %v1456 = vadd.f32 %v1262, %v1455
        %v1457 = vpop.f32.mrb[0].mxu0
        %v1458 = vadd.f32 %v1262, %v1457
        %1459 = vmatprep.mubr.f32.mxu0 0.0
        %1460 = vmatmul.mubr.f32.gmra.mrb[0].mxu0 %v1339
        %v1461 = vpop.f32.mrb[0].mxu0
        %v1462 = vadd.f32 %v1267, %v1461
        %v1463 = vpop.f32.mrb[0].mxu0
        %v1464 = vadd.f32 %v1267, %v1463
        %1465 = vmatprep.mubr.f32.mxu0 0.0
        %1466 = vmatmul.mubr.f32.gmra.mrb[0].mxu0 %v1342
        %v1467 = vpop.f32.mrb[0].mxu0
        %v1468 = vadd.f32 %v1272, %v1467
        %v1469 = vpop.f32.mrb[0].mxu0
        %v1470 = vadd.f32 %v1272, %v1469
        %1471 = vmatprep.mubr.f32.mxu0 0.0
        %1472 = vmatmul.mubr.f32.gmra.mrb[0].mxu0 %v1345
        %v1473 = vpop.f32.mrb[0].mxu0
        %v1474 = vadd.f32 %v1277, %v1473
        %v1475 = vpop.f32.mrb[0].mxu0
        %v1476 = vadd.f32 %v1277, %v1475
        %1477 = vmatprep.mubr.f32.mxu0 0.0
        %1478 = vmatmul.mubr.f32.gmra.mrb[0].mxu0 %v1348
        %v1479 = vpop.f32.mrb[0].mxu0
        %v1480 = vadd.f32 %v1282, %v1479
        %v1481 = vpop.f32.mrb[0].mxu0
        %v1482 = vadd.f32 %v1282, %v1481
        %1483 = vmatprep.mubr.f32.mxu0 0.0
        %1484 = vmatmul.mubr.f32.gmra.mrb[0].mxu0 %v1351
        %v1485 = vpop.f32.mrb[0].mxu0
        %v1486 = vadd.f32 %v1287, %v1485
        %v1487 = vpop.f32.mrb[0].mxu0
        %v1488 = vadd.f32 %v1287, %v1487
        %1489 = vmatprep.mubr.f32.mxu0 0.0
        %1490 = vmatmul.mubr.f32.gmra.mrb[0].mxu0 %v1354
        %v1491 = vpop.f32.mrb[0].mxu0
        %v1492 = vadd.f32 %v1292, %v1491
        %v1493 = vpop.f32.mrb[0].mxu0
        %v1494 = vadd.f32 %v1292, %v1493
        %1495 = vmatprep.mubr.f32.mxu0 0.0
        %1496 = vmatmul.mubr.f32.gmra.mrb[0].mxu0 %v1357
        %v1497 = vpop.f32.mrb[0].mxu0
        %v1498 = vadd.f32 %v1297, %v1497
        %v1499 = vpop.f32.mrb[0].mxu0
        %v1500 = vadd.f32 %v1297, %v1499
        %1501 = vmatprep.mubr.f32.mxu0 0.0
        %1502 = vmatmul.mubr.f32.gmra.mrb[0].mxu0 %v1360
        %v1503 = vpop.f32.mrb[0].mxu0
        %v1504 = vadd.f32 %v1302, %v1503
        %v1505 = vpop.f32.mrb[0].mxu0
        %v1506 = vadd.f32 %v1302, %v1505
        %1507 = vmatprep.mubr.f32.mxu0 0.0
        %1508 = vmatmul.mubr.f32.gmra.mrb[0].mxu0 %v1363
        %v1509 = vpop.f32.mrb[0].mxu0
        %v1510 = vadd.f32 %v1307, %v1509
        %v1511 = vpop.f32.mrb[0].mxu0
        %v1512 = vadd.f32 %v1307, %v1511
        %1513 = vmatprep.mubr.f32.mxu0 0.0
        %1514 = vmatmul.mubr.f32.gmra.mrb[0].mxu0 %v1366
        %v1515 = vpop.f32.mrb[0].mxu0
        %v1516 = vadd.f32 %v1312, %v1515
        %v1517 = vpop.f32.mrb[0].mxu0
        %v1518 = vadd.f32 %v1312, %v1517
        %1519 = vmatprep.mubr.f32.mxu0 0.0
        %1520 = vmatmul.mubr.f32.gmra.mrb[0].mxu0 %v1369
        %v1521 = vpop.f32.mrb[0].mxu0
        %v1522 = vadd.f32 %v1317, %v1521
        %v1523 = vpop.f32.mrb[0].mxu0
        %v1524 = vadd.f32 %v1317, %v1523
        %1525 = vmatprep.mubr.f32.mxu0 0.0
        %1526 = vmatmul.mubr.f32.gmra.mrb[0].mxu0 %v1372
        %v1527 = vpop.f32.mrb[0].mxu0
        %v1528 = vadd.f32 %v1322, %v1527
        %v1529 = vpop.f32.mrb[0].mxu0
        %v1530 = vadd.f32 %v1322, %v1529
        %1531 = vmatprep.mubr.f32.mxu0 0.0
        %1532 = vmatmul.mubr.f32.gmra.mrb[0].mxu0 %v1375
        %v1533 = vpop.f32.mrb[0].mxu0
        %v1534 = vadd.f32 %v1327, %v1533
        %v1535 = vpop.f32.mrb[0].mxu0
        %v1536 = vadd.f32 %v1327, %v1535
        %1537 = vdwg.mxu0
        %v1538 = vmax.f32 %v1444, 0.0
        %v1539 = vmax.f32 %v1446, 0.0
        %v1540 = vmax.f32 %v1450, 0.0
        %v1541 = vmax.f32 %v1452, 0.0
        %v1542 = vmax.f32 %v1456, 0.0
        %v1543 = vmax.f32 %v1458, 0.0
        %v1544 = vmax.f32 %v1462, 0.0
        %v1545 = vmax.f32 %v1464, 0.0
        %v1546 = vmax.f32 %v1468, 0.0
        %v1547 = vmax.f32 %v1470, 0.0
        %v1548 = vmax.f32 %v1474, 0.0
        %v1549 = vmax.f32 %v1476, 0.0
        %v1550 = vmax.f32 %v1480, 0.0
        %v1551 = vmax.f32 %v1482, 0.0
        %v1552 = vmax.f32 %v1486, 0.0
        %v1553 = vmax.f32 %v1488, 0.0
        %v1554 = vmax.f32 %v1492, 0.0
        %v1555 = vmax.f32 %v1494, 0.0
        %v1556 = vmax.f32 %v1498, 0.0
        %v1557 = vmax.f32 %v1500, 0.0
        %v1558 = vmax.f32 %v1504, 0.0
        %v1559 = vmax.f32 %v1506, 0.0
        %v1560 = vmax.f32 %v1510, 0.0
        %v1561 = vmax.f32 %v1512, 0.0
        %v1562 = vmax.f32 %v1516, 0.0
        %v1563 = vmax.f32 %v1518, 0.0
        %v1564 = vmax.f32 %v1522, 0.0
        %v1565 = vmax.f32 %v1524, 0.0
        %v1566 = vmax.f32 %v1528, 0.0
        %v1567 = vmax.f32 %v1530, 0.0
        %v1568 = vmax.f32 %v1534, 0.0
        %v1569 = vmax.f32 %v1536, 0.0
        %1570 = vst [vmem:[%s468 + $0x800] sm:$0xff] %v1201
        %1571 = vst [vmem:[%s468 + $0x808] sm:$0xff] %v1202
        %1572 = vst [vmem:[%s468 + $0x810] sm:$0xff] %v1203
        %1573 = vst [vmem:[%s468 + $0x818] sm:$0xff] %v1204
        %1574 = vst [vmem:[%s468 + $0x820] sm:$0xff] %v1205
        %1575 = vst [vmem:[%s468 + $0x828] sm:$0xff] %v1206
        %1576 = vst [vmem:[%s468 + $0x830] sm:$0xff] %v1207
        %1577 = vst [vmem:[%s468 + $0x838] sm:$0xff] %v1208
        %1578 = vst [vmem:[%s468 + $0x840] sm:$0xff] %v1209
        %1579 = vst [vmem:[%s468 + $0x848] sm:$0xff] %v1210
        %1580 = vst [vmem:[%s468 + $0x850] sm:$0xff] %v1211
        %1581 = vst [vmem:[%s468 + $0x858] sm:$0xff] %v1212
        %1582 = vst [vmem:[%s468 + $0x860] sm:$0xff] %v1213
        %1583 = vst [vmem:[%s468 + $0x868] sm:$0xff] %v1214
        %1584 = vst [vmem:[%s468 + $0x870] sm:$0xff] %v1215
        %1585 = vst [vmem:[%s468 + $0x878] sm:$0xff] %v1216
        %v1586 = vld [vmem:[#allocation6] sm:$0xff]
        %v1587 = vld [vmem:[#allocation6 + $0x8] sm:$0xff]
        %v1588 = vld [vmem:[#allocation6 + $0x10] sm:$0xff]
        %v1589 = vld [vmem:[#allocation6 + $0x18] sm:$0xff]
        %v1590 = vld [vmem:[#allocation6 + $0x20] sm:$0xff]
        %v1591 = vld [vmem:[#allocation6 + $0x28] sm:$0xff]
        %v1592 = vld [vmem:[#allocation6 + $0x30] sm:$0xff]
        %v1593 = vld [vmem:[#allocation6 + $0x38] sm:$0xff]
        %v1594 = vld [vmem:[#allocation6 + $0x40] sm:$0xff]
        %v1595 = vld [vmem:[#allocation6 + $0x48] sm:$0xff]
        %v1596 = vld [vmem:[#allocation6 + $0x50] sm:$0xff]
        %v1597 = vld [vmem:[#allocation6 + $0x58] sm:$0xff]
        %v1598 = vld [vmem:[#allocation6 + $0x60] sm:$0xff]
        %v1599 = vld [vmem:[#allocation6 + $0x68] sm:$0xff]
        %v1600 = vld [vmem:[#allocation6 + $0x70] sm:$0xff]
        %v1601 = vld [vmem:[#allocation6 + $0x78] sm:$0xff]
        %v1602 = vld [vmem:[#allocation6 + $0x80] sm:$0xff]
        %v1603 = vld [vmem:[#allocation6 + $0x88] sm:$0xff]
        %v1604 = vld [vmem:[#allocation6 + $0x90] sm:$0xff]
        %v1605 = vld [vmem:[#allocation6 + $0x98] sm:$0xff]
        %v1606 = vld [vmem:[#allocation6 + $0xa0] sm:$0xff]
        %v1607 = vld [vmem:[#allocation6 + $0xa8] sm:$0xff]
        %v1608 = vld [vmem:[#allocation6 + $0xb0] sm:$0xff]
        %v1609 = vld [vmem:[#allocation6 + $0xb8] sm:$0xff]
        %v1610 = vld [vmem:[#allocation6 + $0xc0] sm:$0xff]
        %v1611 = vld [vmem:[#allocation6 + $0xc8] sm:$0xff]
        %v1612 = vld [vmem:[#allocation6 + $0xd0] sm:$0xff]
        %v1613 = vld [vmem:[#allocation6 + $0xd8] sm:$0xff]
        %v1614 = vld [vmem:[#allocation6 + $0xe0] sm:$0xff]
        %v1615 = vld [vmem:[#allocation6 + $0xe8] sm:$0xff]
        %v1616 = vld [vmem:[#allocation6 + $0xf0] sm:$0xff]
        %v1617 = vld [vmem:[#allocation6 + $0xf8] sm:$0xff]
        %v1618 = vld [vmem:[%s10] sm:$0xff]
        %v1619 = vld [vmem:[%s10 + $0x8] sm:$0xff]
        %v1620 = vld [vmem:[%s10 + $0x10] sm:$0xff]
        %v1621 = vld [vmem:[%s10 + $0x18] sm:$0xff]
        %v1622 = vld [vmem:[%s10 + $0x20] sm:$0xff]
        %v1623 = vld [vmem:[%s10 + $0x28] sm:$0xff]
        %v1624 = vld [vmem:[%s10 + $0x30] sm:$0xff]
        %v1625 = vld [vmem:[%s10 + $0x38] sm:$0xff]
        %v1626 = vld [vmem:[%s10 + $0x40] sm:$0xff]
        %v1627 = vld [vmem:[%s10 + $0x48] sm:$0xff]
        %v1628 = vld [vmem:[%s10 + $0x50] sm:$0xff]
        %v1629 = vld [vmem:[%s10 + $0x58] sm:$0xff]
        %v1630 = vld [vmem:[%s10 + $0x60] sm:$0xff]
        %v1631 = vld [vmem:[%s10 + $0x68] sm:$0xff]
        %v1632 = vld [vmem:[%s10 + $0x70] sm:$0xff]
        %v1633 = vld [vmem:[%s10 + $0x78] sm:$0xff]
        %v1634 = vld [vmem:[%s10 + $0x80] sm:$0xff]
        %v1635 = vld [vmem:[%s10 + $0x88] sm:$0xff]
        %v1636 = vld [vmem:[%s10 + $0x90] sm:$0xff]
        %v1637 = vld [vmem:[%s10 + $0x98] sm:$0xff]
        %v1638 = vld [vmem:[%s10 + $0xa0] sm:$0xff]
        %v1639 = vld [vmem:[%s10 + $0xa8] sm:$0xff]
        %v1640 = vld [vmem:[%s10 + $0xb0] sm:$0xff]
        %v1641 = vld [vmem:[%s10 + $0xb8] sm:$0xff]
        %v1642 = vld [vmem:[%s10 + $0xc0] sm:$0xff]
        %v1643 = vld [vmem:[%s10 + $0xc8] sm:$0xff]
        %v1644 = vld [vmem:[%s10 + $0xd0] sm:$0xff]
        %v1645 = vld [vmem:[%s10 + $0xd8] sm:$0xff]
        %v1646 = vld [vmem:[%s10 + $0xe0] sm:$0xff]
        %v1647 = vld [vmem:[%s10 + $0xe8] sm:$0xff]
        %v1648 = vld [vmem:[%s10 + $0xf0] sm:$0xff]
        %v1649 = vld [vmem:[%s10 + $0xf8] sm:$0xff]
        %1651 = vset.pattern.permute.xlu0 0
        %1652 = vperm.xlu0 %1651, %v1618
        %v1653 = vpop.permute.xlu0 %1652
        %1656 = vset.pattern.permute.xlu0 0
        %1657 = vperm.xlu0 %1656, %v1619
        %v1658 = vpop.permute.xlu0 %1657
        %1661 = vset.pattern.permute.xlu0 0
        %1662 = vperm.xlu0 %1661, %v1620
        %v1663 = vpop.permute.xlu0 %1662
        %1666 = vset.pattern.permute.xlu0 0
        %1667 = vperm.xlu0 %1666, %v1621
        %v1668 = vpop.permute.xlu0 %1667
        %1671 = vset.pattern.permute.xlu0 0
        %1672 = vperm.xlu0 %1671, %v1622
        %v1673 = vpop.permute.xlu0 %1672
        %1676 = vset.pattern.permute.xlu0 0
        %1677 = vperm.xlu0 %1676, %v1623
        %v1678 = vpop.permute.xlu0 %1677
        %1681 = vset.pattern.permute.xlu0 0
        %1682 = vperm.xlu0 %1681, %v1624
        %v1683 = vpop.permute.xlu0 %1682
        %1686 = vset.pattern.permute.xlu0 0
        %1687 = vperm.xlu0 %1686, %v1625
        %v1688 = vpop.permute.xlu0 %1687
        %1691 = vset.pattern.permute.xlu0 0
        %1692 = vperm.xlu0 %1691, %v1626
        %v1693 = vpop.permute.xlu0 %1692
        %1696 = vset.pattern.permute.xlu0 0
        %1697 = vperm.xlu0 %1696, %v1627
        %v1698 = vpop.permute.xlu0 %1697
        %1701 = vset.pattern.permute.xlu0 0
        %1702 = vperm.xlu0 %1701, %v1628
        %v1703 = vpop.permute.xlu0 %1702
        %1706 = vset.pattern.permute.xlu0 0
        %1707 = vperm.xlu0 %1706, %v1629
        %v1708 = vpop.permute.xlu0 %1707
        %1711 = vset.pattern.permute.xlu0 0
        %1712 = vperm.xlu0 %1711, %v1630
        %v1713 = vpop.permute.xlu0 %1712
        %1716 = vset.pattern.permute.xlu0 0
        %1717 = vperm.xlu0 %1716, %v1631
        %v1718 = vpop.permute.xlu0 %1717
        %1721 = vset.pattern.permute.xlu0 0
        %1722 = vperm.xlu0 %1721, %v1632
        %v1723 = vpop.permute.xlu0 %1722
        %1726 = vset.pattern.permute.xlu0 0
        %1727 = vperm.xlu0 %1726, %v1633
        %v1728 = vpop.permute.xlu0 %1727
        %1731 = vset.pattern.permute.xlu0 0
        %1732 = vperm.xlu0 %1731, %v1634
        %v1733 = vpop.permute.xlu0 %1732
        %1736 = vset.pattern.permute.xlu0 0
        %1737 = vperm.xlu0 %1736, %v1635
        %v1738 = vpop.permute.xlu0 %1737
        %1741 = vset.pattern.permute.xlu0 0
        %1742 = vperm.xlu0 %1741, %v1636
        %v1743 = vpop.permute.xlu0 %1742
        %1746 = vset.pattern.permute.xlu0 0
        %1747 = vperm.xlu0 %1746, %v1637
        %v1748 = vpop.permute.xlu0 %1747
        %1751 = vset.pattern.permute.xlu0 0
        %1752 = vperm.xlu0 %1751, %v1638
        %v1753 = vpop.permute.xlu0 %1752
        %1756 = vset.pattern.permute.xlu0 0
        %1757 = vperm.xlu0 %1756, %v1639
        %v1758 = vpop.permute.xlu0 %1757
        %1761 = vset.pattern.permute.xlu0 0
        %1762 = vperm.xlu0 %1761, %v1640
        %v1763 = vpop.permute.xlu0 %1762
        %1766 = vset.pattern.permute.xlu0 0
        %1767 = vperm.xlu0 %1766, %v1641
        %v1768 = vpop.permute.xlu0 %1767
        %1771 = vset.pattern.permute.xlu0 0
        %1772 = vperm.xlu0 %1771, %v1642
        %v1773 = vpop.permute.xlu0 %1772
        %1776 = vset.pattern.permute.xlu0 0
        %1777 = vperm.xlu0 %1776, %v1643
        %v1778 = vpop.permute.xlu0 %1777
        %1781 = vset.pattern.permute.xlu0 0
        %1782 = vperm.xlu0 %1781, %v1644
        %v1783 = vpop.permute.xlu0 %1782
        %1786 = vset.pattern.permute.xlu0 0
        %1787 = vperm.xlu0 %1786, %v1645
        %v1788 = vpop.permute.xlu0 %1787
        %1791 = vset.pattern.permute.xlu0 0
        %1792 = vperm.xlu0 %1791, %v1646
        %v1793 = vpop.permute.xlu0 %1792
        %1796 = vset.pattern.permute.xlu0 0
        %1797 = vperm.xlu0 %1796, %v1647
        %v1798 = vpop.permute.xlu0 %1797
        %1801 = vset.pattern.permute.xlu0 0
        %1802 = vperm.xlu0 %1801, %v1648
        %v1803 = vpop.permute.xlu0 %1802
        %1806 = vset.pattern.permute.xlu0 0
        %1807 = vperm.xlu0 %1806, %v1649
        %v1808 = vpop.permute.xlu0 %1807
        %1810 = vmatprep.subr.mxu0 %v1539
        %1811 = vmatpush1.msra.mxu0 %v1538
        %1812 = vmatprep.subr.mxu0 %v1541
        %1813 = vmatpush1.msra.mxu0 %v1540
        %1814 = vmatprep.subr.mxu0 %v1543
        %1815 = vmatpush1.msra.mxu0 %v1542
        %1816 = vmatprep.subr.mxu0 %v1545
        %1817 = vmatpush1.msra.mxu0 %v1544
        %1818 = vmatprep.subr.mxu0 %v1547
        %1819 = vmatpush1.msra.mxu0 %v1546
        %1820 = vmatprep.subr.mxu0 %v1549
        %1821 = vmatpush1.msra.mxu0 %v1548
        %1822 = vmatprep.subr.mxu0 %v1551
        %1823 = vmatpush1.msra.mxu0 %v1550
        %1824 = vmatprep.subr.mxu0 %v1553
        %1825 = vmatpush1.msra.mxu0 %v1552
        %1826 = vmatprep.subr.mxu0 %v1555
        %1827 = vmatpush1.msra.mxu0 %v1554
        %1828 = vmatprep.subr.mxu0 %v1557
        %1829 = vmatpush1.msra.mxu0 %v1556
        %1830 = vmatprep.subr.mxu0 %v1559
        %1831 = vmatpush1.msra.mxu0 %v1558
        %1832 = vmatprep.subr.mxu0 %v1561
        %1833 = vmatpush1.msra.mxu0 %v1560
        %1834 = vmatprep.subr.mxu0 %v1563
        %1835 = vmatpush1.msra.mxu0 %v1562
        %1836 = vmatprep.subr.mxu0 %v1565
        %1837 = vmatpush1.msra.mxu0 %v1564
        %1838 = vmatprep.subr.mxu0 %v1567
        %1839 = vmatpush1.msra.mxu0 %v1566
        %1840 = vmatprep.subr.mxu0 %v1569
        %1841 = vmatpush1.msra.mxu0 %v1568
        %1842 = vmatprep.subr.mxu0 0.0
        %1843 = vmatpush1.msra.mxu0 0.0
        %1844 = vmatprep.subr.mxu0 0.0
        %1845 = vmatpush1.msra.mxu0 0.0
        %1846 = vmatprep.subr.mxu0 0.0
        %1847 = vmatpush1.msra.mxu0 0.0
        %1848 = vmatprep.subr.mxu0 0.0
        %1849 = vmatpush1.msra.mxu0 0.0
        %1850 = vmatprep.subr.mxu0 0.0
        %1851 = vmatpush1.msra.mxu0 0.0
        %1852 = vmatprep.subr.mxu0 0.0
        %1853 = vmatpush1.msra.mxu0 0.0
        %1854 = vmatprep.subr.mxu0 0.0
        %1855 = vmatpush1.msra.mxu0 0.0
        %1856 = vmatprep.subr.mxu0 0.0
        %1857 = vmatpush1.msra.mxu0 0.0
        %1858 = vmatprep.subr.mxu0 0.0
        %1859 = vmatpush1.msra.mxu0 0.0
        %1860 = vmatprep.subr.mxu0 0.0
        %1861 = vmatpush1.msra.mxu0 0.0
        %1862 = vmatprep.subr.mxu0 0.0
        %1863 = vmatpush1.msra.mxu0 0.0
        %1864 = vmatprep.subr.mxu0 0.0
        %1865 = vmatpush1.msra.mxu0 0.0
        %1866 = vmatprep.subr.mxu0 0.0
        %1867 = vmatpush1.msra.mxu0 0.0
        %1868 = vmatprep.subr.mxu0 0.0
        %1869 = vmatpush1.msra.mxu0 0.0
        %1870 = vmatprep.subr.mxu0 0.0
        %1871 = vmatpush1.msra.mxu0 0.0
        %1872 = vmatprep.subr.mxu0 0.0
        %1873 = vmatpush1.msra.mxu0 0.0
        %1874 = vmatprep.mubr.f32.mxu0 0.0
        %1875 = vmatmul.mubr.f32.gmra.mrb[0].mxu0 %v1586
        %v1876 = vpop.f32.mrb[0].mxu0
        %v1877 = vadd.f32 %v1653, %v1876
        %v1878 = vpop.f32.mrb[0].mxu0
        %v1879 = vadd.f32 %v1653, %v1878
        %1880 = vmatprep.mubr.f32.mxu0 0.0
        %1881 = vmatmul.mubr.f32.gmra.mrb[0].mxu0 %v1587
        %v1882 = vpop.f32.mrb[0].mxu0
        %v1883 = vadd.f32 %v1658, %v1882
        %v1884 = vpop.f32.mrb[0].mxu0
        %v1885 = vadd.f32 %v1658, %v1884
        %1886 = vmatprep.mubr.f32.mxu0 0.0
        %1887 = vmatmul.mubr.f32.gmra.mrb[0].mxu0 %v1588
        %v1888 = vpop.f32.mrb[0].mxu0
        %v1889 = vadd.f32 %v1663, %v1888
        %v1890 = vpop.f32.mrb[0].mxu0
        %v1891 = vadd.f32 %v1663, %v1890
        %1892 = vmatprep.mubr.f32.mxu0 0.0
        %1893 = vmatmul.mubr.f32.gmra.mrb[0].mxu0 %v1589
        %v1894 = vpop.f32.mrb[0].mxu0
        %v1895 = vadd.f32 %v1668, %v1894
        %v1896 = vpop.f32.mrb[0].mxu0
        %v1897 = vadd.f32 %v1668, %v1896
        %1898 = vmatprep.mubr.f32.mxu0 0.0
        %1899 = vmatmul.mubr.f32.gmra.mrb[0].mxu0 %v1590
        %v1900 = vpop.f32.mrb[0].mxu0
        %v1901 = vadd.f32 %v1673, %v1900
        %v1902 = vpop.f32.mrb[0].mxu0
        %v1903 = vadd.f32 %v1673, %v1902
        %1904 = vmatprep.mubr.f32.mxu0 0.0
        %1905 = vmatmul.mubr.f32.gmra.mrb[0].mxu0 %v1591
        %v1906 = vpop.f32.mrb[0].mxu0
        %v1907 = vadd.f32 %v1678, %v1906
        %v1908 = vpop.f32.mrb[0].mxu0
        %v1909 = vadd.f32 %v1678, %v1908
        %1910 = vmatprep.mubr.f32.mxu0 0.0
        %1911 = vmatmul.mubr.f32.gmra.mrb[0].mxu0 %v1592
        %v1912 = vpop.f32.mrb[0].mxu0
        %v1913 = vadd.f32 %v1683, %v1912
        %v1914 = vpop.f32.mrb[0].mxu0
        %v1915 = vadd.f32 %v1683, %v1914
        %1916 = vmatprep.mubr.f32.mxu0 0.0
        %1917 = vmatmul.mubr.f32.gmra.mrb[0].mxu0 %v1593
        %v1918 = vpop.f32.mrb[0].mxu0
        %v1919 = vadd.f32 %v1688, %v1918
        %v1920 = vpop.f32.mrb[0].mxu0
        %v1921 = vadd.f32 %v1688, %v1920
        %1922 = vmatprep.mubr.f32.mxu0 0.0
        %1923 = vmatmul.mubr.f32.gmra.mrb[0].mxu0 %v1594
        %v1924 = vpop.f32.mrb[0].mxu0
        %v1925 = vadd.f32 %v1693, %v1924
        %v1926 = vpop.f32.mrb[0].mxu0
        %v1927 = vadd.f32 %v1693, %v1926
        %1928 = vmatprep.mubr.f32.mxu0 0.0
        %1929 = vmatmul.mubr.f32.gmra.mrb[0].mxu0 %v1595
        %v1930 = vpop.f32.mrb[0].mxu0
        %v1931 = vadd.f32 %v1698, %v1930
        %v1932 = vpop.f32.mrb[0].mxu0
        %v1933 = vadd.f32 %v1698, %v1932
        %1934 = vmatprep.mubr.f32.mxu0 0.0
        %1935 = vmatmul.mubr.f32.gmra.mrb[0].mxu0 %v1596
        %v1936 = vpop.f32.mrb[0].mxu0
        %v1937 = vadd.f32 %v1703, %v1936
        %v1938 = vpop.f32.mrb[0].mxu0
        %v1939 = vadd.f32 %v1703, %v1938
        %1940 = vmatprep.mubr.f32.mxu0 0.0
        %1941 = vmatmul.mubr.f32.gmra.mrb[0].mxu0 %v1597
        %v1942 = vpop.f32.mrb[0].mxu0
        %v1943 = vadd.f32 %v1708, %v1942
        %v1944 = vpop.f32.mrb[0].mxu0
        %v1945 = vadd.f32 %v1708, %v1944
        %1946 = vmatprep.mubr.f32.mxu0 0.0
        %1947 = vmatmul.mubr.f32.gmra.mrb[0].mxu0 %v1598
        %v1948 = vpop.f32.mrb[0].mxu0
        %v1949 = vadd.f32 %v1713, %v1948
        %v1950 = vpop.f32.mrb[0].mxu0
        %v1951 = vadd.f32 %v1713, %v1950
        %1952 = vmatprep.mubr.f32.mxu0 0.0
        %1953 = vmatmul.mubr.f32.gmra.mrb[0].mxu0 %v1599
        %v1954 = vpop.f32.mrb[0].mxu0
        %v1955 = vadd.f32 %v1718, %v1954
        %v1956 = vpop.f32.mrb[0].mxu0
        %v1957 = vadd.f32 %v1718, %v1956
        %1958 = vmatprep.mubr.f32.mxu0 0.0
        %1959 = vmatmul.mubr.f32.gmra.mrb[0].mxu0 %v1600
        %v1960 = vpop.f32.mrb[0].mxu0
        %v1961 = vadd.f32 %v1723, %v1960
        %v1962 = vpop.f32.mrb[0].mxu0
        %v1963 = vadd.f32 %v1723, %v1962
        %1964 = vmatprep.mubr.f32.mxu0 0.0
        %1965 = vmatmul.mubr.f32.gmra.mrb[0].mxu0 %v1601
        %v1966 = vpop.f32.mrb[0].mxu0
        %v1967 = vadd.f32 %v1728, %v1966
        %v1968 = vpop.f32.mrb[0].mxu0
        %v1969 = vadd.f32 %v1728, %v1968
        %1970 = vmatprep.mubr.f32.mxu0 0.0
        %1971 = vmatmul.mubr.f32.gmra.mrb[0].mxu0 %v1602
        %v1972 = vpop.f32.mrb[0].mxu0
        %v1973 = vadd.f32 %v1733, %v1972
        %v1974 = vpop.f32.mrb[0].mxu0
        %v1975 = vadd.f32 %v1733, %v1974
        %1976 = vmatprep.mubr.f32.mxu0 0.0
        %1977 = vmatmul.mubr.f32.gmra.mrb[0].mxu0 %v1603
        %v1978 = vpop.f32.mrb[0].mxu0
        %v1979 = vadd.f32 %v1738, %v1978
        %v1980 = vpop.f32.mrb[0].mxu0
        %v1981 = vadd.f32 %v1738, %v1980
        %1982 = vmatprep.mubr.f32.mxu0 0.0
        %1983 = vmatmul.mubr.f32.gmra.mrb[0].mxu0 %v1604
        %v1984 = vpop.f32.mrb[0].mxu0
        %v1985 = vadd.f32 %v1743, %v1984
        %v1986 = vpop.f32.mrb[0].mxu0
        %v1987 = vadd.f32 %v1743, %v1986
        %1988 = vmatprep.mubr.f32.mxu0 0.0
        %1989 = vmatmul.mubr.f32.gmra.mrb[0].mxu0 %v1605
        %v1990 = vpop.f32.mrb[0].mxu0
        %v1991 = vadd.f32 %v1748, %v1990
        %v1992 = vpop.f32.mrb[0].mxu0
        %v1993 = vadd.f32 %v1748, %v1992
        %1994 = vmatprep.mubr.f32.mxu0 0.0
        %1995 = vmatmul.mubr.f32.gmra.mrb[0].mxu0 %v1606
        %v1996 = vpop.f32.mrb[0].mxu0
        %v1997 = vadd.f32 %v1753, %v1996
        %v1998 = vpop.f32.mrb[0].mxu0
        %v1999 = vadd.f32 %v1753, %v1998
        %2000 = vmatprep.mubr.f32.mxu0 0.0
        %2001 = vmatmul.mubr.f32.gmra.mrb[0].mxu0 %v1607
        %v2002 = vpop.f32.mrb[0].mxu0
        %v2003 = vadd.f32 %v1758, %v2002
        %v2004 = vpop.f32.mrb[0].mxu0
        %v2005 = vadd.f32 %v1758, %v2004
        %2006 = vmatprep.mubr.f32.mxu0 0.0
        %2007 = vmatmul.mubr.f32.gmra.mrb[0].mxu0 %v1608
        %v2008 = vpop.f32.mrb[0].mxu0
        %v2009 = vadd.f32 %v1763, %v2008
        %v2010 = vpop.f32.mrb[0].mxu0
        %v2011 = vadd.f32 %v1763, %v2010
        %2012 = vmatprep.mubr.f32.mxu0 0.0
        %2013 = vmatmul.mubr.f32.gmra.mrb[0].mxu0 %v1609
        %v2014 = vpop.f32.mrb[0].mxu0
        %v2015 = vadd.f32 %v1768, %v2014
        %v2016 = vpop.f32.mrb[0].mxu0
        %v2017 = vadd.f32 %v1768, %v2016
        %2018 = vmatprep.mubr.f32.mxu0 0.0
        %2019 = vmatmul.mubr.f32.gmra.mrb[0].mxu0 %v1610
        %v2020 = vpop.f32.mrb[0].mxu0
        %v2021 = vadd.f32 %v1773, %v2020
        %v2022 = vpop.f32.mrb[0].mxu0
        %v2023 = vadd.f32 %v1773, %v2022
        %2024 = vmatprep.mubr.f32.mxu0 0.0
        %2025 = vmatmul.mubr.f32.gmra.mrb[0].mxu0 %v1611
        %v2026 = vpop.f32.mrb[0].mxu0
        %v2027 = vadd.f32 %v1778, %v2026
        %v2028 = vpop.f32.mrb[0].mxu0
        %v2029 = vadd.f32 %v1778, %v2028
        %2030 = vmatprep.mubr.f32.mxu0 0.0
        %2031 = vmatmul.mubr.f32.gmra.mrb[0].mxu0 %v1612
        %v2032 = vpop.f32.mrb[0].mxu0
        %v2033 = vadd.f32 %v1783, %v2032
        %v2034 = vpop.f32.mrb[0].mxu0
        %v2035 = vadd.f32 %v1783, %v2034
        %2036 = vmatprep.mubr.f32.mxu0 0.0
        %2037 = vmatmul.mubr.f32.gmra.mrb[0].mxu0 %v1613
        %v2038 = vpop.f32.mrb[0].mxu0
        %v2039 = vadd.f32 %v1788, %v2038
        %v2040 = vpop.f32.mrb[0].mxu0
        %v2041 = vadd.f32 %v1788, %v2040
        %2042 = vmatprep.mubr.f32.mxu0 0.0
        %2043 = vmatmul.mubr.f32.gmra.mrb[0].mxu0 %v1614
        %v2044 = vpop.f32.mrb[0].mxu0
        %v2045 = vadd.f32 %v1793, %v2044
        %v2046 = vpop.f32.mrb[0].mxu0
        %v2047 = vadd.f32 %v1793, %v2046
        %2048 = vmatprep.mubr.f32.mxu0 0.0
        %2049 = vmatmul.mubr.f32.gmra.mrb[0].mxu0 %v1615
        %v2050 = vpop.f32.mrb[0].mxu0
        %v2051 = vadd.f32 %v1798, %v2050
        %v2052 = vpop.f32.mrb[0].mxu0
        %v2053 = vadd.f32 %v1798, %v2052
        %2054 = vmatprep.mubr.f32.mxu0 0.0
        %2055 = vmatmul.mubr.f32.gmra.mrb[0].mxu0 %v1616
        %v2056 = vpop.f32.mrb[0].mxu0
        %v2057 = vadd.f32 %v1803, %v2056
        %v2058 = vpop.f32.mrb[0].mxu0
        %v2059 = vadd.f32 %v1803, %v2058
        %2060 = vmatprep.mubr.f32.mxu0 0.0
        %2061 = vmatmul.mubr.f32.gmra.mrb[0].mxu0 %v1617
        %v2062 = vpop.f32.mrb[0].mxu0
        %v2063 = vadd.f32 %v1808, %v2062
        %v2064 = vpop.f32.mrb[0].mxu0
        %v2065 = vadd.f32 %v1808, %v2064
        %2066 = vdwg.mxu0
        %v2067 = vmax.f32 %v1877, 0.0
        %v2068 = vmax.f32 %v1879, 0.0
        %v2069 = vmax.f32 %v1883, 0.0
        %v2070 = vmax.f32 %v1885, 0.0
        %v2071 = vmax.f32 %v1889, 0.0
        %v2072 = vmax.f32 %v1891, 0.0
        %v2073 = vmax.f32 %v1895, 0.0
        %v2074 = vmax.f32 %v1897, 0.0
        %v2075 = vmax.f32 %v1901, 0.0
        %v2076 = vmax.f32 %v1903, 0.0
        %v2077 = vmax.f32 %v1907, 0.0
        %v2078 = vmax.f32 %v1909, 0.0
        %v2079 = vmax.f32 %v1913, 0.0
        %v2080 = vmax.f32 %v1915, 0.0
        %v2081 = vmax.f32 %v1919, 0.0
        %v2082 = vmax.f32 %v1921, 0.0
        %v2083 = vmax.f32 %v1925, 0.0
        %v2084 = vmax.f32 %v1927, 0.0
        %v2085 = vmax.f32 %v1931, 0.0
        %v2086 = vmax.f32 %v1933, 0.0
        %v2087 = vmax.f32 %v1937, 0.0
        %v2088 = vmax.f32 %v1939, 0.0
        %v2089 = vmax.f32 %v1943, 0.0
        %v2090 = vmax.f32 %v1945, 0.0
        %v2091 = vmax.f32 %v1949, 0.0
        %v2092 = vmax.f32 %v1951, 0.0
        %v2093 = vmax.f32 %v1955, 0.0
        %v2094 = vmax.f32 %v1957, 0.0
        %v2095 = vmax.f32 %v1961, 0.0
        %v2096 = vmax.f32 %v1963, 0.0
        %v2097 = vmax.f32 %v1967, 0.0
        %v2098 = vmax.f32 %v1969, 0.0
        %v2099 = vmax.f32 %v1973, 0.0
        %v2100 = vmax.f32 %v1975, 0.0
        %v2101 = vmax.f32 %v1979, 0.0
        %v2102 = vmax.f32 %v1981, 0.0
        %v2103 = vmax.f32 %v1985, 0.0
        %v2104 = vmax.f32 %v1987, 0.0
        %v2105 = vmax.f32 %v1991, 0.0
        %v2106 = vmax.f32 %v1993, 0.0
        %v2107 = vmax.f32 %v1997, 0.0
        %v2108 = vmax.f32 %v1999, 0.0
        %v2109 = vmax.f32 %v2003, 0.0
        %v2110 = vmax.f32 %v2005, 0.0
        %v2111 = vmax.f32 %v2009, 0.0
        %v2112 = vmax.f32 %v2011, 0.0
        %v2113 = vmax.f32 %v2015, 0.0
        %v2114 = vmax.f32 %v2017, 0.0
        %v2115 = vmax.f32 %v2021, 0.0
        %v2116 = vmax.f32 %v2023, 0.0
        %v2117 = vmax.f32 %v2027, 0.0
        %v2118 = vmax.f32 %v2029, 0.0
        %v2119 = vmax.f32 %v2033, 0.0
        %v2120 = vmax.f32 %v2035, 0.0
        %v2121 = vmax.f32 %v2039, 0.0
        %v2122 = vmax.f32 %v2041, 0.0
        %v2123 = vmax.f32 %v2045, 0.0
        %v2124 = vmax.f32 %v2047, 0.0
        %v2125 = vmax.f32 %v2051, 0.0
        %v2126 = vmax.f32 %v2053, 0.0
        %v2127 = vmax.f32 %v2057, 0.0
        %v2128 = vmax.f32 %v2059, 0.0
        %v2129 = vmax.f32 %v2063, 0.0
        %v2130 = vmax.f32 %v2065, 0.0
        %2131 = vst [vmem:[%s468] sm:$0xff] %v2067
        %2132 = vst [vmem:[%s468 + $0x8] sm:$0xff] %v2068
        %2133 = vst [vmem:[%s468 + $0x10] sm:$0xff] %v2069
        %2134 = vst [vmem:[%s468 + $0x18] sm:$0xff] %v2070
        %2135 = vst [vmem:[%s468 + $0x20] sm:$0xff] %v2071
        %2136 = vst [vmem:[%s468 + $0x28] sm:$0xff] %v2072
        %2137 = vst [vmem:[%s468 + $0x30] sm:$0xff] %v2073
        %2138 = vst [vmem:[%s468 + $0x38] sm:$0xff] %v2074
        %2139 = vst [vmem:[%s468 + $0x40] sm:$0xff] %v2075
        %2140 = vst [vmem:[%s468 + $0x48] sm:$0xff] %v2076
        %2141 = vst [vmem:[%s468 + $0x50] sm:$0xff] %v2077
        %2142 = vst [vmem:[%s468 + $0x58] sm:$0xff] %v2078
        %2143 = vst [vmem:[%s468 + $0x60] sm:$0xff] %v2079
        %2144 = vst [vmem:[%s468 + $0x68] sm:$0xff] %v2080
        %2145 = vst [vmem:[%s468 + $0x70] sm:$0xff] %v2081
        %2146 = vst [vmem:[%s468 + $0x78] sm:$0xff] %v2082
        %2147 = vst [vmem:[%s468 + $0x80] sm:$0xff] %v2083
        %2148 = vst [vmem:[%s468 + $0x88] sm:$0xff] %v2084
        %2149 = vst [vmem:[%s468 + $0x90] sm:$0xff] %v2085
        %2150 = vst [vmem:[%s468 + $0x98] sm:$0xff] %v2086
        %2151 = vst [vmem:[%s468 + $0xa0] sm:$0xff] %v2087
        %2152 = vst [vmem:[%s468 + $0xa8] sm:$0xff] %v2088
        %2153 = vst [vmem:[%s468 + $0xb0] sm:$0xff] %v2089
        %2154 = vst [vmem:[%s468 + $0xb8] sm:$0xff] %v2090
        %2155 = vst [vmem:[%s468 + $0xc0] sm:$0xff] %v2091
        %2156 = vst [vmem:[%s468 + $0xc8] sm:$0xff] %v2092
        %2157 = vst [vmem:[%s468 + $0xd0] sm:$0xff] %v2093
        %2158 = vst [vmem:[%s468 + $0xd8] sm:$0xff] %v2094
        %2159 = vst [vmem:[%s468 + $0xe0] sm:$0xff] %v2095
        %2160 = vst [vmem:[%s468 + $0xe8] sm:$0xff] %v2096
        %2161 = vst [vmem:[%s468 + $0xf0] sm:$0xff] %v2097
        %2162 = vst [vmem:[%s468 + $0xf8] sm:$0xff] %v2098
        %2163 = vst [vmem:[%s468 + $0x100] sm:$0xff] %v2099
        %2164 = vst [vmem:[%s468 + $0x108] sm:$0xff] %v2100
        %2165 = vst [vmem:[%s468 + $0x110] sm:$0xff] %v2101
        %2166 = vst [vmem:[%s468 + $0x118] sm:$0xff] %v2102
        %2167 = vst [vmem:[%s468 + $0x120] sm:$0xff] %v2103
        %2168 = vst [vmem:[%s468 + $0x128] sm:$0xff] %v2104
        %2169 = vst [vmem:[%s468 + $0x130] sm:$0xff] %v2105
        %2170 = vst [vmem:[%s468 + $0x138] sm:$0xff] %v2106
        %2171 = vst [vmem:[%s468 + $0x140] sm:$0xff] %v2107
        %2172 = vst [vmem:[%s468 + $0x148] sm:$0xff] %v2108
        %2173 = vst [vmem:[%s468 + $0x150] sm:$0xff] %v2109
        %2174 = vst [vmem:[%s468 + $0x158] sm:$0xff] %v2110
        %2175 = vst [vmem:[%s468 + $0x160] sm:$0xff] %v2111
        %2176 = vst [vmem:[%s468 + $0x168] sm:$0xff] %v2112
        %2177 = vst [vmem:[%s468 + $0x170] sm:$0xff] %v2113
        %2178 = vst [vmem:[%s468 + $0x178] sm:$0xff] %v2114
        %2179 = vst [vmem:[%s468 + $0x180] sm:$0xff] %v2115
        %2180 = vst [vmem:[%s468 + $0x188] sm:$0xff] %v2116
        %2181 = vst [vmem:[%s468 + $0x190] sm:$0xff] %v2117
        %2182 = vst [vmem:[%s468 + $0x198] sm:$0xff] %v2118
        %2183 = vst [vmem:[%s468 + $0x1a0] sm:$0xff] %v2119
        %2184 = vst [vmem:[%s468 + $0x1a8] sm:$0xff] %v2120
        %2185 = vst [vmem:[%s468 + $0x1b0] sm:$0xff] %v2121
        %2186 = vst [vmem:[%s468 + $0x1b8] sm:$0xff] %v2122
        %2187 = vst [vmem:[%s468 + $0x1c0] sm:$0xff] %v2123
        %2188 = vst [vmem:[%s468 + $0x1c8] sm:$0xff] %v2124
        %2189 = vst [vmem:[%s468 + $0x1d0] sm:$0xff] %v2125
        %2190 = vst [vmem:[%s468 + $0x1d8] sm:$0xff] %v2126
        %2191 = vst [vmem:[%s468 + $0x1e0] sm:$0xff] %v2127
        %2192 = vst [vmem:[%s468 + $0x1e8] sm:$0xff] %v2128
        %2193 = vst [vmem:[%s468 + $0x1f0] sm:$0xff] %v2129
        %2194 = vst [vmem:[%s468 + $0x1f8] sm:$0xff] %v2130
        %v2195 = vld [vmem:[#allocation6 + $0x100] sm:$0xff]
        %v2196 = vld [vmem:[#allocation6 + $0x108] sm:$0xff]
        %v2197 = vld [vmem:[#allocation6 + $0x110] sm:$0xff]
        %v2198 = vld [vmem:[#allocation6 + $0x118] sm:$0xff]
        %v2199 = vld [vmem:[#allocation6 + $0x120] sm:$0xff]
        %v2200 = vld [vmem:[#allocation6 + $0x128] sm:$0xff]
        %v2201 = vld [vmem:[#allocation6 + $0x130] sm:$0xff]
        %v2202 = vld [vmem:[#allocation6 + $0x138] sm:$0xff]
        %v2203 = vld [vmem:[#allocation6 + $0x140] sm:$0xff]
        %v2204 = vld [vmem:[#allocation6 + $0x148] sm:$0xff]
        %v2205 = vld [vmem:[#allocation6 + $0x150] sm:$0xff]
        %v2206 = vld [vmem:[#allocation6 + $0x158] sm:$0xff]
        %v2207 = vld [vmem:[#allocation6 + $0x160] sm:$0xff]
        %v2208 = vld [vmem:[#allocation6 + $0x168] sm:$0xff]
        %v2209 = vld [vmem:[#allocation6 + $0x170] sm:$0xff]
        %v2210 = vld [vmem:[#allocation6 + $0x178] sm:$0xff]
        %v2211 = vld [vmem:[#allocation6 + $0x180] sm:$0xff]
        %v2212 = vld [vmem:[#allocation6 + $0x188] sm:$0xff]
        %v2213 = vld [vmem:[#allocation6 + $0x190] sm:$0xff]
        %v2214 = vld [vmem:[#allocation6 + $0x198] sm:$0xff]
        %v2215 = vld [vmem:[#allocation6 + $0x1a0] sm:$0xff]
        %v2216 = vld [vmem:[#allocation6 + $0x1a8] sm:$0xff]
        %v2217 = vld [vmem:[#allocation6 + $0x1b0] sm:$0xff]
        %v2218 = vld [vmem:[#allocation6 + $0x1b8] sm:$0xff]
        %v2219 = vld [vmem:[#allocation6 + $0x1c0] sm:$0xff]
        %v2220 = vld [vmem:[#allocation6 + $0x1c8] sm:$0xff]
        %v2221 = vld [vmem:[#allocation6 + $0x1d0] sm:$0xff]
        %v2222 = vld [vmem:[#allocation6 + $0x1d8] sm:$0xff]
        %v2223 = vld [vmem:[#allocation6 + $0x1e0] sm:$0xff]
        %v2224 = vld [vmem:[#allocation6 + $0x1e8] sm:$0xff]
        %v2225 = vld [vmem:[#allocation6 + $0x1f0] sm:$0xff]
        %v2226 = vld [vmem:[#allocation6 + $0x1f8] sm:$0xff]
        %v2227 = vld [vmem:[%s10 + $0x100] sm:$0xff]
        %v2228 = vld [vmem:[%s10 + $0x108] sm:$0xff]
        %v2229 = vld [vmem:[%s10 + $0x110] sm:$0xff]
        %v2230 = vld [vmem:[%s10 + $0x118] sm:$0xff]
        %v2231 = vld [vmem:[%s10 + $0x120] sm:$0xff]
        %v2232 = vld [vmem:[%s10 + $0x128] sm:$0xff]
        %v2233 = vld [vmem:[%s10 + $0x130] sm:$0xff]
        %v2234 = vld [vmem:[%s10 + $0x138] sm:$0xff]
        %v2235 = vld [vmem:[%s10 + $0x140] sm:$0xff]
        %v2236 = vld [vmem:[%s10 + $0x148] sm:$0xff]
        %v2237 = vld [vmem:[%s10 + $0x150] sm:$0xff]
        %v2238 = vld [vmem:[%s10 + $0x158] sm:$0xff]
        %v2239 = vld [vmem:[%s10 + $0x160] sm:$0xff]
        %v2240 = vld [vmem:[%s10 + $0x168] sm:$0xff]
        %v2241 = vld [vmem:[%s10 + $0x170] sm:$0xff]
        %v2242 = vld [vmem:[%s10 + $0x178] sm:$0xff]
        %v2243 = vld [vmem:[%s10 + $0x180] sm:$0xff]
        %v2244 = vld [vmem:[%s10 + $0x188] sm:$0xff]
        %v2245 = vld [vmem:[%s10 + $0x190] sm:$0xff]
        %v2246 = vld [vmem:[%s10 + $0x198] sm:$0xff]
        %v2247 = vld [vmem:[%s10 + $0x1a0] sm:$0xff]
        %v2248 = vld [vmem:[%s10 + $0x1a8] sm:$0xff]
        %v2249 = vld [vmem:[%s10 + $0x1b0] sm:$0xff]
        %v2250 = vld [vmem:[%s10 + $0x1b8] sm:$0xff]
        %v2251 = vld [vmem:[%s10 + $0x1c0] sm:$0xff]
        %v2252 = vld [vmem:[%s10 + $0x1c8] sm:$0xff]
        %v2253 = vld [vmem:[%s10 + $0x1d0] sm:$0xff]
        %v2254 = vld [vmem:[%s10 + $0x1d8] sm:$0xff]
        %v2255 = vld [vmem:[%s10 + $0x1e0] sm:$0xff]
        %v2256 = vld [vmem:[%s10 + $0x1e8] sm:$0xff]
        %v2257 = vld [vmem:[%s10 + $0x1f0] sm:$0xff]
        %v2258 = vld [vmem:[%s10 + $0x1f8] sm:$0xff]
        %2260 = vset.pattern.permute.xlu0 0
        %2261 = vperm.xlu0 %2260, %v2227
        %v2262 = vpop.permute.xlu0 %2261
        %2265 = vset.pattern.permute.xlu0 0
        %2266 = vperm.xlu0 %2265, %v2228
        %v2267 = vpop.permute.xlu0 %2266
        %2270 = vset.pattern.permute.xlu0 0
        %2271 = vperm.xlu0 %2270, %v2229
        %v2272 = vpop.permute.xlu0 %2271
        %2275 = vset.pattern.permute.xlu0 0
        %2276 = vperm.xlu0 %2275, %v2230
        %v2277 = vpop.permute.xlu0 %2276
        %2280 = vset.pattern.permute.xlu0 0
        %2281 = vperm.xlu0 %2280, %v2231
        %v2282 = vpop.permute.xlu0 %2281
        %2285 = vset.pattern.permute.xlu0 0
        %2286 = vperm.xlu0 %2285, %v2232
        %v2287 = vpop.permute.xlu0 %2286
        %2290 = vset.pattern.permute.xlu0 0
        %2291 = vperm.xlu0 %2290, %v2233
        %v2292 = vpop.permute.xlu0 %2291
        %2295 = vset.pattern.permute.xlu0 0
        %2296 = vperm.xlu0 %2295, %v2234
        %v2297 = vpop.permute.xlu0 %2296
        %2300 = vset.pattern.permute.xlu0 0
        %2301 = vperm.xlu0 %2300, %v2235
        %v2302 = vpop.permute.xlu0 %2301
        %2305 = vset.pattern.permute.xlu0 0
        %2306 = vperm.xlu0 %2305, %v2236
        %v2307 = vpop.permute.xlu0 %2306
        %2310 = vset.pattern.permute.xlu0 0
        %2311 = vperm.xlu0 %2310, %v2237
        %v2312 = vpop.permute.xlu0 %2311
        %2315 = vset.pattern.permute.xlu0 0
        %2316 = vperm.xlu0 %2315, %v2238
        %v2317 = vpop.permute.xlu0 %2316
        %2320 = vset.pattern.permute.xlu0 0
        %2321 = vperm.xlu0 %2320, %v2239
        %v2322 = vpop.permute.xlu0 %2321
        %2325 = vset.pattern.permute.xlu0 0
        %2326 = vperm.xlu0 %2325, %v2240
        %v2327 = vpop.permute.xlu0 %2326
        %2330 = vset.pattern.permute.xlu0 0
        %2331 = vperm.xlu0 %2330, %v2241
        %v2332 = vpop.permute.xlu0 %2331
        %2335 = vset.pattern.permute.xlu0 0
        %2336 = vperm.xlu0 %2335, %v2242
        %v2337 = vpop.permute.xlu0 %2336
        %2340 = vset.pattern.permute.xlu0 0
        %2341 = vperm.xlu0 %2340, %v2243
        %v2342 = vpop.permute.xlu0 %2341
        %2345 = vset.pattern.permute.xlu0 0
        %2346 = vperm.xlu0 %2345, %v2244
        %v2347 = vpop.permute.xlu0 %2346
        %2350 = vset.pattern.permute.xlu0 0
        %2351 = vperm.xlu0 %2350, %v2245
        %v2352 = vpop.permute.xlu0 %2351
        %2355 = vset.pattern.permute.xlu0 0
        %2356 = vperm.xlu0 %2355, %v2246
        %v2357 = vpop.permute.xlu0 %2356
        %2360 = vset.pattern.permute.xlu0 0
        %2361 = vperm.xlu0 %2360, %v2247
        %v2362 = vpop.permute.xlu0 %2361
        %2365 = vset.pattern.permute.xlu0 0
        %2366 = vperm.xlu0 %2365, %v2248
        %v2367 = vpop.permute.xlu0 %2366
        %2370 = vset.pattern.permute.xlu0 0
        %2371 = vperm.xlu0 %2370, %v2249
        %v2372 = vpop.permute.xlu0 %2371
        %2375 = vset.pattern.permute.xlu0 0
        %2376 = vperm.xlu0 %2375, %v2250
        %v2377 = vpop.permute.xlu0 %2376
        %2380 = vset.pattern.permute.xlu0 0
        %2381 = vperm.xlu0 %2380, %v2251
        %v2382 = vpop.permute.xlu0 %2381
        %2385 = vset.pattern.permute.xlu0 0
        %2386 = vperm.xlu0 %2385, %v2252
        %v2387 = vpop.permute.xlu0 %2386
        %2390 = vset.pattern.permute.xlu0 0
        %2391 = vperm.xlu0 %2390, %v2253
        %v2392 = vpop.permute.xlu0 %2391
        %2395 = vset.pattern.permute.xlu0 0
        %2396 = vperm.xlu0 %2395, %v2254
        %v2397 = vpop.permute.xlu0 %2396
        %2400 = vset.pattern.permute.xlu0 0
        %2401 = vperm.xlu0 %2400, %v2255
        %v2402 = vpop.permute.xlu0 %2401
        %2405 = vset.pattern.permute.xlu0 0
        %2406 = vperm.xlu0 %2405, %v2256
        %v2407 = vpop.permute.xlu0 %2406
        %2410 = vset.pattern.permute.xlu0 0
        %2411 = vperm.xlu0 %2410, %v2257
        %v2412 = vpop.permute.xlu0 %2411
        %2415 = vset.pattern.permute.xlu0 0
        %2416 = vperm.xlu0 %2415, %v2258
        %v2417 = vpop.permute.xlu0 %2416
        %2419 = vmatprep.subr.mxu0 %v1539
        %2420 = vmatpush1.msra.mxu0 %v1538
        %2421 = vmatprep.subr.mxu0 %v1541
        %2422 = vmatpush1.msra.mxu0 %v1540
        %2423 = vmatprep.subr.mxu0 %v1543
        %2424 = vmatpush1.msra.mxu0 %v1542
        %2425 = vmatprep.subr.mxu0 %v1545
        %2426 = vmatpush1.msra.mxu0 %v1544
        %2427 = vmatprep.subr.mxu0 %v1547
        %2428 = vmatpush1.msra.mxu0 %v1546
        %2429 = vmatprep.subr.mxu0 %v1549
        %2430 = vmatpush1.msra.mxu0 %v1548
        %2431 = vmatprep.subr.mxu0 %v1551
        %2432 = vmatpush1.msra.mxu0 %v1550
        %2433 = vmatprep.subr.mxu0 %v1553
        %2434 = vmatpush1.msra.mxu0 %v1552
        %2435 = vmatprep.subr.mxu0 %v1555
        %2436 = vmatpush1.msra.mxu0 %v1554
        %2437 = vmatprep.subr.mxu0 %v1557
        %2438 = vmatpush1.msra.mxu0 %v1556
        %2439 = vmatprep.subr.mxu0 %v1559
        %2440 = vmatpush1.msra.mxu0 %v1558
        %2441 = vmatprep.subr.mxu0 %v1561
        %2442 = vmatpush1.msra.mxu0 %v1560
        %2443 = vmatprep.subr.mxu0 %v1563
        %2444 = vmatpush1.msra.mxu0 %v1562
        %2445 = vmatprep.subr.mxu0 %v1565
        %2446 = vmatpush1.msra.mxu0 %v1564
        %2447 = vmatprep.subr.mxu0 %v1567
        %2448 = vmatpush1.msra.mxu0 %v1566
        %2449 = vmatprep.subr.mxu0 %v1569
        %2450 = vmatpush1.msra.mxu0 %v1568
        %2451 = vmatprep.subr.mxu0 0.0
        %2452 = vmatpush1.msra.mxu0 0.0
        %2453 = vmatprep.subr.mxu0 0.0
        %2454 = vmatpush1.msra.mxu0 0.0
        %2455 = vmatprep.subr.mxu0 0.0
        %2456 = vmatpush1.msra.mxu0 0.0
        %2457 = vmatprep.subr.mxu0 0.0
        %2458 = vmatpush1.msra.mxu0 0.0
        %2459 = vmatprep.subr.mxu0 0.0
        %2460 = vmatpush1.msra.mxu0 0.0
        %2461 = vmatprep.subr.mxu0 0.0
        %2462 = vmatpush1.msra.mxu0 0.0
        %2463 = vmatprep.subr.mxu0 0.0
        %2464 = vmatpush1.msra.mxu0 0.0
        %2465 = vmatprep.subr.mxu0 0.0
        %2466 = vmatpush1.msra.mxu0 0.0
        %2467 = vmatprep.subr.mxu0 0.0
        %2468 = vmatpush1.msra.mxu0 0.0
        %2469 = vmatprep.subr.mxu0 0.0
        %2470 = vmatpush1.msra.mxu0 0.0
        %2471 = vmatprep.subr.mxu0 0.0
        %2472 = vmatpush1.msra.mxu0 0.0
        %2473 = vmatprep.subr.mxu0 0.0
        %2474 = vmatpush1.msra.mxu0 0.0
        %2475 = vmatprep.subr.mxu0 0.0
        %2476 = vmatpush1.msra.mxu0 0.0
        %2477 = vmatprep.subr.mxu0 0.0
        %2478 = vmatpush1.msra.mxu0 0.0
        %2479 = vmatprep.subr.mxu0 0.0
        %2480 = vmatpush1.msra.mxu0 0.0
        %2481 = vmatprep.subr.mxu0 0.0
        %2482 = vmatpush1.msra.mxu0 0.0
        %2483 = vmatprep.mubr.f32.mxu0 0.0
        %2484 = vmatmul.mubr.f32.gmra.mrb[0].mxu0 %v2195
        %v2485 = vpop.f32.mrb[0].mxu0
        %v2486 = vadd.f32 %v2262, %v2485
        %v2487 = vpop.f32.mrb[0].mxu0
        %v2488 = vadd.f32 %v2262, %v2487
        %2489 = vmatprep.mubr.f32.mxu0 0.0
        %2490 = vmatmul.mubr.f32.gmra.mrb[0].mxu0 %v2196
        %v2491 = vpop.f32.mrb[0].mxu0
        %v2492 = vadd.f32 %v2267, %v2491
        %v2493 = vpop.f32.mrb[0].mxu0
        %v2494 = vadd.f32 %v2267, %v2493
        %2495 = vmatprep.mubr.f32.mxu0 0.0
        %2496 = vmatmul.mubr.f32.gmra.mrb[0].mxu0 %v2197
        %v2497 = vpop.f32.mrb[0].mxu0
        %v2498 = vadd.f32 %v2272, %v2497
        %v2499 = vpop.f32.mrb[0].mxu0
        %v2500 = vadd.f32 %v2272, %v2499
        %2501 = vmatprep.mubr.f32.mxu0 0.0
        %2502 = vmatmul.mubr.f32.gmra.mrb[0].mxu0 %v2198
        %v2503 = vpop.f32.mrb[0].mxu0
        %v2504 = vadd.f32 %v2277, %v2503
        %v2505 = vpop.f32.mrb[0].mxu0
        %v2506 = vadd.f32 %v2277, %v2505
        %2507 = vmatprep.mubr.f32.mxu0 0.0
        %2508 = vmatmul.mubr.f32.gmra.mrb[0].mxu0 %v2199
        %v2509 = vpop.f32.mrb[0].mxu0
        %v2510 = vadd.f32 %v2282, %v2509
        %v2511 = vpop.f32.mrb[0].mxu0
        %v2512 = vadd.f32 %v2282, %v2511
        %2513 = vmatprep.mubr.f32.mxu0 0.0
        %2514 = vmatmul.mubr.f32.gmra.mrb[0].mxu0 %v2200
        %v2515 = vpop.f32.mrb[0].mxu0
        %v2516 = vadd.f32 %v2287, %v2515
        %v2517 = vpop.f32.mrb[0].mxu0
        %v2518 = vadd.f32 %v2287, %v2517
        %2519 = vmatprep.mubr.f32.mxu0 0.0
        %2520 = vmatmul.mubr.f32.gmra.mrb[0].mxu0 %v2201
        %v2521 = vpop.f32.mrb[0].mxu0
        %v2522 = vadd.f32 %v2292, %v2521
        %v2523 = vpop.f32.mrb[0].mxu0
        %v2524 = vadd.f32 %v2292, %v2523
        %2525 = vmatprep.mubr.f32.mxu0 0.0
        %2526 = vmatmul.mubr.f32.gmra.mrb[0].mxu0 %v2202
        %v2527 = vpop.f32.mrb[0].mxu0
        %v2528 = vadd.f32 %v2297, %v2527
        %v2529 = vpop.f32.mrb[0].mxu0
        %v2530 = vadd.f32 %v2297, %v2529
        %2531 = vmatprep.mubr.f32.mxu0 0.0
        %2532 = vmatmul.mubr.f32.gmra.mrb[0].mxu0 %v2203
        %v2533 = vpop.f32.mrb[0].mxu0
        %v2534 = vadd.f32 %v2302, %v2533
        %v2535 = vpop.f32.mrb[0].mxu0
        %v2536 = vadd.f32 %v2302, %v2535
        %2537 = vmatprep.mubr.f32.mxu0 0.0
        %2538 = vmatmul.mubr.f32.gmra.mrb[0].mxu0 %v2204
        %v2539 = vpop.f32.mrb[0].mxu0
        %v2540 = vadd.f32 %v2307, %v2539
        %v2541 = vpop.f32.mrb[0].mxu0
        %v2542 = vadd.f32 %v2307, %v2541
        %2543 = vmatprep.mubr.f32.mxu0 0.0
        %2544 = vmatmul.mubr.f32.gmra.mrb[0].mxu0 %v2205
        %v2545 = vpop.f32.mrb[0].mxu0
        %v2546 = vadd.f32 %v2312, %v2545
        %v2547 = vpop.f32.mrb[0].mxu0
        %v2548 = vadd.f32 %v2312, %v2547
        %2549 = vmatprep.mubr.f32.mxu0 0.0
        %2550 = vmatmul.mubr.f32.gmra.mrb[0].mxu0 %v2206
        %v2551 = vpop.f32.mrb[0].mxu0
        %v2552 = vadd.f32 %v2317, %v2551
        %v2553 = vpop.f32.mrb[0].mxu0
        %v2554 = vadd.f32 %v2317, %v2553
        %2555 = vmatprep.mubr.f32.mxu0 0.0
        %2556 = vmatmul.mubr.f32.gmra.mrb[0].mxu0 %v2207
        %v2557 = vpop.f32.mrb[0].mxu0
        %v2558 = vadd.f32 %v2322, %v2557
        %v2559 = vpop.f32.mrb[0].mxu0
        %v2560 = vadd.f32 %v2322, %v2559
        %2561 = vmatprep.mubr.f32.mxu0 0.0
        %2562 = vmatmul.mubr.f32.gmra.mrb[0].mxu0 %v2208
        %v2563 = vpop.f32.mrb[0].mxu0
        %v2564 = vadd.f32 %v2327, %v2563
        %v2565 = vpop.f32.mrb[0].mxu0
        %v2566 = vadd.f32 %v2327, %v2565
        %2567 = vmatprep.mubr.f32.mxu0 0.0
        %2568 = vmatmul.mubr.f32.gmra.mrb[0].mxu0 %v2209
        %v2569 = vpop.f32.mrb[0].mxu0
        %v2570 = vadd.f32 %v2332, %v2569
        %v2571 = vpop.f32.mrb[0].mxu0
        %v2572 = vadd.f32 %v2332, %v2571
        %2573 = vmatprep.mubr.f32.mxu0 0.0
        %2574 = vmatmul.mubr.f32.gmra.mrb[0].mxu0 %v2210
        %v2575 = vpop.f32.mrb[0].mxu0
        %v2576 = vadd.f32 %v2337, %v2575
        %v2577 = vpop.f32.mrb[0].mxu0
        %v2578 = vadd.f32 %v2337, %v2577
        %2579 = vmatprep.mubr.f32.mxu0 0.0
        %2580 = vmatmul.mubr.f32.gmra.mrb[0].mxu0 %v2211
        %v2581 = vpop.f32.mrb[0].mxu0
        %v2582 = vadd.f32 %v2342, %v2581
        %v2583 = vpop.f32.mrb[0].mxu0
        %v2584 = vadd.f32 %v2342, %v2583
        %2585 = vmatprep.mubr.f32.mxu0 0.0
        %2586 = vmatmul.mubr.f32.gmra.mrb[0].mxu0 %v2212
        %v2587 = vpop.f32.mrb[0].mxu0
        %v2588 = vadd.f32 %v2347, %v2587
        %v2589 = vpop.f32.mrb[0].mxu0
        %v2590 = vadd.f32 %v2347, %v2589
        %2591 = vmatprep.mubr.f32.mxu0 0.0
        %2592 = vmatmul.mubr.f32.gmra.mrb[0].mxu0 %v2213
        %v2593 = vpop.f32.mrb[0].mxu0
        %v2594 = vadd.f32 %v2352, %v2593
        %v2595 = vpop.f32.mrb[0].mxu0
        %v2596 = vadd.f32 %v2352, %v2595
        %2597 = vmatprep.mubr.f32.mxu0 0.0
        %2598 = vmatmul.mubr.f32.gmra.mrb[0].mxu0 %v2214
        %v2599 = vpop.f32.mrb[0].mxu0
        %v2600 = vadd.f32 %v2357, %v2599
        %v2601 = vpop.f32.mrb[0].mxu0
        %v2602 = vadd.f32 %v2357, %v2601
        %2603 = vmatprep.mubr.f32.mxu0 0.0
        %2604 = vmatmul.mubr.f32.gmra.mrb[0].mxu0 %v2215
        %v2605 = vpop.f32.mrb[0].mxu0
        %v2606 = vadd.f32 %v2362, %v2605
        %v2607 = vpop.f32.mrb[0].mxu0
        %v2608 = vadd.f32 %v2362, %v2607
        %2609 = vmatprep.mubr.f32.mxu0 0.0
        %2610 = vmatmul.mubr.f32.gmra.mrb[0].mxu0 %v2216
        %v2611 = vpop.f32.mrb[0].mxu0
        %v2612 = vadd.f32 %v2367, %v2611
        %v2613 = vpop.f32.mrb[0].mxu0
        %v2614 = vadd.f32 %v2367, %v2613
        %2615 = vmatprep.mubr.f32.mxu0 0.0
        %2616 = vmatmul.mubr.f32.gmra.mrb[0].mxu0 %v2217
        %v2617 = vpop.f32.mrb[0].mxu0
        %v2618 = vadd.f32 %v2372, %v2617
        %v2619 = vpop.f32.mrb[0].mxu0
        %v2620 = vadd.f32 %v2372, %v2619
        %2621 = vmatprep.mubr.f32.mxu0 0.0
        %2622 = vmatmul.mubr.f32.gmra.mrb[0].mxu0 %v2218
        %v2623 = vpop.f32.mrb[0].mxu0
        %v2624 = vadd.f32 %v2377, %v2623
        %v2625 = vpop.f32.mrb[0].mxu0
        %v2626 = vadd.f32 %v2377, %v2625
        %2627 = vmatprep.mubr.f32.mxu0 0.0
        %2628 = vmatmul.mubr.f32.gmra.mrb[0].mxu0 %v2219
        %v2629 = vpop.f32.mrb[0].mxu0
        %v2630 = vadd.f32 %v2382, %v2629
        %v2631 = vpop.f32.mrb[0].mxu0
        %v2632 = vadd.f32 %v2382, %v2631
        %2633 = vmatprep.mubr.f32.mxu0 0.0
        %2634 = vmatmul.mubr.f32.gmra.mrb[0].mxu0 %v2220
        %v2635 = vpop.f32.mrb[0].mxu0
        %v2636 = vadd.f32 %v2387, %v2635
        %v2637 = vpop.f32.mrb[0].mxu0
        %v2638 = vadd.f32 %v2387, %v2637
        %2639 = vmatprep.mubr.f32.mxu0 0.0
        %2640 = vmatmul.mubr.f32.gmra.mrb[0].mxu0 %v2221
        %v2641 = vpop.f32.mrb[0].mxu0
        %v2642 = vadd.f32 %v2392, %v2641
        %v2643 = vpop.f32.mrb[0].mxu0
        %v2644 = vadd.f32 %v2392, %v2643
        %2645 = vmatprep.mubr.f32.mxu0 0.0
        %2646 = vmatmul.mubr.f32.gmra.mrb[0].mxu0 %v2222
        %v2647 = vpop.f32.mrb[0].mxu0
        %v2648 = vadd.f32 %v2397, %v2647
        %v2649 = vpop.f32.mrb[0].mxu0
        %v2650 = vadd.f32 %v2397, %v2649
        %2651 = vmatprep.mubr.f32.mxu0 0.0
        %2652 = vmatmul.mubr.f32.gmra.mrb[0].mxu0 %v2223
        %v2653 = vpop.f32.mrb[0].mxu0
        %v2654 = vadd.f32 %v2402, %v2653
        %v2655 = vpop.f32.mrb[0].mxu0
        %v2656 = vadd.f32 %v2402, %v2655
        %2657 = vmatprep.mubr.f32.mxu0 0.0
        %2658 = vmatmul.mubr.f32.gmra.mrb[0].mxu0 %v2224
        %v2659 = vpop.f32.mrb[0].mxu0
        %v2660 = vadd.f32 %v2407, %v2659
        %v2661 = vpop.f32.mrb[0].mxu0
        %v2662 = vadd.f32 %v2407, %v2661
        %2663 = vmatprep.mubr.f32.mxu0 0.0
        %2664 = vmatmul.mubr.f32.gmra.mrb[0].mxu0 %v2225
        %v2665 = vpop.f32.mrb[0].mxu0
        %v2666 = vadd.f32 %v2412, %v2665
        %v2667 = vpop.f32.mrb[0].mxu0
        %v2668 = vadd.f32 %v2412, %v2667
        %2669 = vmatprep.mubr.f32.mxu0 0.0
        %2670 = vmatmul.mubr.f32.gmra.mrb[0].mxu0 %v2226
        %v2671 = vpop.f32.mrb[0].mxu0
        %v2672 = vadd.f32 %v2417, %v2671
        %v2673 = vpop.f32.mrb[0].mxu0
        %v2674 = vadd.f32 %v2417, %v2673
        %2675 = vdwg.mxu0
        %v2676 = vmax.f32 %v2486, 0.0
        %v2677 = vmax.f32 %v2488, 0.0
        %v2678 = vmax.f32 %v2492, 0.0
        %v2679 = vmax.f32 %v2494, 0.0
        %v2680 = vmax.f32 %v2498, 0.0
        %v2681 = vmax.f32 %v2500, 0.0
        %v2682 = vmax.f32 %v2504, 0.0
        %v2683 = vmax.f32 %v2506, 0.0
        %v2684 = vmax.f32 %v2510, 0.0
        %v2685 = vmax.f32 %v2512, 0.0
        %v2686 = vmax.f32 %v2516, 0.0
        %v2687 = vmax.f32 %v2518, 0.0
        %v2688 = vmax.f32 %v2522, 0.0
        %v2689 = vmax.f32 %v2524, 0.0
        %v2690 = vmax.f32 %v2528, 0.0
        %v2691 = vmax.f32 %v2530, 0.0
        %v2692 = vmax.f32 %v2534, 0.0
        %v2693 = vmax.f32 %v2536, 0.0
        %v2694 = vmax.f32 %v2540, 0.0
        %v2695 = vmax.f32 %v2542, 0.0
        %v2696 = vmax.f32 %v2546, 0.0
        %v2697 = vmax.f32 %v2548, 0.0
        %v2698 = vmax.f32 %v2552, 0.0
        %v2699 = vmax.f32 %v2554, 0.0
        %v2700 = vmax.f32 %v2558, 0.0
        %v2701 = vmax.f32 %v2560, 0.0
        %v2702 = vmax.f32 %v2564, 0.0
        %v2703 = vmax.f32 %v2566, 0.0
        %v2704 = vmax.f32 %v2570, 0.0
        %v2705 = vmax.f32 %v2572, 0.0
        %v2706 = vmax.f32 %v2576, 0.0
        %v2707 = vmax.f32 %v2578, 0.0
        %v2708 = vmax.f32 %v2582, 0.0
        %v2709 = vmax.f32 %v2584, 0.0
        %v2710 = vmax.f32 %v2588, 0.0
        %v2711 = vmax.f32 %v2590, 0.0
        %v2712 = vmax.f32 %v2594, 0.0
        %v2713 = vmax.f32 %v2596, 0.0
        %v2714 = vmax.f32 %v2600, 0.0
        %v2715 = vmax.f32 %v2602, 0.0
        %v2716 = vmax.f32 %v2606, 0.0
        %v2717 = vmax.f32 %v2608, 0.0
        %v2718 = vmax.f32 %v2612, 0.0
        %v2719 = vmax.f32 %v2614, 0.0
        %v2720 = vmax.f32 %v2618, 0.0
        %v2721 = vmax.f32 %v2620, 0.0
        %v2722 = vmax.f32 %v2624, 0.0
        %v2723 = vmax.f32 %v2626, 0.0
        %v2724 = vmax.f32 %v2630, 0.0
        %v2725 = vmax.f32 %v2632, 0.0
        %v2726 = vmax.f32 %v2636, 0.0
        %v2727 = vmax.f32 %v2638, 0.0
        %v2728 = vmax.f32 %v2642, 0.0
        %v2729 = vmax.f32 %v2644, 0.0
        %v2730 = vmax.f32 %v2648, 0.0
        %v2731 = vmax.f32 %v2650, 0.0
        %v2732 = vmax.f32 %v2654, 0.0
        %v2733 = vmax.f32 %v2656, 0.0
        %v2734 = vmax.f32 %v2660, 0.0
        %v2735 = vmax.f32 %v2662, 0.0
        %v2736 = vmax.f32 %v2666, 0.0
        %v2737 = vmax.f32 %v2668, 0.0
        %v2738 = vmax.f32 %v2672, 0.0
        %v2739 = vmax.f32 %v2674, 0.0
        %2740 = vst [vmem:[%s468 + $0x200] sm:$0xff] %v2676
        %2741 = vst [vmem:[%s468 + $0x208] sm:$0xff] %v2677
        %2742 = vst [vmem:[%s468 + $0x210] sm:$0xff] %v2678
        %2743 = vst [vmem:[%s468 + $0x218] sm:$0xff] %v2679
        %2744 = vst [vmem:[%s468 + $0x220] sm:$0xff] %v2680
        %2745 = vst [vmem:[%s468 + $0x228] sm:$0xff] %v2681
        %2746 = vst [vmem:[%s468 + $0x230] sm:$0xff] %v2682
        %2747 = vst [vmem:[%s468 + $0x238] sm:$0xff] %v2683
        %2748 = vst [vmem:[%s468 + $0x240] sm:$0xff] %v2684
        %2749 = vst [vmem:[%s468 + $0x248] sm:$0xff] %v2685
        %2750 = vst [vmem:[%s468 + $0x250] sm:$0xff] %v2686
        %2751 = vst [vmem:[%s468 + $0x258] sm:$0xff] %v2687
        %2752 = vst [vmem:[%s468 + $0x260] sm:$0xff] %v2688
        %2753 = vst [vmem:[%s468 + $0x268] sm:$0xff] %v2689
        %2754 = vst [vmem:[%s468 + $0x270] sm:$0xff] %v2690
        %2755 = vst [vmem:[%s468 + $0x278] sm:$0xff] %v2691
        %2756 = vst [vmem:[%s468 + $0x280] sm:$0xff] %v2692
        %2757 = vst [vmem:[%s468 + $0x288] sm:$0xff] %v2693
        %2758 = vst [vmem:[%s468 + $0x290] sm:$0xff] %v2694
        %2759 = vst [vmem:[%s468 + $0x298] sm:$0xff] %v2695
        %2760 = vst [vmem:[%s468 + $0x2a0] sm:$0xff] %v2696
        %2761 = vst [vmem:[%s468 + $0x2a8] sm:$0xff] %v2697
        %2762 = vst [vmem:[%s468 + $0x2b0] sm:$0xff] %v2698
        %2763 = vst [vmem:[%s468 + $0x2b8] sm:$0xff] %v2699
        %2764 = vst [vmem:[%s468 + $0x2c0] sm:$0xff] %v2700
        %2765 = vst [vmem:[%s468 + $0x2c8] sm:$0xff] %v2701
        %2766 = vst [vmem:[%s468 + $0x2d0] sm:$0xff] %v2702
        %2767 = vst [vmem:[%s468 + $0x2d8] sm:$0xff] %v2703
        %2768 = vst [vmem:[%s468 + $0x2e0] sm:$0xff] %v2704
        %2769 = vst [vmem:[%s468 + $0x2e8] sm:$0xff] %v2705
        %2770 = vst [vmem:[%s468 + $0x2f0] sm:$0xff] %v2706
        %2771 = vst [vmem:[%s468 + $0x2f8] sm:$0xff] %v2707
        %2772 = vst [vmem:[%s468 + $0x300] sm:$0xff] %v2708
        %2773 = vst [vmem:[%s468 + $0x308] sm:$0xff] %v2709
        %2774 = vst [vmem:[%s468 + $0x310] sm:$0xff] %v2710
        %2775 = vst [vmem:[%s468 + $0x318] sm:$0xff] %v2711
        %2776 = vst [vmem:[%s468 + $0x320] sm:$0xff] %v2712
        %2777 = vst [vmem:[%s468 + $0x328] sm:$0xff] %v2713
        %2778 = vst [vmem:[%s468 + $0x330] sm:$0xff] %v2714
        %2779 = vst [vmem:[%s468 + $0x338] sm:$0xff] %v2715
        %2780 = vst [vmem:[%s468 + $0x340] sm:$0xff] %v2716
        %2781 = vst [vmem:[%s468 + $0x348] sm:$0xff] %v2717
        %2782 = vst [vmem:[%s468 + $0x350] sm:$0xff] %v2718
        %2783 = vst [vmem:[%s468 + $0x358] sm:$0xff] %v2719
        %2784 = vst [vmem:[%s468 + $0x360] sm:$0xff] %v2720
        %2785 = vst [vmem:[%s468 + $0x368] sm:$0xff] %v2721
        %2786 = vst [vmem:[%s468 + $0x370] sm:$0xff] %v2722
        %2787 = vst [vmem:[%s468 + $0x378] sm:$0xff] %v2723
        %2788 = vst [vmem:[%s468 + $0x380] sm:$0xff] %v2724
        %2789 = vst [vmem:[%s468 + $0x388] sm:$0xff] %v2725
        %2790 = vst [vmem:[%s468 + $0x390] sm:$0xff] %v2726
        %2791 = vst [vmem:[%s468 + $0x398] sm:$0xff] %v2727
        %2792 = vst [vmem:[%s468 + $0x3a0] sm:$0xff] %v2728
        %2793 = vst [vmem:[%s468 + $0x3a8] sm:$0xff] %v2729
        %2794 = vst [vmem:[%s468 + $0x3b0] sm:$0xff] %v2730
        %2795 = vst [vmem:[%s468 + $0x3b8] sm:$0xff] %v2731
        %2796 = vst [vmem:[%s468 + $0x3c0] sm:$0xff] %v2732
        %2797 = vst [vmem:[%s468 + $0x3c8] sm:$0xff] %v2733
        %2798 = vst [vmem:[%s468 + $0x3d0] sm:$0xff] %v2734
        %2799 = vst [vmem:[%s468 + $0x3d8] sm:$0xff] %v2735
        %2800 = vst [vmem:[%s468 + $0x3e0] sm:$0xff] %v2736
        %2801 = vst [vmem:[%s468 + $0x3e8] sm:$0xff] %v2737
        %2802 = vst [vmem:[%s468 + $0x3f0] sm:$0xff] %v2738
        %2803 = vst [vmem:[%s468 + $0x3f8] sm:$0xff] %v2739
        %v2804 = vld [vmem:[#allocation6 + $0x200] sm:$0xff]
        %v2805 = vld [vmem:[#allocation6 + $0x208] sm:$0xff]
        %v2806 = vld [vmem:[#allocation6 + $0x210] sm:$0xff]
        %v2807 = vld [vmem:[#allocation6 + $0x218] sm:$0xff]
        %v2808 = vld [vmem:[#allocation6 + $0x220] sm:$0xff]
        %v2809 = vld [vmem:[#allocation6 + $0x228] sm:$0xff]
        %v2810 = vld [vmem:[#allocation6 + $0x230] sm:$0xff]
        %v2811 = vld [vmem:[#allocation6 + $0x238] sm:$0xff]
        %v2812 = vld [vmem:[#allocation6 + $0x240] sm:$0xff]
        %v2813 = vld [vmem:[#allocation6 + $0x248] sm:$0xff]
        %v2814 = vld [vmem:[#allocation6 + $0x250] sm:$0xff]
        %v2815 = vld [vmem:[#allocation6 + $0x258] sm:$0xff]
        %v2816 = vld [vmem:[#allocation6 + $0x260] sm:$0xff]
        %v2817 = vld [vmem:[#allocation6 + $0x268] sm:$0xff]
        %v2818 = vld [vmem:[#allocation6 + $0x270] sm:$0xff]
        %v2819 = vld [vmem:[#allocation6 + $0x278] sm:$0xff]
        %v2820 = vld [vmem:[#allocation6 + $0x280] sm:$0xff]
        %v2821 = vld [vmem:[#allocation6 + $0x288] sm:$0xff]
        %v2822 = vld [vmem:[#allocation6 + $0x290] sm:$0xff]
        %v2823 = vld [vmem:[#allocation6 + $0x298] sm:$0xff]
        %v2824 = vld [vmem:[#allocation6 + $0x2a0] sm:$0xff]
        %v2825 = vld [vmem:[#allocation6 + $0x2a8] sm:$0xff]
        %v2826 = vld [vmem:[#allocation6 + $0x2b0] sm:$0xff]
        %v2827 = vld [vmem:[#allocation6 + $0x2b8] sm:$0xff]
        %v2828 = vld [vmem:[#allocation6 + $0x2c0] sm:$0xff]
        %v2829 = vld [vmem:[#allocation6 + $0x2c8] sm:$0xff]
        %v2830 = vld [vmem:[#allocation6 + $0x2d0] sm:$0xff]
        %v2831 = vld [vmem:[#allocation6 + $0x2d8] sm:$0xff]
        %v2832 = vld [vmem:[#allocation6 + $0x2e0] sm:$0xff]
        %v2833 = vld [vmem:[#allocation6 + $0x2e8] sm:$0xff]
        %v2834 = vld [vmem:[#allocation6 + $0x2f0] sm:$0xff]
        %v2835 = vld [vmem:[#allocation6 + $0x2f8] sm:$0xff]
        %v2836 = vld [vmem:[%s10 + $0x200] sm:$0xff]
        %v2837 = vld [vmem:[%s10 + $0x208] sm:$0xff]
        %v2838 = vld [vmem:[%s10 + $0x210] sm:$0xff]
        %v2839 = vld [vmem:[%s10 + $0x218] sm:$0xff]
        %v2840 = vld [vmem:[%s10 + $0x220] sm:$0xff]
        %v2841 = vld [vmem:[%s10 + $0x228] sm:$0xff]
        %v2842 = vld [vmem:[%s10 + $0x230] sm:$0xff]
        %v2843 = vld [vmem:[%s10 + $0x238] sm:$0xff]
        %v2844 = vld [vmem:[%s10 + $0x240] sm:$0xff]
        %v2845 = vld [vmem:[%s10 + $0x248] sm:$0xff]
        %v2846 = vld [vmem:[%s10 + $0x250] sm:$0xff]
        %v2847 = vld [vmem:[%s10 + $0x258] sm:$0xff]
        %v2848 = vld [vmem:[%s10 + $0x260] sm:$0xff]
        %v2849 = vld [vmem:[%s10 + $0x268] sm:$0xff]
        %v2850 = vld [vmem:[%s10 + $0x270] sm:$0xff]
        %v2851 = vld [vmem:[%s10 + $0x278] sm:$0xff]
        %v2852 = vld [vmem:[%s10 + $0x280] sm:$0xff]
        %v2853 = vld [vmem:[%s10 + $0x288] sm:$0xff]
        %v2854 = vld [vmem:[%s10 + $0x290] sm:$0xff]
        %v2855 = vld [vmem:[%s10 + $0x298] sm:$0xff]
        %v2856 = vld [vmem:[%s10 + $0x2a0] sm:$0xff]
        %v2857 = vld [vmem:[%s10 + $0x2a8] sm:$0xff]
        %v2858 = vld [vmem:[%s10 + $0x2b0] sm:$0xff]
        %v2859 = vld [vmem:[%s10 + $0x2b8] sm:$0xff]
        %v2860 = vld [vmem:[%s10 + $0x2c0] sm:$0xff]
        %v2861 = vld [vmem:[%s10 + $0x2c8] sm:$0xff]
        %v2862 = vld [vmem:[%s10 + $0x2d0] sm:$0xff]
        %v2863 = vld [vmem:[%s10 + $0x2d8] sm:$0xff]
        %v2864 = vld [vmem:[%s10 + $0x2e0] sm:$0xff]
        %v2865 = vld [vmem:[%s10 + $0x2e8] sm:$0xff]
        %v2866 = vld [vmem:[%s10 + $0x2f0] sm:$0xff]
        %v2867 = vld [vmem:[%s10 + $0x2f8] sm:$0xff]
        %2869 = vset.pattern.permute.xlu0 0
        %2870 = vperm.xlu0 %2869, %v2836
        %v2871 = vpop.permute.xlu0 %2870
        %2874 = vset.pattern.permute.xlu0 0
        %2875 = vperm.xlu0 %2874, %v2837
        %v2876 = vpop.permute.xlu0 %2875
        %2879 = vset.pattern.permute.xlu0 0
        %2880 = vperm.xlu0 %2879, %v2838
        %v2881 = vpop.permute.xlu0 %2880
        %2884 = vset.pattern.permute.xlu0 0
        %2885 = vperm.xlu0 %2884, %v2839
        %v2886 = vpop.permute.xlu0 %2885
        %2889 = vset.pattern.permute.xlu0 0
        %2890 = vperm.xlu0 %2889, %v2840
        %v2891 = vpop.permute.xlu0 %2890
        %2894 = vset.pattern.permute.xlu0 0
        %2895 = vperm.xlu0 %2894, %v2841
        %v2896 = vpop.permute.xlu0 %2895
        %2899 = vset.pattern.permute.xlu0 0
        %2900 = vperm.xlu0 %2899, %v2842
        %v2901 = vpop.permute.xlu0 %2900
        %2904 = vset.pattern.permute.xlu0 0
        %2905 = vperm.xlu0 %2904, %v2843
        %v2906 = vpop.permute.xlu0 %2905
        %2909 = vset.pattern.permute.xlu0 0
        %2910 = vperm.xlu0 %2909, %v2844
        %v2911 = vpop.permute.xlu0 %2910
        %2914 = vset.pattern.permute.xlu0 0
        %2915 = vperm.xlu0 %2914, %v2845
        %v2916 = vpop.permute.xlu0 %2915
        %2919 = vset.pattern.permute.xlu0 0
        %2920 = vperm.xlu0 %2919, %v2846
        %v2921 = vpop.permute.xlu0 %2920
        %2924 = vset.pattern.permute.xlu0 0
        %2925 = vperm.xlu0 %2924, %v2847
        %v2926 = vpop.permute.xlu0 %2925
        %2929 = vset.pattern.permute.xlu0 0
        %2930 = vperm.xlu0 %2929, %v2848
        %v2931 = vpop.permute.xlu0 %2930
        %2934 = vset.pattern.permute.xlu0 0
        %2935 = vperm.xlu0 %2934, %v2849
        %v2936 = vpop.permute.xlu0 %2935
        %2939 = vset.pattern.permute.xlu0 0
        %2940 = vperm.xlu0 %2939, %v2850
        %v2941 = vpop.permute.xlu0 %2940
        %2944 = vset.pattern.permute.xlu0 0
        %2945 = vperm.xlu0 %2944, %v2851
        %v2946 = vpop.permute.xlu0 %2945
        %2949 = vset.pattern.permute.xlu0 0
        %2950 = vperm.xlu0 %2949, %v2852
        %v2951 = vpop.permute.xlu0 %2950
        %2954 = vset.pattern.permute.xlu0 0
        %2955 = vperm.xlu0 %2954, %v2853
        %v2956 = vpop.permute.xlu0 %2955
        %2959 = vset.pattern.permute.xlu0 0
        %2960 = vperm.xlu0 %2959, %v2854
        %v2961 = vpop.permute.xlu0 %2960
        %2964 = vset.pattern.permute.xlu0 0
        %2965 = vperm.xlu0 %2964, %v2855
        %v2966 = vpop.permute.xlu0 %2965
        %2969 = vset.pattern.permute.xlu0 0
        %2970 = vperm.xlu0 %2969, %v2856
        %v2971 = vpop.permute.xlu0 %2970
        %2974 = vset.pattern.permute.xlu0 0
        %2975 = vperm.xlu0 %2974, %v2857
        %v2976 = vpop.permute.xlu0 %2975
        %2979 = vset.pattern.permute.xlu0 0
        %2980 = vperm.xlu0 %2979, %v2858
        %v2981 = vpop.permute.xlu0 %2980
        %2984 = vset.pattern.permute.xlu0 0
        %2985 = vperm.xlu0 %2984, %v2859
        %v2986 = vpop.permute.xlu0 %2985
        %2989 = vset.pattern.permute.xlu0 0
        %2990 = vperm.xlu0 %2989, %v2860
        %v2991 = vpop.permute.xlu0 %2990
        %2994 = vset.pattern.permute.xlu0 0
        %2995 = vperm.xlu0 %2994, %v2861
        %v2996 = vpop.permute.xlu0 %2995
        %2999 = vset.pattern.permute.xlu0 0
        %3000 = vperm.xlu0 %2999, %v2862
        %v3001 = vpop.permute.xlu0 %3000
        %3004 = vset.pattern.permute.xlu0 0
        %3005 = vperm.xlu0 %3004, %v2863
        %v3006 = vpop.permute.xlu0 %3005
        %3009 = vset.pattern.permute.xlu0 0
        %3010 = vperm.xlu0 %3009, %v2864
        %v3011 = vpop.permute.xlu0 %3010
        %3014 = vset.pattern.permute.xlu0 0
        %3015 = vperm.xlu0 %3014, %v2865
        %v3016 = vpop.permute.xlu0 %3015
        %3019 = vset.pattern.permute.xlu0 0
        %3020 = vperm.xlu0 %3019, %v2866
        %v3021 = vpop.permute.xlu0 %3020
        %3024 = vset.pattern.permute.xlu0 0
        %3025 = vperm.xlu0 %3024, %v2867
        %v3026 = vpop.permute.xlu0 %3025
        %3028 = vmatprep.subr.mxu0 %v1539
        %3029 = vmatpush1.msra.mxu0 %v1538
        %3030 = vmatprep.subr.mxu0 %v1541
        %3031 = vmatpush1.msra.mxu0 %v1540
        %3032 = vmatprep.subr.mxu0 %v1543
        %3033 = vmatpush1.msra.mxu0 %v1542
        %3034 = vmatprep.subr.mxu0 %v1545
        %3035 = vmatpush1.msra.mxu0 %v1544
        %3036 = vmatprep.subr.mxu0 %v1547
        %3037 = vmatpush1.msra.mxu0 %v1546
        %3038 = vmatprep.subr.mxu0 %v1549
        %3039 = vmatpush1.msra.mxu0 %v1548
        %3040 = vmatprep.subr.mxu0 %v1551
        %3041 = vmatpush1.msra.mxu0 %v1550
        %3042 = vmatprep.subr.mxu0 %v1553
        %3043 = vmatpush1.msra.mxu0 %v1552
        %3044 = vmatprep.subr.mxu0 %v1555
        %3045 = vmatpush1.msra.mxu0 %v1554
        %3046 = vmatprep.subr.mxu0 %v1557
        %3047 = vmatpush1.msra.mxu0 %v1556
        %3048 = vmatprep.subr.mxu0 %v1559
        %3049 = vmatpush1.msra.mxu0 %v1558
        %3050 = vmatprep.subr.mxu0 %v1561
        %3051 = vmatpush1.msra.mxu0 %v1560
        %3052 = vmatprep.subr.mxu0 %v1563
        %3053 = vmatpush1.msra.mxu0 %v1562
        %3054 = vmatprep.subr.mxu0 %v1565
        %3055 = vmatpush1.msra.mxu0 %v1564
        %3056 = vmatprep.subr.mxu0 %v1567
        %3057 = vmatpush1.msra.mxu0 %v1566
        %3058 = vmatprep.subr.mxu0 %v1569
        %3059 = vmatpush1.msra.mxu0 %v1568
        %3060 = vmatprep.subr.mxu0 0.0
        %3061 = vmatpush1.msra.mxu0 0.0
        %3062 = vmatprep.subr.mxu0 0.0
        %3063 = vmatpush1.msra.mxu0 0.0
        %3064 = vmatprep.subr.mxu0 0.0
        %3065 = vmatpush1.msra.mxu0 0.0
        %3066 = vmatprep.subr.mxu0 0.0
        %3067 = vmatpush1.msra.mxu0 0.0
        %3068 = vmatprep.subr.mxu0 0.0
        %3069 = vmatpush1.msra.mxu0 0.0
        %3070 = vmatprep.subr.mxu0 0.0
        %3071 = vmatpush1.msra.mxu0 0.0
        %3072 = vmatprep.subr.mxu0 0.0
        %3073 = vmatpush1.msra.mxu0 0.0
        %3074 = vmatprep.subr.mxu0 0.0
        %3075 = vmatpush1.msra.mxu0 0.0
        %3076 = vmatprep.subr.mxu0 0.0
        %3077 = vmatpush1.msra.mxu0 0.0
        %3078 = vmatprep.subr.mxu0 0.0
        %3079 = vmatpush1.msra.mxu0 0.0
        %3080 = vmatprep.subr.mxu0 0.0
        %3081 = vmatpush1.msra.mxu0 0.0
        %3082 = vmatprep.subr.mxu0 0.0
        %3083 = vmatpush1.msra.mxu0 0.0
        %3084 = vmatprep.subr.mxu0 0.0
        %3085 = vmatpush1.msra.mxu0 0.0
        %3086 = vmatprep.subr.mxu0 0.0
        %3087 = vmatpush1.msra.mxu0 0.0
        %3088 = vmatprep.subr.mxu0 0.0
        %3089 = vmatpush1.msra.mxu0 0.0
        %3090 = vmatprep.subr.mxu0 0.0
        %3091 = vmatpush1.msra.mxu0 0.0
        %3092 = vmatprep.mubr.f32.mxu0 0.0
        %3093 = vmatmul.mubr.f32.gmra.mrb[0].mxu0 %v2804
        %v3094 = vpop.f32.mrb[0].mxu0
        %v3095 = vadd.f32 %v2871, %v3094
        %v3096 = vpop.f32.mrb[0].mxu0
        %v3097 = vadd.f32 %v2871, %v3096
        %3098 = vmatprep.mubr.f32.mxu0 0.0
        %3099 = vmatmul.mubr.f32.gmra.mrb[0].mxu0 %v2805
        %v3100 = vpop.f32.mrb[0].mxu0
        %v3101 = vadd.f32 %v2876, %v3100
        %v3102 = vpop.f32.mrb[0].mxu0
        %v3103 = vadd.f32 %v2876, %v3102
        %3104 = vmatprep.mubr.f32.mxu0 0.0
        %3105 = vmatmul.mubr.f32.gmra.mrb[0].mxu0 %v2806
        %v3106 = vpop.f32.mrb[0].mxu0
        %v3107 = vadd.f32 %v2881, %v3106
        %v3108 = vpop.f32.mrb[0].mxu0
        %v3109 = vadd.f32 %v2881, %v3108
        %3110 = vmatprep.mubr.f32.mxu0 0.0
        %3111 = vmatmul.mubr.f32.gmra.mrb[0].mxu0 %v2807
        %v3112 = vpop.f32.mrb[0].mxu0
        %v3113 = vadd.f32 %v2886, %v3112
        %v3114 = vpop.f32.mrb[0].mxu0
        %v3115 = vadd.f32 %v2886, %v3114
        %3116 = vmatprep.mubr.f32.mxu0 0.0
        %3117 = vmatmul.mubr.f32.gmra.mrb[0].mxu0 %v2808
        %v3118 = vpop.f32.mrb[0].mxu0
        %v3119 = vadd.f32 %v2891, %v3118
        %v3120 = vpop.f32.mrb[0].mxu0
        %v3121 = vadd.f32 %v2891, %v3120
        %3122 = vmatprep.mubr.f32.mxu0 0.0
        %3123 = vmatmul.mubr.f32.gmra.mrb[0].mxu0 %v2809
        %v3124 = vpop.f32.mrb[0].mxu0
        %v3125 = vadd.f32 %v2896, %v3124
        %v3126 = vpop.f32.mrb[0].mxu0
        %v3127 = vadd.f32 %v2896, %v3126
        %3128 = vmatprep.mubr.f32.mxu0 0.0
        %3129 = vmatmul.mubr.f32.gmra.mrb[0].mxu0 %v2810
        %v3130 = vpop.f32.mrb[0].mxu0
        %v3131 = vadd.f32 %v2901, %v3130
        %v3132 = vpop.f32.mrb[0].mxu0
        %v3133 = vadd.f32 %v2901, %v3132
        %3134 = vmatprep.mubr.f32.mxu0 0.0
        %3135 = vmatmul.mubr.f32.gmra.mrb[0].mxu0 %v2811
        %v3136 = vpop.f32.mrb[0].mxu0
        %v3137 = vadd.f32 %v2906, %v3136
        %v3138 = vpop.f32.mrb[0].mxu0
        %v3139 = vadd.f32 %v2906, %v3138
        %3140 = vmatprep.mubr.f32.mxu0 0.0
        %3141 = vmatmul.mubr.f32.gmra.mrb[0].mxu0 %v2812
        %v3142 = vpop.f32.mrb[0].mxu0
        %v3143 = vadd.f32 %v2911, %v3142
        %v3144 = vpop.f32.mrb[0].mxu0
        %v3145 = vadd.f32 %v2911, %v3144
        %3146 = vmatprep.mubr.f32.mxu0 0.0
        %3147 = vmatmul.mubr.f32.gmra.mrb[0].mxu0 %v2813
        %v3148 = vpop.f32.mrb[0].mxu0
        %v3149 = vadd.f32 %v2916, %v3148
        %v3150 = vpop.f32.mrb[0].mxu0
        %v3151 = vadd.f32 %v2916, %v3150
        %3152 = vmatprep.mubr.f32.mxu0 0.0
        %3153 = vmatmul.mubr.f32.gmra.mrb[0].mxu0 %v2814
        %v3154 = vpop.f32.mrb[0].mxu0
        %v3155 = vadd.f32 %v2921, %v3154
        %v3156 = vpop.f32.mrb[0].mxu0
        %v3157 = vadd.f32 %v2921, %v3156
        %3158 = vmatprep.mubr.f32.mxu0 0.0
        %3159 = vmatmul.mubr.f32.gmra.mrb[0].mxu0 %v2815
        %v3160 = vpop.f32.mrb[0].mxu0
        %v3161 = vadd.f32 %v2926, %v3160
        %v3162 = vpop.f32.mrb[0].mxu0
        %v3163 = vadd.f32 %v2926, %v3162
        %3164 = vmatprep.mubr.f32.mxu0 0.0
        %3165 = vmatmul.mubr.f32.gmra.mrb[0].mxu0 %v2816
        %v3166 = vpop.f32.mrb[0].mxu0
        %v3167 = vadd.f32 %v2931, %v3166
        %v3168 = vpop.f32.mrb[0].mxu0
        %v3169 = vadd.f32 %v2931, %v3168
        %3170 = vmatprep.mubr.f32.mxu0 0.0
        %3171 = vmatmul.mubr.f32.gmra.mrb[0].mxu0 %v2817
        %v3172 = vpop.f32.mrb[0].mxu0
        %v3173 = vadd.f32 %v2936, %v3172
        %v3174 = vpop.f32.mrb[0].mxu0
        %v3175 = vadd.f32 %v2936, %v3174
        %3176 = vmatprep.mubr.f32.mxu0 0.0
        %3177 = vmatmul.mubr.f32.gmra.mrb[0].mxu0 %v2818
        %v3178 = vpop.f32.mrb[0].mxu0
        %v3179 = vadd.f32 %v2941, %v3178
        %v3180 = vpop.f32.mrb[0].mxu0
        %v3181 = vadd.f32 %v2941, %v3180
        %3182 = vmatprep.mubr.f32.mxu0 0.0
        %3183 = vmatmul.mubr.f32.gmra.mrb[0].mxu0 %v2819
        %v3184 = vpop.f32.mrb[0].mxu0
        %v3185 = vadd.f32 %v2946, %v3184
        %v3186 = vpop.f32.mrb[0].mxu0
        %v3187 = vadd.f32 %v2946, %v3186
        %3188 = vmatprep.mubr.f32.mxu0 0.0
        %3189 = vmatmul.mubr.f32.gmra.mrb[0].mxu0 %v2820
        %v3190 = vpop.f32.mrb[0].mxu0
        %v3191 = vadd.f32 %v2951, %v3190
        %v3192 = vpop.f32.mrb[0].mxu0
        %v3193 = vadd.f32 %v2951, %v3192
        %3194 = vmatprep.mubr.f32.mxu0 0.0
        %3195 = vmatmul.mubr.f32.gmra.mrb[0].mxu0 %v2821
        %v3196 = vpop.f32.mrb[0].mxu0
        %v3197 = vadd.f32 %v2956, %v3196
        %v3198 = vpop.f32.mrb[0].mxu0
        %v3199 = vadd.f32 %v2956, %v3198
        %3200 = vmatprep.mubr.f32.mxu0 0.0
        %3201 = vmatmul.mubr.f32.gmra.mrb[0].mxu0 %v2822
        %v3202 = vpop.f32.mrb[0].mxu0
        %v3203 = vadd.f32 %v2961, %v3202
        %v3204 = vpop.f32.mrb[0].mxu0
        %v3205 = vadd.f32 %v2961, %v3204
        %3206 = vmatprep.mubr.f32.mxu0 0.0
        %3207 = vmatmul.mubr.f32.gmra.mrb[0].mxu0 %v2823
        %v3208 = vpop.f32.mrb[0].mxu0
        %v3209 = vadd.f32 %v2966, %v3208
        %v3210 = vpop.f32.mrb[0].mxu0
        %v3211 = vadd.f32 %v2966, %v3210
        %3212 = vmatprep.mubr.f32.mxu0 0.0
        %3213 = vmatmul.mubr.f32.gmra.mrb[0].mxu0 %v2824
        %v3214 = vpop.f32.mrb[0].mxu0
        %v3215 = vadd.f32 %v2971, %v3214
        %v3216 = vpop.f32.mrb[0].mxu0
        %v3217 = vadd.f32 %v2971, %v3216
        %3218 = vmatprep.mubr.f32.mxu0 0.0
        %3219 = vmatmul.mubr.f32.gmra.mrb[0].mxu0 %v2825
        %v3220 = vpop.f32.mrb[0].mxu0
        %v3221 = vadd.f32 %v2976, %v3220
        %v3222 = vpop.f32.mrb[0].mxu0
        %v3223 = vadd.f32 %v2976, %v3222
        %3224 = vmatprep.mubr.f32.mxu0 0.0
        %3225 = vmatmul.mubr.f32.gmra.mrb[0].mxu0 %v2826
        %v3226 = vpop.f32.mrb[0].mxu0
        %v3227 = vadd.f32 %v2981, %v3226
        %v3228 = vpop.f32.mrb[0].mxu0
        %v3229 = vadd.f32 %v2981, %v3228
        %3230 = vmatprep.mubr.f32.mxu0 0.0
        %3231 = vmatmul.mubr.f32.gmra.mrb[0].mxu0 %v2827
        %v3232 = vpop.f32.mrb[0].mxu0
        %v3233 = vadd.f32 %v2986, %v3232
        %v3234 = vpop.f32.mrb[0].mxu0
        %v3235 = vadd.f32 %v2986, %v3234
        %3236 = vmatprep.mubr.f32.mxu0 0.0
        %3237 = vmatmul.mubr.f32.gmra.mrb[0].mxu0 %v2828
        %v3238 = vpop.f32.mrb[0].mxu0
        %v3239 = vadd.f32 %v2991, %v3238
        %v3240 = vpop.f32.mrb[0].mxu0
        %v3241 = vadd.f32 %v2991, %v3240
        %3242 = vmatprep.mubr.f32.mxu0 0.0
        %3243 = vmatmul.mubr.f32.gmra.mrb[0].mxu0 %v2829
        %v3244 = vpop.f32.mrb[0].mxu0
        %v3245 = vadd.f32 %v2996, %v3244
        %v3246 = vpop.f32.mrb[0].mxu0
        %v3247 = vadd.f32 %v2996, %v3246
        %3248 = vmatprep.mubr.f32.mxu0 0.0
        %3249 = vmatmul.mubr.f32.gmra.mrb[0].mxu0 %v2830
        %v3250 = vpop.f32.mrb[0].mxu0
        %v3251 = vadd.f32 %v3001, %v3250
        %v3252 = vpop.f32.mrb[0].mxu0
        %v3253 = vadd.f32 %v3001, %v3252
        %3254 = vmatprep.mubr.f32.mxu0 0.0
        %3255 = vmatmul.mubr.f32.gmra.mrb[0].mxu0 %v2831
        %v3256 = vpop.f32.mrb[0].mxu0
        %v3257 = vadd.f32 %v3006, %v3256
        %v3258 = vpop.f32.mrb[0].mxu0
        %v3259 = vadd.f32 %v3006, %v3258
        %3260 = vmatprep.mubr.f32.mxu0 0.0
        %3261 = vmatmul.mubr.f32.gmra.mrb[0].mxu0 %v2832
        %v3262 = vpop.f32.mrb[0].mxu0
        %v3263 = vadd.f32 %v3011, %v3262
        %v3264 = vpop.f32.mrb[0].mxu0
        %v3265 = vadd.f32 %v3011, %v3264
        %3266 = vmatprep.mubr.f32.mxu0 0.0
        %3267 = vmatmul.mubr.f32.gmra.mrb[0].mxu0 %v2833
        %v3268 = vpop.f32.mrb[0].mxu0
        %v3269 = vadd.f32 %v3016, %v3268
        %v3270 = vpop.f32.mrb[0].mxu0
        %v3271 = vadd.f32 %v3016, %v3270
        %3272 = vmatprep.mubr.f32.mxu0 0.0
        %3273 = vmatmul.mubr.f32.gmra.mrb[0].mxu0 %v2834
        %v3274 = vpop.f32.mrb[0].mxu0
        %v3275 = vadd.f32 %v3021, %v3274
        %v3276 = vpop.f32.mrb[0].mxu0
        %v3277 = vadd.f32 %v3021, %v3276
        %3278 = vmatprep.mubr.f32.mxu0 0.0
        %3279 = vmatmul.mubr.f32.gmra.mrb[0].mxu0 %v2835
        %v3280 = vpop.f32.mrb[0].mxu0
        %v3281 = vadd.f32 %v3026, %v3280
        %v3282 = vpop.f32.mrb[0].mxu0
        %v3283 = vadd.f32 %v3026, %v3282
        %3284 = vdwg.mxu0
        %v3285 = vmax.f32 %v3095, 0.0
        %v3286 = vmax.f32 %v3097, 0.0
        %v3287 = vmax.f32 %v3101, 0.0
        %v3288 = vmax.f32 %v3103, 0.0
        %v3289 = vmax.f32 %v3107, 0.0
        %v3290 = vmax.f32 %v3109, 0.0
        %v3291 = vmax.f32 %v3113, 0.0
        %v3292 = vmax.f32 %v3115, 0.0
        %v3293 = vmax.f32 %v3119, 0.0
        %v3294 = vmax.f32 %v3121, 0.0
        %v3295 = vmax.f32 %v3125, 0.0
        %v3296 = vmax.f32 %v3127, 0.0
        %v3297 = vmax.f32 %v3131, 0.0
        %v3298 = vmax.f32 %v3133, 0.0
        %v3299 = vmax.f32 %v3137, 0.0
        %v3300 = vmax.f32 %v3139, 0.0
        %v3301 = vmax.f32 %v3143, 0.0
        %v3302 = vmax.f32 %v3145, 0.0
        %v3303 = vmax.f32 %v3149, 0.0
        %v3304 = vmax.f32 %v3151, 0.0
        %v3305 = vmax.f32 %v3155, 0.0
        %v3306 = vmax.f32 %v3157, 0.0
        %v3307 = vmax.f32 %v3161, 0.0
        %v3308 = vmax.f32 %v3163, 0.0
        %v3309 = vmax.f32 %v3167, 0.0
        %v3310 = vmax.f32 %v3169, 0.0
        %v3311 = vmax.f32 %v3173, 0.0
        %v3312 = vmax.f32 %v3175, 0.0
        %v3313 = vmax.f32 %v3179, 0.0
        %v3314 = vmax.f32 %v3181, 0.0
        %v3315 = vmax.f32 %v3185, 0.0
        %v3316 = vmax.f32 %v3187, 0.0
        %v3317 = vmax.f32 %v3191, 0.0
        %v3318 = vmax.f32 %v3193, 0.0
        %v3319 = vmax.f32 %v3197, 0.0
        %v3320 = vmax.f32 %v3199, 0.0
        %v3321 = vmax.f32 %v3203, 0.0
        %v3322 = vmax.f32 %v3205, 0.0
        %v3323 = vmax.f32 %v3209, 0.0
        %v3324 = vmax.f32 %v3211, 0.0
        %v3325 = vmax.f32 %v3215, 0.0
        %v3326 = vmax.f32 %v3217, 0.0
        %v3327 = vmax.f32 %v3221, 0.0
        %v3328 = vmax.f32 %v3223, 0.0
        %v3329 = vmax.f32 %v3227, 0.0
        %v3330 = vmax.f32 %v3229, 0.0
        %v3331 = vmax.f32 %v3233, 0.0
        %v3332 = vmax.f32 %v3235, 0.0
        %v3333 = vmax.f32 %v3239, 0.0
        %v3334 = vmax.f32 %v3241, 0.0
        %v3335 = vmax.f32 %v3245, 0.0
        %v3336 = vmax.f32 %v3247, 0.0
        %v3337 = vmax.f32 %v3251, 0.0
        %v3338 = vmax.f32 %v3253, 0.0
        %v3339 = vmax.f32 %v3257, 0.0
        %v3340 = vmax.f32 %v3259, 0.0
        %v3341 = vmax.f32 %v3263, 0.0
        %v3342 = vmax.f32 %v3265, 0.0
        %v3343 = vmax.f32 %v3269, 0.0
        %v3344 = vmax.f32 %v3271, 0.0
        %v3345 = vmax.f32 %v3275, 0.0
        %v3346 = vmax.f32 %v3277, 0.0
        %v3347 = vmax.f32 %v3281, 0.0
        %v3348 = vmax.f32 %v3283, 0.0
        %3349 = vst [vmem:[%s468 + $0x400] sm:$0xff] %v3285
        %3350 = vst [vmem:[%s468 + $0x408] sm:$0xff] %v3286
        %3351 = vst [vmem:[%s468 + $0x410] sm:$0xff] %v3287
        %3352 = vst [vmem:[%s468 + $0x418] sm:$0xff] %v3288
        %3353 = vst [vmem:[%s468 + $0x420] sm:$0xff] %v3289
        %3354 = vst [vmem:[%s468 + $0x428] sm:$0xff] %v3290
        %3355 = vst [vmem:[%s468 + $0x430] sm:$0xff] %v3291
        %3356 = vst [vmem:[%s468 + $0x438] sm:$0xff] %v3292
        %3357 = vst [vmem:[%s468 + $0x440] sm:$0xff] %v3293
        %3358 = vst [vmem:[%s468 + $0x448] sm:$0xff] %v3294
        %3359 = vst [vmem:[%s468 + $0x450] sm:$0xff] %v3295
        %3360 = vst [vmem:[%s468 + $0x458] sm:$0xff] %v3296
        %3361 = vst [vmem:[%s468 + $0x460] sm:$0xff] %v3297
        %3362 = vst [vmem:[%s468 + $0x468] sm:$0xff] %v3298
        %3363 = vst [vmem:[%s468 + $0x470] sm:$0xff] %v3299
        %3364 = vst [vmem:[%s468 + $0x478] sm:$0xff] %v3300
        %3365 = vst [vmem:[%s468 + $0x480] sm:$0xff] %v3301
        %3366 = vst [vmem:[%s468 + $0x488] sm:$0xff] %v3302
        %3367 = vst [vmem:[%s468 + $0x490] sm:$0xff] %v3303
        %3368 = vst [vmem:[%s468 + $0x498] sm:$0xff] %v3304
        %3369 = vst [vmem:[%s468 + $0x4a0] sm:$0xff] %v3305
        %3370 = vst [vmem:[%s468 + $0x4a8] sm:$0xff] %v3306
        %3371 = vst [vmem:[%s468 + $0x4b0] sm:$0xff] %v3307
        %3372 = vst [vmem:[%s468 + $0x4b8] sm:$0xff] %v3308
        %3373 = vst [vmem:[%s468 + $0x4c0] sm:$0xff] %v3309
        %3374 = vst [vmem:[%s468 + $0x4c8] sm:$0xff] %v3310
        %3375 = vst [vmem:[%s468 + $0x4d0] sm:$0xff] %v3311
        %3376 = vst [vmem:[%s468 + $0x4d8] sm:$0xff] %v3312
        %3377 = vst [vmem:[%s468 + $0x4e0] sm:$0xff] %v3313
        %3378 = vst [vmem:[%s468 + $0x4e8] sm:$0xff] %v3314
        %3379 = vst [vmem:[%s468 + $0x4f0] sm:$0xff] %v3315
        %3380 = vst [vmem:[%s468 + $0x4f8] sm:$0xff] %v3316
        %3381 = vst [vmem:[%s468 + $0x500] sm:$0xff] %v3317
        %3382 = vst [vmem:[%s468 + $0x508] sm:$0xff] %v3318
        %3383 = vst [vmem:[%s468 + $0x510] sm:$0xff] %v3319
        %3384 = vst [vmem:[%s468 + $0x518] sm:$0xff] %v3320
        %3385 = vst [vmem:[%s468 + $0x520] sm:$0xff] %v3321
        %3386 = vst [vmem:[%s468 + $0x528] sm:$0xff] %v3322
        %3387 = vst [vmem:[%s468 + $0x530] sm:$0xff] %v3323
        %3388 = vst [vmem:[%s468 + $0x538] sm:$0xff] %v3324
        %3389 = vst [vmem:[%s468 + $0x540] sm:$0xff] %v3325
        %3390 = vst [vmem:[%s468 + $0x548] sm:$0xff] %v3326
        %3391 = vst [vmem:[%s468 + $0x550] sm:$0xff] %v3327
        %3392 = vst [vmem:[%s468 + $0x558] sm:$0xff] %v3328
        %3393 = vst [vmem:[%s468 + $0x560] sm:$0xff] %v3329
        %3394 = vst [vmem:[%s468 + $0x568] sm:$0xff] %v3330
        %3395 = vst [vmem:[%s468 + $0x570] sm:$0xff] %v3331
        %3396 = vst [vmem:[%s468 + $0x578] sm:$0xff] %v3332
        %3397 = vst [vmem:[%s468 + $0x580] sm:$0xff] %v3333
        %3398 = vst [vmem:[%s468 + $0x588] sm:$0xff] %v3334
        %3399 = vst [vmem:[%s468 + $0x590] sm:$0xff] %v3335
        %3400 = vst [vmem:[%s468 + $0x598] sm:$0xff] %v3336
        %3401 = vst [vmem:[%s468 + $0x5a0] sm:$0xff] %v3337
        %3402 = vst [vmem:[%s468 + $0x5a8] sm:$0xff] %v3338
        %3403 = vst [vmem:[%s468 + $0x5b0] sm:$0xff] %v3339
        %3404 = vst [vmem:[%s468 + $0x5b8] sm:$0xff] %v3340
        %3405 = vst [vmem:[%s468 + $0x5c0] sm:$0xff] %v3341
        %3406 = vst [vmem:[%s468 + $0x5c8] sm:$0xff] %v3342
        %3407 = vst [vmem:[%s468 + $0x5d0] sm:$0xff] %v3343
        %3408 = vst [vmem:[%s468 + $0x5d8] sm:$0xff] %v3344
        %3409 = vst [vmem:[%s468 + $0x5e0] sm:$0xff] %v3345
        %3410 = vst [vmem:[%s468 + $0x5e8] sm:$0xff] %v3346
        %3411 = vst [vmem:[%s468 + $0x5f0] sm:$0xff] %v3347
        %3412 = vst [vmem:[%s468 + $0x5f8] sm:$0xff] %v3348
        %v3413 = vld [vmem:[#allocation6 + $0x300] sm:$0xff]
        %v3414 = vld [vmem:[#allocation6 + $0x308] sm:$0xff]
        %v3415 = vld [vmem:[#allocation6 + $0x310] sm:$0xff]
        %v3416 = vld [vmem:[#allocation6 + $0x318] sm:$0xff]
        %v3417 = vld [vmem:[#allocation6 + $0x320] sm:$0xff]
        %v3418 = vld [vmem:[#allocation6 + $0x328] sm:$0xff]
        %v3419 = vld [vmem:[#allocation6 + $0x330] sm:$0xff]
        %v3420 = vld [vmem:[#allocation6 + $0x338] sm:$0xff]
        %v3421 = vld [vmem:[#allocation6 + $0x340] sm:$0xff]
        %v3422 = vld [vmem:[#allocation6 + $0x348] sm:$0xff]
        %v3423 = vld [vmem:[#allocation6 + $0x350] sm:$0xff]
        %v3424 = vld [vmem:[#allocation6 + $0x358] sm:$0xff]
        %v3425 = vld [vmem:[#allocation6 + $0x360] sm:$0xff]
        %v3426 = vld [vmem:[#allocation6 + $0x368] sm:$0xff]
        %v3427 = vld [vmem:[#allocation6 + $0x370] sm:$0xff]
        %v3428 = vld [vmem:[#allocation6 + $0x378] sm:$0xff]
        %v3429 = vld [vmem:[#allocation6 + $0x380] sm:$0xff]
        %v3430 = vld [vmem:[#allocation6 + $0x388] sm:$0xff]
        %v3431 = vld [vmem:[#allocation6 + $0x390] sm:$0xff]
        %v3432 = vld [vmem:[#allocation6 + $0x398] sm:$0xff]
        %v3433 = vld [vmem:[#allocation6 + $0x3a0] sm:$0xff]
        %v3434 = vld [vmem:[#allocation6 + $0x3a8] sm:$0xff]
        %v3435 = vld [vmem:[#allocation6 + $0x3b0] sm:$0xff]
        %v3436 = vld [vmem:[#allocation6 + $0x3b8] sm:$0xff]
        %v3437 = vld [vmem:[#allocation6 + $0x3c0] sm:$0xff]
        %v3438 = vld [vmem:[#allocation6 + $0x3c8] sm:$0xff]
        %v3439 = vld [vmem:[#allocation6 + $0x3d0] sm:$0xff]
        %v3440 = vld [vmem:[#allocation6 + $0x3d8] sm:$0xff]
        %v3441 = vld [vmem:[#allocation6 + $0x3e0] sm:$0xff]
        %v3442 = vld [vmem:[#allocation6 + $0x3e8] sm:$0xff]
        %v3443 = vld [vmem:[#allocation6 + $0x3f0] sm:$0xff]
        %v3444 = vld [vmem:[#allocation6 + $0x3f8] sm:$0xff]
        %v3445 = vld [vmem:[%s10 + $0x300] sm:$0xff]
        %v3446 = vld [vmem:[%s10 + $0x308] sm:$0xff]
        %v3447 = vld [vmem:[%s10 + $0x310] sm:$0xff]
        %v3448 = vld [vmem:[%s10 + $0x318] sm:$0xff]
        %v3449 = vld [vmem:[%s10 + $0x320] sm:$0xff]
        %v3450 = vld [vmem:[%s10 + $0x328] sm:$0xff]
        %v3451 = vld [vmem:[%s10 + $0x330] sm:$0xff]
        %v3452 = vld [vmem:[%s10 + $0x338] sm:$0xff]
        %v3453 = vld [vmem:[%s10 + $0x340] sm:$0xff]
        %v3454 = vld [vmem:[%s10 + $0x348] sm:$0xff]
        %v3455 = vld [vmem:[%s10 + $0x350] sm:$0xff]
        %v3456 = vld [vmem:[%s10 + $0x358] sm:$0xff]
        %v3457 = vld [vmem:[%s10 + $0x360] sm:$0xff]
        %v3458 = vld [vmem:[%s10 + $0x368] sm:$0xff]
        %v3459 = vld [vmem:[%s10 + $0x370] sm:$0xff]
        %v3460 = vld [vmem:[%s10 + $0x378] sm:$0xff]
        %v3461 = vld [vmem:[%s10 + $0x380] sm:$0xff]
        %v3462 = vld [vmem:[%s10 + $0x388] sm:$0xff]
        %v3463 = vld [vmem:[%s10 + $0x390] sm:$0xff]
        %v3464 = vld [vmem:[%s10 + $0x398] sm:$0xff]
        %v3465 = vld [vmem:[%s10 + $0x3a0] sm:$0xff]
        %v3466 = vld [vmem:[%s10 + $0x3a8] sm:$0xff]
        %v3467 = vld [vmem:[%s10 + $0x3b0] sm:$0xff]
        %v3468 = vld [vmem:[%s10 + $0x3b8] sm:$0xff]
        %v3469 = vld [vmem:[%s10 + $0x3c0] sm:$0xff]
        %v3470 = vld [vmem:[%s10 + $0x3c8] sm:$0xff]
        %v3471 = vld [vmem:[%s10 + $0x3d0] sm:$0xff]
        %v3472 = vld [vmem:[%s10 + $0x3d8] sm:$0xff]
        %v3473 = vld [vmem:[%s10 + $0x3e0] sm:$0xff]
        %v3474 = vld [vmem:[%s10 + $0x3e8] sm:$0xff]
        %v3475 = vld [vmem:[%s10 + $0x3f0] sm:$0xff]
        %v3476 = vld [vmem:[%s10 + $0x3f8] sm:$0xff]
        %3478 = vset.pattern.permute.xlu0 0
        %3479 = vperm.xlu0 %3478, %v3445
        %v3480 = vpop.permute.xlu0 %3479
        %3483 = vset.pattern.permute.xlu0 0
        %3484 = vperm.xlu0 %3483, %v3446
        %v3485 = vpop.permute.xlu0 %3484
        %3488 = vset.pattern.permute.xlu0 0
        %3489 = vperm.xlu0 %3488, %v3447
        %v3490 = vpop.permute.xlu0 %3489
        %3493 = vset.pattern.permute.xlu0 0
        %3494 = vperm.xlu0 %3493, %v3448
        %v3495 = vpop.permute.xlu0 %3494
        %3498 = vset.pattern.permute.xlu0 0
        %3499 = vperm.xlu0 %3498, %v3449
        %v3500 = vpop.permute.xlu0 %3499
        %3503 = vset.pattern.permute.xlu0 0
        %3504 = vperm.xlu0 %3503, %v3450
        %v3505 = vpop.permute.xlu0 %3504
        %3508 = vset.pattern.permute.xlu0 0
        %3509 = vperm.xlu0 %3508, %v3451
        %v3510 = vpop.permute.xlu0 %3509
        %3513 = vset.pattern.permute.xlu0 0
        %3514 = vperm.xlu0 %3513, %v3452
        %v3515 = vpop.permute.xlu0 %3514
        %3518 = vset.pattern.permute.xlu0 0
        %3519 = vperm.xlu0 %3518, %v3453
        %v3520 = vpop.permute.xlu0 %3519
        %3523 = vset.pattern.permute.xlu0 0
        %3524 = vperm.xlu0 %3523, %v3454
        %v3525 = vpop.permute.xlu0 %3524
        %3528 = vset.pattern.permute.xlu0 0
        %3529 = vperm.xlu0 %3528, %v3455
        %v3530 = vpop.permute.xlu0 %3529
        %3533 = vset.pattern.permute.xlu0 0
        %3534 = vperm.xlu0 %3533, %v3456
        %v3535 = vpop.permute.xlu0 %3534
        %3538 = vset.pattern.permute.xlu0 0
        %3539 = vperm.xlu0 %3538, %v3457
        %v3540 = vpop.permute.xlu0 %3539
        %3543 = vset.pattern.permute.xlu0 0
        %3544 = vperm.xlu0 %3543, %v3458
        %v3545 = vpop.permute.xlu0 %3544
        %3548 = vset.pattern.permute.xlu0 0
        %3549 = vperm.xlu0 %3548, %v3459
        %v3550 = vpop.permute.xlu0 %3549
        %3553 = vset.pattern.permute.xlu0 0
        %3554 = vperm.xlu0 %3553, %v3460
        %v3555 = vpop.permute.xlu0 %3554
        %3558 = vset.pattern.permute.xlu0 0
        %3559 = vperm.xlu0 %3558, %v3461
        %v3560 = vpop.permute.xlu0 %3559
        %3563 = vset.pattern.permute.xlu0 0
        %3564 = vperm.xlu0 %3563, %v3462
        %v3565 = vpop.permute.xlu0 %3564
        %3568 = vset.pattern.permute.xlu0 0
        %3569 = vperm.xlu0 %3568, %v3463
        %v3570 = vpop.permute.xlu0 %3569
        %3573 = vset.pattern.permute.xlu0 0
        %3574 = vperm.xlu0 %3573, %v3464
        %v3575 = vpop.permute.xlu0 %3574
        %3578 = vset.pattern.permute.xlu0 0
        %3579 = vperm.xlu0 %3578, %v3465
        %v3580 = vpop.permute.xlu0 %3579
        %3583 = vset.pattern.permute.xlu0 0
        %3584 = vperm.xlu0 %3583, %v3466
        %v3585 = vpop.permute.xlu0 %3584
        %3588 = vset.pattern.permute.xlu0 0
        %3589 = vperm.xlu0 %3588, %v3467
        %v3590 = vpop.permute.xlu0 %3589
        %3593 = vset.pattern.permute.xlu0 0
        %3594 = vperm.xlu0 %3593, %v3468
        %v3595 = vpop.permute.xlu0 %3594
        %3598 = vset.pattern.permute.xlu0 0
        %3599 = vperm.xlu0 %3598, %v3469
        %v3600 = vpop.permute.xlu0 %3599
        %3603 = vset.pattern.permute.xlu0 0
        %3604 = vperm.xlu0 %3603, %v3470
        %v3605 = vpop.permute.xlu0 %3604
        %3608 = vset.pattern.permute.xlu0 0
        %3609 = vperm.xlu0 %3608, %v3471
        %v3610 = vpop.permute.xlu0 %3609
        %3613 = vset.pattern.permute.xlu0 0
        %3614 = vperm.xlu0 %3613, %v3472
        %v3615 = vpop.permute.xlu0 %3614
        %3618 = vset.pattern.permute.xlu0 0
        %3619 = vperm.xlu0 %3618, %v3473
        %v3620 = vpop.permute.xlu0 %3619
        %3623 = vset.pattern.permute.xlu0 0
        %3624 = vperm.xlu0 %3623, %v3474
        %v3625 = vpop.permute.xlu0 %3624
        %3628 = vset.pattern.permute.xlu0 0
        %3629 = vperm.xlu0 %3628, %v3475
        %v3630 = vpop.permute.xlu0 %3629
        %3633 = vset.pattern.permute.xlu0 0
        %3634 = vperm.xlu0 %3633, %v3476
        %v3635 = vpop.permute.xlu0 %3634
        %3637 = vmatprep.subr.mxu0 %v1539
        %3638 = vmatpush1.msra.mxu0 %v1538
        %3639 = vmatprep.subr.mxu0 %v1541
        %3640 = vmatpush1.msra.mxu0 %v1540
        %3641 = vmatprep.subr.mxu0 %v1543
        %3642 = vmatpush1.msra.mxu0 %v1542
        %3643 = vmatprep.subr.mxu0 %v1545
        %3644 = vmatpush1.msra.mxu0 %v1544
        %3645 = vmatprep.subr.mxu0 %v1547
        %3646 = vmatpush1.msra.mxu0 %v1546
        %3647 = vmatprep.subr.mxu0 %v1549
        %3648 = vmatpush1.msra.mxu0 %v1548
        %3649 = vmatprep.subr.mxu0 %v1551
        %3650 = vmatpush1.msra.mxu0 %v1550
        %3651 = vmatprep.subr.mxu0 %v1553
        %3652 = vmatpush1.msra.mxu0 %v1552
        %3653 = vmatprep.subr.mxu0 %v1555
        %3654 = vmatpush1.msra.mxu0 %v1554
        %3655 = vmatprep.subr.mxu0 %v1557
        %3656 = vmatpush1.msra.mxu0 %v1556
        %3657 = vmatprep.subr.mxu0 %v1559
        %3658 = vmatpush1.msra.mxu0 %v1558
        %3659 = vmatprep.subr.mxu0 %v1561
        %3660 = vmatpush1.msra.mxu0 %v1560
        %3661 = vmatprep.subr.mxu0 %v1563
        %3662 = vmatpush1.msra.mxu0 %v1562
        %3663 = vmatprep.subr.mxu0 %v1565
        %3664 = vmatpush1.msra.mxu0 %v1564
        %3665 = vmatprep.subr.mxu0 %v1567
        %3666 = vmatpush1.msra.mxu0 %v1566
        %3667 = vmatprep.subr.mxu0 %v1569
        %3668 = vmatpush1.msra.mxu0 %v1568
        %3669 = vmatprep.subr.mxu0 0.0
        %3670 = vmatpush1.msra.mxu0 0.0
        %3671 = vmatprep.subr.mxu0 0.0
        %3672 = vmatpush1.msra.mxu0 0.0
        %3673 = vmatprep.subr.mxu0 0.0
        %3674 = vmatpush1.msra.mxu0 0.0
        %3675 = vmatprep.subr.mxu0 0.0
        %3676 = vmatpush1.msra.mxu0 0.0
        %3677 = vmatprep.subr.mxu0 0.0
        %3678 = vmatpush1.msra.mxu0 0.0
        %3679 = vmatprep.subr.mxu0 0.0
        %3680 = vmatpush1.msra.mxu0 0.0
        %3681 = vmatprep.subr.mxu0 0.0
        %3682 = vmatpush1.msra.mxu0 0.0
        %3683 = vmatprep.subr.mxu0 0.0
        %3684 = vmatpush1.msra.mxu0 0.0
        %3685 = vmatprep.subr.mxu0 0.0
        %3686 = vmatpush1.msra.mxu0 0.0
        %3687 = vmatprep.subr.mxu0 0.0
        %3688 = vmatpush1.msra.mxu0 0.0
        %3689 = vmatprep.subr.mxu0 0.0
        %3690 = vmatpush1.msra.mxu0 0.0
        %3691 = vmatprep.subr.mxu0 0.0
        %3692 = vmatpush1.msra.mxu0 0.0
        %3693 = vmatprep.subr.mxu0 0.0
        %3694 = vmatpush1.msra.mxu0 0.0
        %3695 = vmatprep.subr.mxu0 0.0
        %3696 = vmatpush1.msra.mxu0 0.0
        %3697 = vmatprep.subr.mxu0 0.0
        %3698 = vmatpush1.msra.mxu0 0.0
        %3699 = vmatprep.subr.mxu0 0.0
        %3700 = vmatpush1.msra.mxu0 0.0
        %3701 = vmatprep.mubr.f32.mxu0 0.0
        %3702 = vmatmul.mubr.f32.gmra.mrb[0].mxu0 %v3413
        %v3703 = vpop.f32.mrb[0].mxu0
        %v3704 = vadd.f32 %v3480, %v3703
        %v3705 = vpop.f32.mrb[0].mxu0
        %v3706 = vadd.f32 %v3480, %v3705
        %3707 = vmatprep.mubr.f32.mxu0 0.0
        %3708 = vmatmul.mubr.f32.gmra.mrb[0].mxu0 %v3414
        %v3709 = vpop.f32.mrb[0].mxu0
        %v3710 = vadd.f32 %v3485, %v3709
        %v3711 = vpop.f32.mrb[0].mxu0
        %v3712 = vadd.f32 %v3485, %v3711
        %3713 = vmatprep.mubr.f32.mxu0 0.0
        %3714 = vmatmul.mubr.f32.gmra.mrb[0].mxu0 %v3415
        %v3715 = vpop.f32.mrb[0].mxu0
        %v3716 = vadd.f32 %v3490, %v3715
        %v3717 = vpop.f32.mrb[0].mxu0
        %v3718 = vadd.f32 %v3490, %v3717
        %3719 = vmatprep.mubr.f32.mxu0 0.0
        %3720 = vmatmul.mubr.f32.gmra.mrb[0].mxu0 %v3416
        %v3721 = vpop.f32.mrb[0].mxu0
        %v3722 = vadd.f32 %v3495, %v3721
        %v3723 = vpop.f32.mrb[0].mxu0
        %v3724 = vadd.f32 %v3495, %v3723
        %3725 = vmatprep.mubr.f32.mxu0 0.0
        %3726 = vmatmul.mubr.f32.gmra.mrb[0].mxu0 %v3417
        %v3727 = vpop.f32.mrb[0].mxu0
        %v3728 = vadd.f32 %v3500, %v3727
        %v3729 = vpop.f32.mrb[0].mxu0
        %v3730 = vadd.f32 %v3500, %v3729
        %3731 = vmatprep.mubr.f32.mxu0 0.0
        %3732 = vmatmul.mubr.f32.gmra.mrb[0].mxu0 %v3418
        %v3733 = vpop.f32.mrb[0].mxu0
        %v3734 = vadd.f32 %v3505, %v3733
        %v3735 = vpop.f32.mrb[0].mxu0
        %v3736 = vadd.f32 %v3505, %v3735
        %3737 = vmatprep.mubr.f32.mxu0 0.0
        %3738 = vmatmul.mubr.f32.gmra.mrb[0].mxu0 %v3419
        %v3739 = vpop.f32.mrb[0].mxu0
        %v3740 = vadd.f32 %v3510, %v3739
        %v3741 = vpop.f32.mrb[0].mxu0
        %v3742 = vadd.f32 %v3510, %v3741
        %3743 = vmatprep.mubr.f32.mxu0 0.0
        %3744 = vmatmul.mubr.f32.gmra.mrb[0].mxu0 %v3420
        %v3745 = vpop.f32.mrb[0].mxu0
        %v3746 = vadd.f32 %v3515, %v3745
        %v3747 = vpop.f32.mrb[0].mxu0
        %v3748 = vadd.f32 %v3515, %v3747
        %3749 = vmatprep.mubr.f32.mxu0 0.0
        %3750 = vmatmul.mubr.f32.gmra.mrb[0].mxu0 %v3421
        %v3751 = vpop.f32.mrb[0].mxu0
        %v3752 = vadd.f32 %v3520, %v3751
        %v3753 = vpop.f32.mrb[0].mxu0
        %v3754 = vadd.f32 %v3520, %v3753
        %3755 = vmatprep.mubr.f32.mxu0 0.0
        %3756 = vmatmul.mubr.f32.gmra.mrb[0].mxu0 %v3422
        %v3757 = vpop.f32.mrb[0].mxu0
        %v3758 = vadd.f32 %v3525, %v3757
        %v3759 = vpop.f32.mrb[0].mxu0
        %v3760 = vadd.f32 %v3525, %v3759
        %3761 = vmatprep.mubr.f32.mxu0 0.0
        %3762 = vmatmul.mubr.f32.gmra.mrb[0].mxu0 %v3423
        %v3763 = vpop.f32.mrb[0].mxu0
        %v3764 = vadd.f32 %v3530, %v3763
        %v3765 = vpop.f32.mrb[0].mxu0
        %v3766 = vadd.f32 %v3530, %v3765
        %3767 = vmatprep.mubr.f32.mxu0 0.0
        %3768 = vmatmul.mubr.f32.gmra.mrb[0].mxu0 %v3424
        %v3769 = vpop.f32.mrb[0].mxu0
        %v3770 = vadd.f32 %v3535, %v3769
        %v3771 = vpop.f32.mrb[0].mxu0
        %v3772 = vadd.f32 %v3535, %v3771
        %3773 = vmatprep.mubr.f32.mxu0 0.0
        %3774 = vmatmul.mubr.f32.gmra.mrb[0].mxu0 %v3425
        %v3775 = vpop.f32.mrb[0].mxu0
        %v3776 = vadd.f32 %v3540, %v3775
        %v3777 = vpop.f32.mrb[0].mxu0
        %v3778 = vadd.f32 %v3540, %v3777
        %3779 = vmatprep.mubr.f32.mxu0 0.0
        %3780 = vmatmul.mubr.f32.gmra.mrb[0].mxu0 %v3426
        %v3781 = vpop.f32.mrb[0].mxu0
        %v3782 = vadd.f32 %v3545, %v3781
        %v3783 = vpop.f32.mrb[0].mxu0
        %v3784 = vadd.f32 %v3545, %v3783
        %3785 = vmatprep.mubr.f32.mxu0 0.0
        %3786 = vmatmul.mubr.f32.gmra.mrb[0].mxu0 %v3427
        %v3787 = vpop.f32.mrb[0].mxu0
        %v3788 = vadd.f32 %v3550, %v3787
        %v3789 = vpop.f32.mrb[0].mxu0
        %v3790 = vadd.f32 %v3550, %v3789
        %3791 = vmatprep.mubr.f32.mxu0 0.0
        %3792 = vmatmul.mubr.f32.gmra.mrb[0].mxu0 %v3428
        %v3793 = vpop.f32.mrb[0].mxu0
        %v3794 = vadd.f32 %v3555, %v3793
        %v3795 = vpop.f32.mrb[0].mxu0
        %v3796 = vadd.f32 %v3555, %v3795
        %3797 = vmatprep.mubr.f32.mxu0 0.0
        %3798 = vmatmul.mubr.f32.gmra.mrb[0].mxu0 %v3429
        %v3799 = vpop.f32.mrb[0].mxu0
        %v3800 = vadd.f32 %v3560, %v3799
        %v3801 = vpop.f32.mrb[0].mxu0
        %v3802 = vadd.f32 %v3560, %v3801
        %3803 = vmatprep.mubr.f32.mxu0 0.0
        %3804 = vmatmul.mubr.f32.gmra.mrb[0].mxu0 %v3430
        %v3805 = vpop.f32.mrb[0].mxu0
        %v3806 = vadd.f32 %v3565, %v3805
        %v3807 = vpop.f32.mrb[0].mxu0
        %v3808 = vadd.f32 %v3565, %v3807
        %3809 = vmatprep.mubr.f32.mxu0 0.0
        %3810 = vmatmul.mubr.f32.gmra.mrb[0].mxu0 %v3431
        %v3811 = vpop.f32.mrb[0].mxu0
        %v3812 = vadd.f32 %v3570, %v3811
        %v3813 = vpop.f32.mrb[0].mxu0
        %v3814 = vadd.f32 %v3570, %v3813
        %3815 = vmatprep.mubr.f32.mxu0 0.0
        %3816 = vmatmul.mubr.f32.gmra.mrb[0].mxu0 %v3432
        %v3817 = vpop.f32.mrb[0].mxu0
        %v3818 = vadd.f32 %v3575, %v3817
        %v3819 = vpop.f32.mrb[0].mxu0
        %v3820 = vadd.f32 %v3575, %v3819
        %3821 = vmatprep.mubr.f32.mxu0 0.0
        %3822 = vmatmul.mubr.f32.gmra.mrb[0].mxu0 %v3433
        %v3823 = vpop.f32.mrb[0].mxu0
        %v3824 = vadd.f32 %v3580, %v3823
        %v3825 = vpop.f32.mrb[0].mxu0
        %v3826 = vadd.f32 %v3580, %v3825
        %3827 = vmatprep.mubr.f32.mxu0 0.0
        %3828 = vmatmul.mubr.f32.gmra.mrb[0].mxu0 %v3434
        %v3829 = vpop.f32.mrb[0].mxu0
        %v3830 = vadd.f32 %v3585, %v3829
        %v3831 = vpop.f32.mrb[0].mxu0
        %v3832 = vadd.f32 %v3585, %v3831
        %3833 = vmatprep.mubr.f32.mxu0 0.0
        %3834 = vmatmul.mubr.f32.gmra.mrb[0].mxu0 %v3435
        %v3835 = vpop.f32.mrb[0].mxu0
        %v3836 = vadd.f32 %v3590, %v3835
        %v3837 = vpop.f32.mrb[0].mxu0
        %v3838 = vadd.f32 %v3590, %v3837
        %3839 = vmatprep.mubr.f32.mxu0 0.0
        %3840 = vmatmul.mubr.f32.gmra.mrb[0].mxu0 %v3436
        %v3841 = vpop.f32.mrb[0].mxu0
        %v3842 = vadd.f32 %v3595, %v3841
        %v3843 = vpop.f32.mrb[0].mxu0
        %v3844 = vadd.f32 %v3595, %v3843
        %3845 = vmatprep.mubr.f32.mxu0 0.0
        %3846 = vmatmul.mubr.f32.gmra.mrb[0].mxu0 %v3437
        %v3847 = vpop.f32.mrb[0].mxu0
        %v3848 = vadd.f32 %v3600, %v3847
        %v3849 = vpop.f32.mrb[0].mxu0
        %v3850 = vadd.f32 %v3600, %v3849
        %3851 = vmatprep.mubr.f32.mxu0 0.0
        %3852 = vmatmul.mubr.f32.gmra.mrb[0].mxu0 %v3438
        %v3853 = vpop.f32.mrb[0].mxu0
        %v3854 = vadd.f32 %v3605, %v3853
        %v3855 = vpop.f32.mrb[0].mxu0
        %v3856 = vadd.f32 %v3605, %v3855
        %3857 = vmatprep.mubr.f32.mxu0 0.0
        %3858 = vmatmul.mubr.f32.gmra.mrb[0].mxu0 %v3439
        %v3859 = vpop.f32.mrb[0].mxu0
        %v3860 = vadd.f32 %v3610, %v3859
        %v3861 = vpop.f32.mrb[0].mxu0
        %v3862 = vadd.f32 %v3610, %v3861
        %3863 = vmatprep.mubr.f32.mxu0 0.0
        %3864 = vmatmul.mubr.f32.gmra.mrb[0].mxu0 %v3440
        %v3865 = vpop.f32.mrb[0].mxu0
        %v3866 = vadd.f32 %v3615, %v3865
        %v3867 = vpop.f32.mrb[0].mxu0
        %v3868 = vadd.f32 %v3615, %v3867
        %3869 = vmatprep.mubr.f32.mxu0 0.0
        %3870 = vmatmul.mubr.f32.gmra.mrb[0].mxu0 %v3441
        %v3871 = vpop.f32.mrb[0].mxu0
        %v3872 = vadd.f32 %v3620, %v3871
        %v3873 = vpop.f32.mrb[0].mxu0
        %v3874 = vadd.f32 %v3620, %v3873
        %3875 = vmatprep.mubr.f32.mxu0 0.0
        %3876 = vmatmul.mubr.f32.gmra.mrb[0].mxu0 %v3442
        %v3877 = vpop.f32.mrb[0].mxu0
        %v3878 = vadd.f32 %v3625, %v3877
        %v3879 = vpop.f32.mrb[0].mxu0
        %v3880 = vadd.f32 %v3625, %v3879
        %3881 = vmatprep.mubr.f32.mxu0 0.0
        %3882 = vmatmul.mubr.f32.gmra.mrb[0].mxu0 %v3443
        %v3883 = vpop.f32.mrb[0].mxu0
        %v3884 = vadd.f32 %v3630, %v3883
        %v3885 = vpop.f32.mrb[0].mxu0
        %v3886 = vadd.f32 %v3630, %v3885
        %3887 = vmatprep.mubr.f32.mxu0 0.0
        %3888 = vmatmul.mubr.f32.gmra.mrb[0].mxu0 %v3444
        %v3889 = vpop.f32.mrb[0].mxu0
        %v3890 = vadd.f32 %v3635, %v3889
        %v3891 = vpop.f32.mrb[0].mxu0
        %v3892 = vadd.f32 %v3635, %v3891
        %3893 = vdwg.mxu0
        %v3894 = vmax.f32 %v3704, 0.0
        %v3895 = vmax.f32 %v3706, 0.0
        %v3896 = vmax.f32 %v3710, 0.0
        %v3897 = vmax.f32 %v3712, 0.0
        %v3898 = vmax.f32 %v3716, 0.0
        %v3899 = vmax.f32 %v3718, 0.0
        %v3900 = vmax.f32 %v3722, 0.0
        %v3901 = vmax.f32 %v3724, 0.0
        %v3902 = vmax.f32 %v3728, 0.0
        %v3903 = vmax.f32 %v3730, 0.0
        %v3904 = vmax.f32 %v3734, 0.0
        %v3905 = vmax.f32 %v3736, 0.0
        %v3906 = vmax.f32 %v3740, 0.0
        %v3907 = vmax.f32 %v3742, 0.0
        %v3908 = vmax.f32 %v3746, 0.0
        %v3909 = vmax.f32 %v3748, 0.0
        %v3910 = vmax.f32 %v3752, 0.0
        %v3911 = vmax.f32 %v3754, 0.0
        %v3912 = vmax.f32 %v3758, 0.0
        %v3913 = vmax.f32 %v3760, 0.0
        %v3914 = vmax.f32 %v3764, 0.0
        %v3915 = vmax.f32 %v3766, 0.0
        %v3916 = vmax.f32 %v3770, 0.0
        %v3917 = vmax.f32 %v3772, 0.0
        %v3918 = vmax.f32 %v3776, 0.0
        %v3919 = vmax.f32 %v3778, 0.0
        %v3920 = vmax.f32 %v3782, 0.0
        %v3921 = vmax.f32 %v3784, 0.0
        %v3922 = vmax.f32 %v3788, 0.0
        %v3923 = vmax.f32 %v3790, 0.0
        %v3924 = vmax.f32 %v3794, 0.0
        %v3925 = vmax.f32 %v3796, 0.0
        %v3926 = vmax.f32 %v3800, 0.0
        %v3927 = vmax.f32 %v3802, 0.0
        %v3928 = vmax.f32 %v3806, 0.0
        %v3929 = vmax.f32 %v3808, 0.0
        %v3930 = vmax.f32 %v3812, 0.0
        %v3931 = vmax.f32 %v3814, 0.0
        %v3932 = vmax.f32 %v3818, 0.0
        %v3933 = vmax.f32 %v3820, 0.0
        %v3934 = vmax.f32 %v3824, 0.0
        %v3935 = vmax.f32 %v3826, 0.0
        %v3936 = vmax.f32 %v3830, 0.0
        %v3937 = vmax.f32 %v3832, 0.0
        %v3938 = vmax.f32 %v3836, 0.0
        %v3939 = vmax.f32 %v3838, 0.0
        %v3940 = vmax.f32 %v3842, 0.0
        %v3941 = vmax.f32 %v3844, 0.0
        %v3942 = vmax.f32 %v3848, 0.0
        %v3943 = vmax.f32 %v3850, 0.0
        %v3944 = vmax.f32 %v3854, 0.0
        %v3945 = vmax.f32 %v3856, 0.0
        %v3946 = vmax.f32 %v3860, 0.0
        %v3947 = vmax.f32 %v3862, 0.0
        %v3948 = vmax.f32 %v3866, 0.0
        %v3949 = vmax.f32 %v3868, 0.0
        %v3950 = vmax.f32 %v3872, 0.0
        %v3951 = vmax.f32 %v3874, 0.0
        %v3952 = vmax.f32 %v3878, 0.0
        %v3953 = vmax.f32 %v3880, 0.0
        %v3954 = vmax.f32 %v3884, 0.0
        %v3955 = vmax.f32 %v3886, 0.0
        %v3956 = vmax.f32 %v3890, 0.0
        %v3957 = vmax.f32 %v3892, 0.0
        %3958 = vst [vmem:[%s468 + $0x600] sm:$0xff] %v3894
        %3959 = vst [vmem:[%s468 + $0x608] sm:$0xff] %v3895
        %3960 = vst [vmem:[%s468 + $0x610] sm:$0xff] %v3896
        %3961 = vst [vmem:[%s468 + $0x618] sm:$0xff] %v3897
        %3962 = vst [vmem:[%s468 + $0x620] sm:$0xff] %v3898
        %3963 = vst [vmem:[%s468 + $0x628] sm:$0xff] %v3899
        %3964 = vst [vmem:[%s468 + $0x630] sm:$0xff] %v3900
        %3965 = vst [vmem:[%s468 + $0x638] sm:$0xff] %v3901
        %3966 = vst [vmem:[%s468 + $0x640] sm:$0xff] %v3902
        %3967 = vst [vmem:[%s468 + $0x648] sm:$0xff] %v3903
        %3968 = vst [vmem:[%s468 + $0x650] sm:$0xff] %v3904
        %3969 = vst [vmem:[%s468 + $0x658] sm:$0xff] %v3905
        %3970 = vst [vmem:[%s468 + $0x660] sm:$0xff] %v3906
        %3971 = vst [vmem:[%s468 + $0x668] sm:$0xff] %v3907
        %3972 = vst [vmem:[%s468 + $0x670] sm:$0xff] %v3908
        %3973 = vst [vmem:[%s468 + $0x678] sm:$0xff] %v3909
        %3974 = vst [vmem:[%s468 + $0x680] sm:$0xff] %v3910
        %3975 = vst [vmem:[%s468 + $0x688] sm:$0xff] %v3911
        %3976 = vst [vmem:[%s468 + $0x690] sm:$0xff] %v3912
        %3977 = vst [vmem:[%s468 + $0x698] sm:$0xff] %v3913
        %3978 = vst [vmem:[%s468 + $0x6a0] sm:$0xff] %v3914
        %3979 = vst [vmem:[%s468 + $0x6a8] sm:$0xff] %v3915
        %3980 = vst [vmem:[%s468 + $0x6b0] sm:$0xff] %v3916
        %3981 = vst [vmem:[%s468 + $0x6b8] sm:$0xff] %v3917
        %3982 = vst [vmem:[%s468 + $0x6c0] sm:$0xff] %v3918
        %3983 = vst [vmem:[%s468 + $0x6c8] sm:$0xff] %v3919
        %3984 = vst [vmem:[%s468 + $0x6d0] sm:$0xff] %v3920
        %3985 = vst [vmem:[%s468 + $0x6d8] sm:$0xff] %v3921
        %3986 = vst [vmem:[%s468 + $0x6e0] sm:$0xff] %v3922
        %3987 = vst [vmem:[%s468 + $0x6e8] sm:$0xff] %v3923
        %3988 = vst [vmem:[%s468 + $0x6f0] sm:$0xff] %v3924
        %3989 = vst [vmem:[%s468 + $0x6f8] sm:$0xff] %v3925
        %3990 = vst [vmem:[%s468 + $0x700] sm:$0xff] %v3926
        %3991 = vst [vmem:[%s468 + $0x708] sm:$0xff] %v3927
        %3992 = vst [vmem:[%s468 + $0x710] sm:$0xff] %v3928
        %3993 = vst [vmem:[%s468 + $0x718] sm:$0xff] %v3929
        %3994 = vst [vmem:[%s468 + $0x720] sm:$0xff] %v3930
        %3995 = vst [vmem:[%s468 + $0x728] sm:$0xff] %v3931
        %3996 = vst [vmem:[%s468 + $0x730] sm:$0xff] %v3932
        %3997 = vst [vmem:[%s468 + $0x738] sm:$0xff] %v3933
        %3998 = vst [vmem:[%s468 + $0x740] sm:$0xff] %v3934
        %3999 = vst [vmem:[%s468 + $0x748] sm:$0xff] %v3935
        %4000 = vst [vmem:[%s468 + $0x750] sm:$0xff] %v3936
        %4001 = vst [vmem:[%s468 + $0x758] sm:$0xff] %v3937
        %4002 = vst [vmem:[%s468 + $0x760] sm:$0xff] %v3938
        %4003 = vst [vmem:[%s468 + $0x768] sm:$0xff] %v3939
        %4004 = vst [vmem:[%s468 + $0x770] sm:$0xff] %v3940
        %4005 = vst [vmem:[%s468 + $0x778] sm:$0xff] %v3941
        %4006 = vst [vmem:[%s468 + $0x780] sm:$0xff] %v3942
        %4007 = vst [vmem:[%s468 + $0x788] sm:$0xff] %v3943
        %4008 = vst [vmem:[%s468 + $0x790] sm:$0xff] %v3944
        %4009 = vst [vmem:[%s468 + $0x798] sm:$0xff] %v3945
        %4010 = vst [vmem:[%s468 + $0x7a0] sm:$0xff] %v3946
        %4011 = vst [vmem:[%s468 + $0x7a8] sm:$0xff] %v3947
        %4012 = vst [vmem:[%s468 + $0x7b0] sm:$0xff] %v3948
        %4013 = vst [vmem:[%s468 + $0x7b8] sm:$0xff] %v3949
        %4014 = vst [vmem:[%s468 + $0x7c0] sm:$0xff] %v3950
        %4015 = vst [vmem:[%s468 + $0x7c8] sm:$0xff] %v3951
        %4016 = vst [vmem:[%s468 + $0x7d0] sm:$0xff] %v3952
        %4017 = vst [vmem:[%s468 + $0x7d8] sm:$0xff] %v3953
        %4018 = vst [vmem:[%s468 + $0x7e0] sm:$0xff] %v3954
        %4019 = vst [vmem:[%s468 + $0x7e8] sm:$0xff] %v3955
        %4020 = vst [vmem:[%s468 + $0x7f0] sm:$0xff] %v3956
        %4021 = vst [vmem:[%s468 + $0x7f8] sm:$0xff] %v3957
        %s4022 = smul.u32 2, %s29
        %p4023 = scmp.lt.s32.totalorder %s28, 1
        %s4024 = scalar_select %p4023, %s28, 1
        %p4025 = scmp.lt.s32.totalorder %s4022, 1
        %s4026 = scalar_select %p4025, %s4022, 1
        %s4027 = smul.addr %s4024, 272
        %s4028 = sadd.s32 %s4026, %s4027
        %s4029 = smul.addr %s4028, 8
        %s4030 = scalar_lea.vmem %s11, %s4029
        // Predicated region
        $region77: #{tpu_custom_call.1} parent=63 // pred_check
          %p4031 = pneg %p294
        $region78: #{tpu_custom_call.1} parent=63 // pred_check_branch
          %4033 = sbr.rel (%p4031) target = $region80
        $region79: #{tpu_custom_call.1} parent=63 // pred_region
          %s4034 = smul.u32 2, %s29
        $region80: #{tpu_custom_call.1} parent=63 // pred_fallthru
          _
      $region64: #{tpu_custom_call.1} parent=5 // pred_fallthru
        _
      %p4035 = scmp.le.s32.totalorder 2, %s19
      // Predicated region
      $region81: #{tpu_custom_call.1} parent=5 // pred_check
        %p4036 = pneg %p4035
      $region82: #{tpu_custom_call.1} parent=5 // pred_check_branch
        %4038 = sbr.rel (%p4036) target = $region84
      $region83: #{tpu_custom_call.1} parent=5 // pred_region
        %s4039 = ssub.s32 %s19, 2
        // Predicated region
        $region85: #{tpu_custom_call.1} parent=83 // pred_check
          %p4040 = pneg %p300
        $region86: #{tpu_custom_call.1} parent=83 // pred_check_branch
          %4042 = sbr.rel (%p4040) target = $region88
        $region87: #{tpu_custom_call.1} parent=83 // pred_region
          %s4043 = smul.u32 2, %s31
          %p4044 = scmp.lt.s32.totalorder %s30, 1
          %s4045 = scalar_select %p4044, %s30, 1
          %p4046 = scmp.lt.s32.totalorder %s4043, 1
          %s4047 = scalar_select %p4046, %s4043, 1
          %s4048 = smul.addr %s4045, 272
          %s4049 = sadd.s32 %s4047, %s4048
          %s4050 = smul.addr %s4049, 8
          %s4051 = scalar_lea.vmem %s11, %s4050
        $region88: #{tpu_custom_call.1} parent=83 // pred_fallthru
          _
      $region84: #{tpu_custom_call.1} parent=5 // pred_fallthru
        _
    $region6: #{tpu_custom_call.1} parent=1 // loop_footer
      %s23 = sadd.s32 1, %s19
    $region7: #{tpu_custom_call.1} parent=1 // loop_footer_branch
      %18 = sbr.rel target = $region3
    $region8: #{tpu_custom_call.1} parent=1 // loop_exit
      _
    %4052 = vsyncpa [#allocation3], 1
    %s4053 = scalar_lea.sflag [#allocation3], 1
    %4054 = vsyncpa %s4053, 1
    %4055 = vsyncpa [#allocation5], 1

</llo_original>
